<compile_context>
chip_gen: v5e
topology: v5e:2x2
jax: 0.10.0
libtpu: 0.0.40
codegen_flags: <defaults>
</compile_context>

<pallas_src>
import functools

import jax
import jax.numpy as jnp
from jax.experimental import pallas as pl
from jax.experimental.pallas import tpu as pltpu


# ----------------------------- tiling helpers ------------------------------ #

_TM_CAP, _TN_CAP, _TK_CAP = 256, 256, 1024


def _round_up(x, m):
    return (x + m - 1) // m * m


def _pick_tile(dim, cap, align):
    """Largest aligned tile <= cap that minimizes padding of `dim`."""
    padded = _round_up(dim, align)
    if padded <= cap:
        return padded
    best_t, best_waste = cap, _round_up(dim, cap) - dim
    for t in range(cap, align - 1, -align):
        waste = _round_up(dim, t) - dim
        if waste < best_waste:
            best_t, best_waste = t, waste
    return best_t


def gemm_tiles(M, K, N):
    tm = _pick_tile(M, _TM_CAP, 16)    # 16: bf16 sublane packing
    tk = _pick_tile(K, _TK_CAP, 128)   # lane dim of A block
    tn = _pick_tile(N, _TN_CAP, 128)   # lane dim of W/out block
    return tm, tk, tn


def pad_weight(w, b):
    """Pad [K,N] weight / [N] bias to tile multiples once, at init time."""
    K, N = w.shape
    _, tk, tn = gemm_tiles(8, K, N)            # K/N tiles don't depend on M
    Kp, Np = _round_up(K, tk), _round_up(N, tn)
    w_p = jnp.pad(w, ((0, Kp - K), (0, Np - N)))
    b_p = jnp.pad(b.reshape(1, N).astype(jnp.float32), ((0, 0), (0, Np - N)))
    return w_p, b_p


# ------------------------------ Pallas kernel ------------------------------ #

def _gemm_kernel(a_ref, w_ref, b_ref, o_ref, acc_ref, *,
                 apply_relu, dueling_epilogue, n_actions):
    k = pl.program_id(2)

    @pl.when(k == 0)
    def _init():
        acc_ref[...] = jnp.zeros_like(acc_ref)

    acc_ref[...] += jnp.dot(a_ref[...], w_ref[...],
                            preferred_element_type=jnp.float32)

    @pl.when(k == pl.num_programs(2) - 1)
    def _finalize():
        acc = acc_ref[...] + b_ref[...]
        if apply_relu:
            acc = jnp.maximum(acc, 0.0)
        if dueling_epilogue:
            # columns [0, n_actions) hold action values, column n_actions the
            # state value; padded columns have zero weights/bias.
            col = jax.lax.broadcasted_iota(jnp.int32, acc.shape, 1)
            act = jnp.where(col < n_actions, acc, 0.0)
            mean = jnp.sum(act, axis=-1, keepdims=True) * (1.0 / n_actions)
            sv = jnp.sum(jnp.where(col == n_actions, acc, 0.0),
                         axis=-1, keepdims=True)
            acc = sv + act - mean
        o_ref[...] = acc.astype(o_ref.dtype)


def pallas_matmul(a, w, b, *, n_out, apply_relu, out_dtype,
                  dueling_epilogue=False, n_actions=0):
    """out = [epilogue](a @ w + b); a:[M,K] (K <= w.shape[0]), w:[Kw,Nw], b:[1,Nw]."""
    M, K = a.shape
    Kw, Nw = w.shape
    assert K <= Kw and b.shape == (1, Nw), (a.shape, w.shape, b.shape)

    tm, tk, tn = gemm_tiles(M, Kw, Nw)
    Mp, Kp, Np = _round_up(M, tm), _round_up(Kw, tk), _round_up(Nw, tn)
    if dueling_epilogue:
        assert Np == tn, "dueling epilogue needs a single N tile"

    a = a.astype(jnp.bfloat16)
    if (Mp, Kp) != (M, K):
        a = jnp.pad(a, ((0, Mp - M), (0, Kp - K)))
    if (Kp, Np) != (Kw, Nw):            # weights are usually pre-padded -> no-op
        w = jnp.pad(w, ((0, Kp - Kw), (0, Np - Nw)))
        b = jnp.pad(b, ((0, 0), (0, Np - Nw)))

    grid = (Mp // tm, Np // tn, Kp // tk)
    kernel = functools.partial(_gemm_kernel, apply_relu=apply_relu,
                               dueling_epilogue=dueling_epilogue,
                               n_actions=n_actions)
    out = pl.pallas_call(
        kernel,
        out_shape=jax.ShapeDtypeStruct((Mp, Np), out_dtype),
        grid_spec=pltpu.PrefetchScalarGridSpec(
            num_scalar_prefetch=0,
            grid=grid,
            in_specs=[
                pl.BlockSpec((tm, tk), lambda i, j, k: (i, k)),
                pl.BlockSpec((tk, tn), lambda i, j, k: (k, j)),
                pl.BlockSpec((1, tn), lambda i, j, k: (0, j)),
            ],
            out_specs=pl.BlockSpec((tm, tn), lambda i, j, k: (i, j)),
            scratch_shapes=[pltpu.VMEM((tm, tn), jnp.float32)],
        ),
        compiler_params=pltpu.CompilerParams(
            dimension_semantics=("parallel", "parallel", "arbitrary")),
    )(a, w.astype(jnp.bfloat16), b.astype(jnp.float32))
    return out[:M, :n_out]


# ------------------------------- conv glue --------------------------------- #

def im2col_nhwc(x, kh, kw, stride):
    """VALID conv patches from NHWC input; rows (b,oh,ow), cols (kh,kw,c)."""
    B, H, W, C = x.shape
    OH = (H - kh) // stride + 1
    OW = (W - kw) // stride + 1
    cols = []
    for i in range(kh):
        for j in range(kw):
            cols.append(x[:, i:i + stride * OH:stride,
                          j:j + stride * OW:stride, :])      # [B,OH,OW,C]
    patches = jnp.stack(cols, axis=3)                         # [B,OH,OW,KH*KW,C]
    return patches.reshape(B * OH * OW, kh * kw * C), OH, OW


def conv2d_relu(x_nhwc, w_p, b_p, ksize, stride, c_out):
    """Conv2d+ReLU as im2col GEMM; weights pre-reshaped to [(kh,kw,cin), c_out]."""
    B = x_nhwc.shape[0]
    patches, OH, OW = im2col_nhwc(x_nhwc, ksize, ksize, stride)
    out = pallas_matmul(patches, w_p, b_p, n_out=c_out,
                        apply_relu=True, out_dtype=jnp.bfloat16)
    return out.reshape(B, OH, OW, c_out)


# ----------------------------- parameter setup ----------------------------- #

def init_torch_params(key, n_actions, c_in=4):
    """Synthetic weights in PyTorch layouts (Conv [Cout,Cin,KH,KW], Linear [out,in])."""
    def uni(k, shape, fan_in):
        bound = 1.0 / float(fan_in) ** 0.5
        return jax.random.uniform(k, shape, jnp.float32, -bound, bound)

    ks = jax.random.split(key, 14)
    p = {}
    p["c1_w"] = uni(ks[0], (32, c_in, 8, 8), c_in * 64)
    p["c1_b"] = uni(ks[1], (32,), c_in * 64)
    p["c2_w"] = uni(ks[2], (64, 32, 4, 4), 32 * 16)
    p["c2_b"] = uni(ks[3], (64,), 32 * 16)
    p["c3_w"] = uni(ks[4], (64, 64, 3, 3), 64 * 9)
    p["c3_b"] = uni(ks[5], (64,), 64 * 9)
    p["fc1_w"] = uni(ks[6], (512, 3136), 3136)
    p["fc1_b"] = uni(ks[7], (512,), 3136)
    p["fc2_w"] = uni(ks[8], (n_actions, 512), 512)
    p["fc2_b"] = uni(ks[9], (n_actions,), 512)
    p["sv1_w"] = uni(ks[10], (512, 3136), 3136)
    p["sv1_b"] = uni(ks[11], (512,), 3136)
    p["sv2_w"] = uni(ks[12], (1, 512), 512)
    p["sv2_b"] = uni(ks[13], (1,), 512)
    return p


def prepare_params(tp, n_actions, *, dueling, normalize):
    """One-time static transforms: NHWC reshapes, flatten-order permutation,
    head fusion, 1/255 folding, tile padding, bf16 cast."""
    def conv_prep(w, b, scale=1.0):
        c_out, c_in, kh, kw = w.shape
        w_mat = jnp.transpose(w, (2, 3, 1, 0)).reshape(kh * kw * c_in, c_out)
        w_p, b_p = pad_weight(w_mat * scale, b)
        return w_p.astype(jnp.bfloat16), b_p

    scale = (1.0 / 255.0) if normalize else 1.0
    p = {}
    p["c1_w"], p["c1_b"] = conv_prep(tp["c1_w"], tp["c1_b"], scale)
    p["c2_w"], p["c2_b"] = conv_prep(tp["c2_w"], tp["c2_b"])
    p["c3_w"], p["c3_b"] = conv_prep(tp["c3_w"], tp["c3_b"])

    def perm_chw_to_hwc(w_in_out, C=64, H=7, W=7):
        # torch Flatten on NCHW indexes (c,h,w); our NHWC flatten is (h,w,c).
        out = w_in_out.shape[1]
        return w_in_out.reshape(C, H, W, out).transpose(1, 2, 0, 3).reshape(C * H * W, out)

    fc1_w = perm_chw_to_hwc(tp["fc1_w"].T)     # [3136, 512]
    sv1_w = perm_chw_to_hwc(tp["sv1_w"].T)     # [3136, 512]
    fc2_w = tp["fc2_w"].T                      # [512, n_actions]
    sv2_w = tp["sv2_w"].T                      # [512, 1]

    if dueling:
        h1_w = jnp.concatenate([fc1_w, sv1_w], axis=1)              # [3136, 1024]
        h1_b = jnp.concatenate([tp["fc1_b"], tp["sv1_b"]])
        h2_w = jnp.zeros((1024, n_actions + 1), jnp.float32)
        h2_w = h2_w.at[:512, :n_actions].set(fc2_w)
        h2_w = h2_w.at[512:, n_actions].set(sv2_w[:, 0])
        h2_b = jnp.concatenate([tp["fc2_b"], tp["sv2_b"]])
    else:
        h1_w, h1_b = fc1_w, tp["fc1_b"]
        h2_w, h2_b = fc2_w, tp["fc2_b"]

    h1_wp, h1_bp = pad_weight(h1_w, h1_b)
    h2_wp, h2_bp = pad_weight(h2_w, h2_b)
    p["h1_w"], p["h1_b"] = h1_wp.astype(jnp.bfloat16), h1_bp
    p["h2_w"], p["h2_b"] = h2_wp.astype(jnp.bfloat16), h2_bp
    return p


# --------------------------------- forward --------------------------------- #

def dqn_forward(params, x, *, dueling, n_actions):
    """x: [B, c_in, 84, 84] NCHW (84x84 required so Flatten -> 3136)."""
    x = jnp.transpose(x, (0, 2, 3, 1)).astype(jnp.bfloat16)   # NCHW -> NHWC once
    h = conv2d_relu(x, params["c1_w"], params["c1_b"], 8, 4, 32)
    h = conv2d_relu(h, params["c2_w"], params["c2_b"], 4, 2, 64)
    h = conv2d_relu(h, params["c3_w"], params["c3_b"], 3, 1, 64)
    flat = h.reshape(h.shape[0], -1)                           # (h,w,c) flatten

    n_hidden = 1024 if dueling else 512
    hid = pallas_matmul(flat, params["h1_w"], params["h1_b"], n_out=n_hidden,
                        apply_relu=True, out_dtype=jnp.bfloat16)
    q = pallas_matmul(hid, params["h2_w"], params["h2_b"], n_out=n_actions,
                      apply_relu=False, out_dtype=jnp.float32,
                      dueling_epilogue=dueling, n_actions=n_actions)
    return q


# ----------------------------------- main ----------------------------------- #

if __name__ == "__main__":
    n_actions = 6
    batch, c_in = 2, 4

    key = jax.random.PRNGKey(0)
    k_param, k_x = jax.random.split(key)
    torch_params = init_torch_params(k_param, n_actions, c_in)
    params_plain = prepare_params(torch_params, n_actions, dueling=False, normalize=True)
    params_duel = prepare_params(torch_params, n_actions, dueling=True, normalize=True)

    # Atari-style frames in [0, 255]; 84x84 is implied by Linear(3136, 512).
    x = jax.random.uniform(k_x, (batch, c_in, 84, 84), jnp.float32, 0.0, 255.0)

    fwd_plain = jax.jit(functools.partial(dqn_forward, dueling=False, n_actions=n_actions))
    fwd_duel = jax.jit(functools.partial(dqn_forward, dueling=True, n_actions=n_actions))

    out_plain = jax.block_until_ready(fwd_plain(params_plain, x))
    out_duel = jax.block_until_ready(fwd_duel(params_duel, x))

    assert out_plain.shape == (batch, n_actions), out_plain.shape
    assert out_duel.shape == (batch, n_actions), out_duel.shape
    assert out_plain.dtype == jnp.float32 and out_duel.dtype == jnp.float32
    assert bool(jnp.all(jnp.isfinite(out_plain))) and bool(jnp.all(jnp.isfinite(out_duel)))

    print("KERNEL_OK")
</pallas_src>

<mosaic_0001>
module attributes {stable_mosaic.version = 11 : i64} {
  func.func @_gemm_kernel(%arg0: i32, %arg1: i32, %arg2: i32, %arg3: memref<160x256xbf16, #tpu.memory_space<vmem>>, %arg4: memref<256x128xbf16, #tpu.memory_space<vmem>>, %arg5: memref<1x128xf32, #tpu.memory_space<vmem>>, %arg6: memref<160x128xbf16, #tpu.memory_space<vmem>>, %arg7: memref<160x128xf32, #tpu.memory_space<vmem>>) attributes {dimension_semantics = [#tpu.dimension_semantics<parallel>, #tpu.dimension_semantics<parallel>, #tpu.dimension_semantics<arbitrary>], iteration_bounds = array<i64: 5, 1, 1>, scalar_prefetch = 0 : i64, scratch_operands = 1 : i64, tpu.core_type = #tpu.core_type<tc>, window_params = [{transform_indices = @transform_0, window_bounds = array<i64: 160, 256>}, {transform_indices = @transform_1, window_bounds = array<i64: 256, 128>}, {transform_indices = @transform_2, window_bounds = array<i64: 1, 128>}, {transform_indices = @transform_3, window_bounds = array<i64: 160, 128>}]} {
    %c0_i32 = arith.constant 0 : i32
    %0 = arith.cmpi eq, %arg2, %c0_i32 : i32
    %1 = arith.extui %0 : i1 to i32
    %c0_i32_0 = arith.constant 0 : i32
    %2 = arith.cmpi ne, %1, %c0_i32_0 : i32
    scf.if %2 {
      %cst_10 = arith.constant 0.000000e+00 : f32
      %12 = vector.broadcast %cst_10 : f32 to vector<160x128xf32>
      %c0_11 = arith.constant 0 : index
      %c0_12 = arith.constant 0 : index
      %13 = vector.load %arg7[%c0_11, %c0_12] : memref<160x128xf32, #tpu.memory_space<vmem>>, vector<160x128xf32>
      tpu.vector_store %arg7[%c0_11, %c0_12], %12 {strides = array<i32>} : memref<160x128xf32, #tpu.memory_space<vmem>>, vector<160x128xf32>,
    } else {
    }
    %c0 = arith.constant 0 : index
    %c0_1 = arith.constant 0 : index
    %3 = vector.load %arg7[%c0, %c0_1] : memref<160x128xf32, #tpu.memory_space<vmem>>, vector<160x128xf32>
    %c0_2 = arith.constant 0 : index
    %c0_3 = arith.constant 0 : index
    %4 = vector.load %arg3[%c0_2, %c0_3] : memref<160x256xbf16, #tpu.memory_space<vmem>>, vector<160x256xbf16>
    %c0_4 = arith.constant 0 : index
    %c0_5 = arith.constant 0 : index
    %5 = vector.load %arg4[%c0_4, %c0_5] : memref<256x128xbf16, #tpu.memory_space<vmem>>, vector<256x128xbf16>
    %cst = arith.constant dense<0.000000e+00> : vector<160x128xf32>
    %6 = tpu.matmul %4, %5, %cst {dimension_numbers = #tpu.dot_dimension_numbers<[1], [0], [0], [1], [0, 0, 1, 1], [], []>} : vector<160x256xbf16>, vector<256x128xbf16>, vector<160x128xf32> -> vector<160x128xf32>
    %7 = arith.addf %3, %6 : vector<160x128xf32>
    %c0_6 = arith.constant 0 : index
    %c0_7 = arith.constant 0 : index
    %8 = vector.load %arg7[%c0_6, %c0_7] : memref<160x128xf32, #tpu.memory_space<vmem>>, vector<160x128xf32>
    tpu.vector_store %arg7[%c0_6, %c0_7], %7 {strides = array<i32>} : memref<160x128xf32, #tpu.memory_space<vmem>>, vector<160x128xf32>,
    %c0_i32_8 = arith.constant 0 : i32
    %9 = arith.cmpi eq, %arg2, %c0_i32_8 : i32
    %10 = arith.extui %9 : i1 to i32
    %c0_i32_9 = arith.constant 0 : i32
    %11 = arith.cmpi ne, %10, %c0_i32_9 : i32
    scf.if %11 {
      %c0_10 = arith.constant 0 : index
      %c0_11 = arith.constant 0 : index
      %12 = vector.load %arg7[%c0_10, %c0_11] : memref<160x128xf32, #tpu.memory_space<vmem>>, vector<160x128xf32>
      %c0_12 = arith.constant 0 : index
      %c0_13 = arith.constant 0 : index
      %13 = vector.load %arg5[%c0_12, %c0_13] : memref<1x128xf32, #tpu.memory_space<vmem>>, vector<1x128xf32>
      %14 = vector.broadcast %13 : vector<1x128xf32> to vector<160x128xf32>
      %15 = arith.addf %12, %14 : vector<160x128xf32>
      %cst_14 = arith.constant 0.000000e+00 : f32
      %16 = vector.broadcast %cst_14 : f32 to vector<160x128xf32>
      %17 = arith.maximumf %15, %16 : vector<160x128xf32>
      %18 = arith.truncf %17 : vector<160x128xf32> to vector<160x128xbf16>
      %c0_15 = arith.constant 0 : index
      %c0_16 = arith.constant 0 : index
      %19 = vector.load %arg6[%c0_15, %c0_16] : memref<160x128xbf16, #tpu.memory_space<vmem>>, vector<160x128xbf16>
      tpu.vector_store %arg6[%c0_15, %c0_16], %18 {strides = array<i32>} : memref<160x128xbf16, #tpu.memory_space<vmem>>, vector<160x128xbf16>,
    } else {
    }
    return
  }
  func.func @transform_0(%arg0: i32, %arg1: i32, %arg2: i32) -> (i32, i32) {
    %c0_i32 = arith.constant 0 : i32
    return %arg0, %arg2 : i32, i32
  }
  func.func @transform_1(%arg0: i32, %arg1: i32, %arg2: i32) -> (i32, i32) {
    %c0_i32 = arith.constant 0 : i32
    return %arg2, %arg1 : i32, i32
  }
  func.func @transform_2(%arg0: i32, %arg1: i32, %arg2: i32) -> (i32, i32) {
    %c0_i32 = arith.constant 0 : i32
    %c0_i32_0 = arith.constant 0 : i32
    return %c0_i32, %arg1 : i32, i32
  }
  func.func @transform_3(%arg0: i32, %arg1: i32, %arg2: i32) -> (i32, i32) {
    %c0_i32 = arith.constant 0 : i32
    return %arg0, %arg1 : i32, i32
  }
}

module attributes {stable_mosaic.version = 11 : i64} {
  func.func @_gemm_kernel(%arg0: i32, %arg1: i32, %arg2: i32, %arg3: memref<176x512xbf16, #tpu.memory_space<vmem>>, %arg4: memref<512x128xbf16, #tpu.memory_space<vmem>>, %arg5: memref<1x128xf32, #tpu.memory_space<vmem>>, %arg6: memref<176x128xbf16, #tpu.memory_space<vmem>>, %arg7: memref<176x128xf32, #tpu.memory_space<vmem>>) attributes {dimension_semantics = [#tpu.dimension_semantics<parallel>, #tpu.dimension_semantics<parallel>, #tpu.dimension_semantics<arbitrary>], iteration_bounds = array<i64: 1, 1, 1>, scalar_prefetch = 0 : i64, scratch_operands = 1 : i64, tpu.core_type = #tpu.core_type<tc>, window_params = [{transform_indices = @transform_0, window_bounds = array<i64: 176, 512>}, {transform_indices = @transform_1, window_bounds = array<i64: 512, 128>}, {transform_indices = @transform_2, window_bounds = array<i64: 1, 128>}, {transform_indices = @transform_3, window_bounds = array<i64: 176, 128>}]} {
    %c0_i32 = arith.constant 0 : i32
    %0 = arith.cmpi eq, %arg2, %c0_i32 : i32
    %1 = arith.extui %0 : i1 to i32
    %c0_i32_0 = arith.constant 0 : i32
    %2 = arith.cmpi ne, %1, %c0_i32_0 : i32
    scf.if %2 {
      %cst_10 = arith.constant 0.000000e+00 : f32
      %12 = vector.broadcast %cst_10 : f32 to vector<176x128xf32>
      %c0_11 = arith.constant 0 : index
      %c0_12 = arith.constant 0 : index
      %13 = vector.load %arg7[%c0_11, %c0_12] : memref<176x128xf32, #tpu.memory_space<vmem>>, vector<176x128xf32>
      tpu.vector_store %arg7[%c0_11, %c0_12], %12 {strides = array<i32>} : memref<176x128xf32, #tpu.memory_space<vmem>>, vector<176x128xf32>,
    } else {
    }
    %c0 = arith.constant 0 : index
    %c0_1 = arith.constant 0 : index
    %3 = vector.load %arg7[%c0, %c0_1] : memref<176x128xf32, #tpu.memory_space<vmem>>, vector<176x128xf32>
    %c0_2 = arith.constant 0 : index
    %c0_3 = arith.constant 0 : index
    %4 = vector.load %arg3[%c0_2, %c0_3] : memref<176x512xbf16, #tpu.memory_space<vmem>>, vector<176x512xbf16>
    %c0_4 = arith.constant 0 : index
    %c0_5 = arith.constant 0 : index
    %5 = vector.load %arg4[%c0_4, %c0_5] : memref<512x128xbf16, #tpu.memory_space<vmem>>, vector<512x128xbf16>
    %cst = arith.constant dense<0.000000e+00> : vector<176x128xf32>
    %6 = tpu.matmul %4, %5, %cst {dimension_numbers = #tpu.dot_dimension_numbers<[1], [0], [0], [1], [0, 0, 1, 1], [], []>} : vector<176x512xbf16>, vector<512x128xbf16>, vector<176x128xf32> -> vector<176x128xf32>
    %7 = arith.addf %3, %6 : vector<176x128xf32>
    %c0_6 = arith.constant 0 : index
    %c0_7 = arith.constant 0 : index
    %8 = vector.load %arg7[%c0_6, %c0_7] : memref<176x128xf32, #tpu.memory_space<vmem>>, vector<176x128xf32>
    tpu.vector_store %arg7[%c0_6, %c0_7], %7 {strides = array<i32>} : memref<176x128xf32, #tpu.memory_space<vmem>>, vector<176x128xf32>,
    %c0_i32_8 = arith.constant 0 : i32
    %9 = arith.cmpi eq, %arg2, %c0_i32_8 : i32
    %10 = arith.extui %9 : i1 to i32
    %c0_i32_9 = arith.constant 0 : i32
    %11 = arith.cmpi ne, %10, %c0_i32_9 : i32
    scf.if %11 {
      %c0_10 = arith.constant 0 : index
      %c0_11 = arith.constant 0 : index
      %12 = vector.load %arg7[%c0_10, %c0_11] : memref<176x128xf32, #tpu.memory_space<vmem>>, vector<176x128xf32>
      %c0_12 = arith.constant 0 : index
      %c0_13 = arith.constant 0 : index
      %13 = vector.load %arg5[%c0_12, %c0_13] : memref<1x128xf32, #tpu.memory_space<vmem>>, vector<1x128xf32>
      %14 = vector.broadcast %13 : vector<1x128xf32> to vector<176x128xf32>
      %15 = arith.addf %12, %14 : vector<176x128xf32>
      %cst_14 = arith.constant 0.000000e+00 : f32
      %16 = vector.broadcast %cst_14 : f32 to vector<176x128xf32>
      %17 = arith.maximumf %15, %16 : vector<176x128xf32>
      %18 = arith.truncf %17 : vector<176x128xf32> to vector<176x128xbf16>
      %c0_15 = arith.constant 0 : index
      %c0_16 = arith.constant 0 : index
      %19 = vector.load %arg6[%c0_15, %c0_16] : memref<176x128xbf16, #tpu.memory_space<vmem>>, vector<176x128xbf16>
      tpu.vector_store %arg6[%c0_15, %c0_16], %18 {strides = array<i32>} : memref<176x128xbf16, #tpu.memory_space<vmem>>, vector<176x128xbf16>,
    } else {
    }
    return
  }
  func.func @transform_0(%arg0: i32, %arg1: i32, %arg2: i32) -> (i32, i32) {
    %c0_i32 = arith.constant 0 : i32
    return %arg0, %arg2 : i32, i32
  }
  func.func @transform_1(%arg0: i32, %arg1: i32, %arg2: i32) -> (i32, i32) {
    %c0_i32 = arith.constant 0 : i32
    return %arg2, %arg1 : i32, i32
  }
  func.func @transform_2(%arg0: i32, %arg1: i32, %arg2: i32) -> (i32, i32) {
    %c0_i32 = arith.constant 0 : i32
    %c0_i32_0 = arith.constant 0 : i32
    return %c0_i32, %arg1 : i32, i32
  }
  func.func @transform_3(%arg0: i32, %arg1: i32, %arg2: i32) -> (i32, i32) {
    %c0_i32 = arith.constant 0 : i32
    return %arg0, %arg1 : i32, i32
  }
}

module attributes {stable_mosaic.version = 11 : i64} {
  func.func @_gemm_kernel(%arg0: i32, %arg1: i32, %arg2: i32, %arg3: memref<112x640xbf16, #tpu.memory_space<vmem>>, %arg4: memref<640x128xbf16, #tpu.memory_space<vmem>>, %arg5: memref<1x128xf32, #tpu.memory_space<vmem>>, %arg6: memref<112x128xbf16, #tpu.memory_space<vmem>>, %arg7: memref<112x128xf32, #tpu.memory_space<vmem>>) attributes {dimension_semantics = [#tpu.dimension_semantics<parallel>, #tpu.dimension_semantics<parallel>, #tpu.dimension_semantics<arbitrary>], iteration_bounds = array<i64: 1, 1, 1>, scalar_prefetch = 0 : i64, scratch_operands = 1 : i64, tpu.core_type = #tpu.core_type<tc>, window_params = [{transform_indices = @transform_0, window_bounds = array<i64: 112, 640>}, {transform_indices = @transform_1, window_bounds = array<i64: 640, 128>}, {transform_indices = @transform_2, window_bounds = array<i64: 1, 128>}, {transform_indices = @transform_3, window_bounds = array<i64: 112, 128>}]} {
    %c0_i32 = arith.constant 0 : i32
    %0 = arith.cmpi eq, %arg2, %c0_i32 : i32
    %1 = arith.extui %0 : i1 to i32
    %c0_i32_0 = arith.constant 0 : i32
    %2 = arith.cmpi ne, %1, %c0_i32_0 : i32
    scf.if %2 {
      %cst_10 = arith.constant 0.000000e+00 : f32
      %12 = vector.broadcast %cst_10 : f32 to vector<112x128xf32>
      %c0_11 = arith.constant 0 : index
      %c0_12 = arith.constant 0 : index
      %13 = vector.load %arg7[%c0_11, %c0_12] : memref<112x128xf32, #tpu.memory_space<vmem>>, vector<112x128xf32>
      tpu.vector_store %arg7[%c0_11, %c0_12], %12 {strides = array<i32>} : memref<112x128xf32, #tpu.memory_space<vmem>>, vector<112x128xf32>,
    } else {
    }
    %c0 = arith.constant 0 : index
    %c0_1 = arith.constant 0 : index
    %3 = vector.load %arg7[%c0, %c0_1] : memref<112x128xf32, #tpu.memory_space<vmem>>, vector<112x128xf32>
    %c0_2 = arith.constant 0 : index
    %c0_3 = arith.constant 0 : index
    %4 = vector.load %arg3[%c0_2, %c0_3] : memref<112x640xbf16, #tpu.memory_space<vmem>>, vector<112x640xbf16>
    %c0_4 = arith.constant 0 : index
    %c0_5 = arith.constant 0 : index
    %5 = vector.load %arg4[%c0_4, %c0_5] : memref<640x128xbf16, #tpu.memory_space<vmem>>, vector<640x128xbf16>
    %cst = arith.constant dense<0.000000e+00> : vector<112x128xf32>
    %6 = tpu.matmul %4, %5, %cst {dimension_numbers = #tpu.dot_dimension_numbers<[1], [0], [0], [1], [0, 0, 1, 1], [], []>} : vector<112x640xbf16>, vector<640x128xbf16>, vector<112x128xf32> -> vector<112x128xf32>
    %7 = arith.addf %3, %6 : vector<112x128xf32>
    %c0_6 = arith.constant 0 : index
    %c0_7 = arith.constant 0 : index
    %8 = vector.load %arg7[%c0_6, %c0_7] : memref<112x128xf32, #tpu.memory_space<vmem>>, vector<112x128xf32>
    tpu.vector_store %arg7[%c0_6, %c0_7], %7 {strides = array<i32>} : memref<112x128xf32, #tpu.memory_space<vmem>>, vector<112x128xf32>,
    %c0_i32_8 = arith.constant 0 : i32
    %9 = arith.cmpi eq, %arg2, %c0_i32_8 : i32
    %10 = arith.extui %9 : i1 to i32
    %c0_i32_9 = arith.constant 0 : i32
    %11 = arith.cmpi ne, %10, %c0_i32_9 : i32
    scf.if %11 {
      %c0_10 = arith.constant 0 : index
      %c0_11 = arith.constant 0 : index
      %12 = vector.load %arg7[%c0_10, %c0_11] : memref<112x128xf32, #tpu.memory_space<vmem>>, vector<112x128xf32>
      %c0_12 = arith.constant 0 : index
      %c0_13 = arith.constant 0 : index
      %13 = vector.load %arg5[%c0_12, %c0_13] : memref<1x128xf32, #tpu.memory_space<vmem>>, vector<1x128xf32>
      %14 = vector.broadcast %13 : vector<1x128xf32> to vector<112x128xf32>
      %15 = arith.addf %12, %14 : vector<112x128xf32>
      %cst_14 = arith.constant 0.000000e+00 : f32
      %16 = vector.broadcast %cst_14 : f32 to vector<112x128xf32>
      %17 = arith.maximumf %15, %16 : vector<112x128xf32>
      %18 = arith.truncf %17 : vector<112x128xf32> to vector<112x128xbf16>
      %c0_15 = arith.constant 0 : index
      %c0_16 = arith.constant 0 : index
      %19 = vector.load %arg6[%c0_15, %c0_16] : memref<112x128xbf16, #tpu.memory_space<vmem>>, vector<112x128xbf16>
      tpu.vector_store %arg6[%c0_15, %c0_16], %18 {strides = array<i32>} : memref<112x128xbf16, #tpu.memory_space<vmem>>, vector<112x128xbf16>,
    } else {
    }
    return
  }
  func.func @transform_0(%arg0: i32, %arg1: i32, %arg2: i32) -> (i32, i32) {
    %c0_i32 = arith.constant 0 : i32
    return %arg0, %arg2 : i32, i32
  }
  func.func @transform_1(%arg0: i32, %arg1: i32, %arg2: i32) -> (i32, i32) {
    %c0_i32 = arith.constant 0 : i32
    return %arg2, %arg1 : i32, i32
  }
  func.func @transform_2(%arg0: i32, %arg1: i32, %arg2: i32) -> (i32, i32) {
    %c0_i32 = arith.constant 0 : i32
    %c0_i32_0 = arith.constant 0 : i32
    return %c0_i32, %arg1 : i32, i32
  }
  func.func @transform_3(%arg0: i32, %arg1: i32, %arg2: i32) -> (i32, i32) {
    %c0_i32 = arith.constant 0 : i32
    return %arg0, %arg1 : i32, i32
  }
}

module attributes {stable_mosaic.version = 11 : i64} {
  func.func @_gemm_kernel(%arg0: i32, %arg1: i32, %arg2: i32, %arg3: memref<16x640xbf16, #tpu.memory_space<vmem>>, %arg4: memref<640x256xbf16, #tpu.memory_space<vmem>>, %arg5: memref<1x256xf32, #tpu.memory_space<vmem>>, %arg6: memref<16x256xbf16, #tpu.memory_space<vmem>>, %arg7: memref<16x256xf32, #tpu.memory_space<vmem>>) attributes {dimension_semantics = [#tpu.dimension_semantics<parallel>, #tpu.dimension_semantics<parallel>, #tpu.dimension_semantics<arbitrary>], iteration_bounds = array<i64: 1, 2, 5>, scalar_prefetch = 0 : i64, scratch_operands = 1 : i64, tpu.core_type = #tpu.core_type<tc>, window_params = [{transform_indices = @transform_0, window_bounds = array<i64: 16, 640>}, {transform_indices = @transform_1, window_bounds = array<i64: 640, 256>}, {transform_indices = @transform_2, window_bounds = array<i64: 1, 256>}, {transform_indices = @transform_3, window_bounds = array<i64: 16, 256>}]} {
    %c0_i32 = arith.constant 0 : i32
    %0 = arith.cmpi eq, %arg2, %c0_i32 : i32
    %1 = arith.extui %0 : i1 to i32
    %c0_i32_0 = arith.constant 0 : i32
    %2 = arith.cmpi ne, %1, %c0_i32_0 : i32
    scf.if %2 {
      %cst_9 = arith.constant 0.000000e+00 : f32
      %12 = vector.broadcast %cst_9 : f32 to vector<16x256xf32>
      %c0_10 = arith.constant 0 : index
      %c0_11 = arith.constant 0 : index
      %13 = vector.load %arg7[%c0_10, %c0_11] : memref<16x256xf32, #tpu.memory_space<vmem>>, vector<16x256xf32>
      tpu.vector_store %arg7[%c0_10, %c0_11], %12 {strides = array<i32>} : memref<16x256xf32, #tpu.memory_space<vmem>>, vector<16x256xf32>,
    } else {
    }
    %c0 = arith.constant 0 : index
    %c0_1 = arith.constant 0 : index
    %3 = vector.load %arg7[%c0, %c0_1] : memref<16x256xf32, #tpu.memory_space<vmem>>, vector<16x256xf32>
    %c0_2 = arith.constant 0 : index
    %c0_3 = arith.constant 0 : index
    %4 = vector.load %arg3[%c0_2, %c0_3] : memref<16x640xbf16, #tpu.memory_space<vmem>>, vector<16x640xbf16>
    %c0_4 = arith.constant 0 : index
    %c0_5 = arith.constant 0 : index
    %5 = vector.load %arg4[%c0_4, %c0_5] : memref<640x256xbf16, #tpu.memory_space<vmem>>, vector<640x256xbf16>
    %cst = arith.constant dense<0.000000e+00> : vector<16x256xf32>
    %6 = tpu.matmul %4, %5, %cst {dimension_numbers = #tpu.dot_dimension_numbers<[1], [0], [0], [1], [0, 0, 1, 1], [], []>} : vector<16x640xbf16>, vector<640x256xbf16>, vector<16x256xf32> -> vector<16x256xf32>
    %7 = arith.addf %3, %6 : vector<16x256xf32>
    %c0_6 = arith.constant 0 : index
    %c0_7 = arith.constant 0 : index
    %8 = vector.load %arg7[%c0_6, %c0_7] : memref<16x256xf32, #tpu.memory_space<vmem>>, vector<16x256xf32>
    tpu.vector_store %arg7[%c0_6, %c0_7], %7 {strides = array<i32>} : memref<16x256xf32, #tpu.memory_space<vmem>>, vector<16x256xf32>,
    %c4_i32 = arith.constant 4 : i32
    %9 = arith.cmpi eq, %arg2, %c4_i32 : i32
    %10 = arith.extui %9 : i1 to i32
    %c0_i32_8 = arith.constant 0 : i32
    %11 = arith.cmpi ne, %10, %c0_i32_8 : i32
    scf.if %11 {
      %c0_9 = arith.constant 0 : index
      %c0_10 = arith.constant 0 : index
      %12 = vector.load %arg7[%c0_9, %c0_10] : memref<16x256xf32, #tpu.memory_space<vmem>>, vector<16x256xf32>
      %c0_11 = arith.constant 0 : index
      %c0_12 = arith.constant 0 : index
      %13 = vector.load %arg5[%c0_11, %c0_12] : memref<1x256xf32, #tpu.memory_space<vmem>>, vector<1x256xf32>
      %14 = vector.broadcast %13 : vector<1x256xf32> to vector<16x256xf32>
      %15 = arith.addf %12, %14 : vector<16x256xf32>
      %cst_13 = arith.constant 0.000000e+00 : f32
      %16 = vector.broadcast %cst_13 : f32 to vector<16x256xf32>
      %17 = arith.maximumf %15, %16 : vector<16x256xf32>
      %18 = arith.truncf %17 : vector<16x256xf32> to vector<16x256xbf16>
      %c0_14 = arith.constant 0 : index
      %c0_15 = arith.constant 0 : index
      %19 = vector.load %arg6[%c0_14, %c0_15] : memref<16x256xbf16, #tpu.memory_space<vmem>>, vector<16x256xbf16>
      tpu.vector_store %arg6[%c0_14, %c0_15], %18 {strides = array<i32>} : memref<16x256xbf16, #tpu.memory_space<vmem>>, vector<16x256xbf16>,
    } else {
    }
    return
  }
  func.func @transform_0(%arg0: i32, %arg1: i32, %arg2: i32) -> (i32, i32) {
    %c0_i32 = arith.constant 0 : i32
    return %arg0, %arg2 : i32, i32
  }
  func.func @transform_1(%arg0: i32, %arg1: i32, %arg2: i32) -> (i32, i32) {
    %c0_i32 = arith.constant 0 : i32
    return %arg2, %arg1 : i32, i32
  }
  func.func @transform_2(%arg0: i32, %arg1: i32, %arg2: i32) -> (i32, i32) {
    %c0_i32 = arith.constant 0 : i32
    %c0_i32_0 = arith.constant 0 : i32
    return %c0_i32, %arg1 : i32, i32
  }
  func.func @transform_3(%arg0: i32, %arg1: i32, %arg2: i32) -> (i32, i32) {
    %c0_i32 = arith.constant 0 : i32
    return %arg0, %arg1 : i32, i32
  }
}

module attributes {stable_mosaic.version = 11 : i64} {
  func.func @_gemm_kernel(%arg0: i32, %arg1: i32, %arg2: i32, %arg3: memref<16x512xbf16, #tpu.memory_space<vmem>>, %arg4: memref<512x128xbf16, #tpu.memory_space<vmem>>, %arg5: memref<1x128xf32, #tpu.memory_space<vmem>>, %arg6: memref<16x128xf32, #tpu.memory_space<vmem>>, %arg7: memref<16x128xf32, #tpu.memory_space<vmem>>) attributes {dimension_semantics = [#tpu.dimension_semantics<parallel>, #tpu.dimension_semantics<parallel>, #tpu.dimension_semantics<arbitrary>], iteration_bounds = array<i64: 1, 1, 1>, scalar_prefetch = 0 : i64, scratch_operands = 1 : i64, tpu.core_type = #tpu.core_type<tc>, window_params = [{transform_indices = @transform_0, window_bounds = array<i64: 16, 512>}, {transform_indices = @transform_1, window_bounds = array<i64: 512, 128>}, {transform_indices = @transform_2, window_bounds = array<i64: 1, 128>}, {transform_indices = @transform_3, window_bounds = array<i64: 16, 128>}]} {
    %c0_i32 = arith.constant 0 : i32
    %0 = arith.cmpi eq, %arg2, %c0_i32 : i32
    %1 = arith.extui %0 : i1 to i32
    %c0_i32_0 = arith.constant 0 : i32
    %2 = arith.cmpi ne, %1, %c0_i32_0 : i32
    scf.if %2 {
      %cst_10 = arith.constant 0.000000e+00 : f32
      %12 = vector.broadcast %cst_10 : f32 to vector<16x128xf32>
      %c0_11 = arith.constant 0 : index
      %c0_12 = arith.constant 0 : index
      %13 = vector.load %arg7[%c0_11, %c0_12] : memref<16x128xf32, #tpu.memory_space<vmem>>, vector<16x128xf32>
      tpu.vector_store %arg7[%c0_11, %c0_12], %12 {strides = array<i32>} : memref<16x128xf32, #tpu.memory_space<vmem>>, vector<16x128xf32>,
    } else {
    }
    %c0 = arith.constant 0 : index
    %c0_1 = arith.constant 0 : index
    %3 = vector.load %arg7[%c0, %c0_1] : memref<16x128xf32, #tpu.memory_space<vmem>>, vector<16x128xf32>
    %c0_2 = arith.constant 0 : index
    %c0_3 = arith.constant 0 : index
    %4 = vector.load %arg3[%c0_2, %c0_3] : memref<16x512xbf16, #tpu.memory_space<vmem>>, vector<16x512xbf16>
    %c0_4 = arith.constant 0 : index
    %c0_5 = arith.constant 0 : index
    %5 = vector.load %arg4[%c0_4, %c0_5] : memref<512x128xbf16, #tpu.memory_space<vmem>>, vector<512x128xbf16>
    %cst = arith.constant dense<0.000000e+00> : vector<16x128xf32>
    %6 = tpu.matmul %4, %5, %cst {dimension_numbers = #tpu.dot_dimension_numbers<[1], [0], [0], [1], [0, 0, 1, 1], [], []>} : vector<16x512xbf16>, vector<512x128xbf16>, vector<16x128xf32> -> vector<16x128xf32>
    %7 = arith.addf %3, %6 : vector<16x128xf32>
    %c0_6 = arith.constant 0 : index
    %c0_7 = arith.constant 0 : index
    %8 = vector.load %arg7[%c0_6, %c0_7] : memref<16x128xf32, #tpu.memory_space<vmem>>, vector<16x128xf32>
    tpu.vector_store %arg7[%c0_6, %c0_7], %7 {strides = array<i32>} : memref<16x128xf32, #tpu.memory_space<vmem>>, vector<16x128xf32>,
    %c0_i32_8 = arith.constant 0 : i32
    %9 = arith.cmpi eq, %arg2, %c0_i32_8 : i32
    %10 = arith.extui %9 : i1 to i32
    %c0_i32_9 = arith.constant 0 : i32
    %11 = arith.cmpi ne, %10, %c0_i32_9 : i32
    scf.if %11 {
      %c0_10 = arith.constant 0 : index
      %c0_11 = arith.constant 0 : index
      %12 = vector.load %arg7[%c0_10, %c0_11] : memref<16x128xf32, #tpu.memory_space<vmem>>, vector<16x128xf32>
      %c0_12 = arith.constant 0 : index
      %c0_13 = arith.constant 0 : index
      %13 = vector.load %arg5[%c0_12, %c0_13] : memref<1x128xf32, #tpu.memory_space<vmem>>, vector<1x128xf32>
      %14 = vector.broadcast %13 : vector<1x128xf32> to vector<16x128xf32>
      %15 = arith.addf %12, %14 : vector<16x128xf32>
      %c0_14 = arith.constant 0 : index
      %c0_15 = arith.constant 0 : index
      %16 = vector.load %arg6[%c0_14, %c0_15] : memref<16x128xf32, #tpu.memory_space<vmem>>, vector<16x128xf32>
      tpu.vector_store %arg6[%c0_14, %c0_15], %15 {strides = array<i32>} : memref<16x128xf32, #tpu.memory_space<vmem>>, vector<16x128xf32>,
    } else {
    }
    return
  }
  func.func @transform_0(%arg0: i32, %arg1: i32, %arg2: i32) -> (i32, i32) {
    %c0_i32 = arith.constant 0 : i32
    return %arg0, %arg2 : i32, i32
  }
  func.func @transform_1(%arg0: i32, %arg1: i32, %arg2: i32) -> (i32, i32) {
    %c0_i32 = arith.constant 0 : i32
    return %arg2, %arg1 : i32, i32
  }
  func.func @transform_2(%arg0: i32, %arg1: i32, %arg2: i32) -> (i32, i32) {
    %c0_i32 = arith.constant 0 : i32
    %c0_i32_0 = arith.constant 0 : i32
    return %c0_i32, %arg1 : i32, i32
  }
  func.func @transform_3(%arg0: i32, %arg1: i32, %arg2: i32) -> (i32, i32) {
    %c0_i32 = arith.constant 0 : i32
    return %arg0, %arg1 : i32, i32
  }
}

</mosaic_0001>

<llo_original>
// kernel: dqn_forward.5
$region0: #{dqn_forward.5}
  #allocation0 [shape = 'u32[]', space=smem, size = 0x4, offset = 0x4, fixed_abs, tag = 'smem constant byte address 0x4 - core index']
  #allocation1 [shape = 'u32[72,128]{1,0:T(1,128)}', space=vmem, size = 0x9000, scoped, tag = 'internal scratch']
  #allocation2 [shape = 'f32[160,128]{1,0:T(8,128)}', space=vmem, size = 0x14000, scoped, tag = 'scratch operand']
  %s0 = inlined_call_operand.vmem [shape: bf16[800,256], index: 0, kind: input, shape index: {}]
  %s1 = inlined_call_operand.vmem [shape: bf16[256,128], index: 1, kind: input, shape index: {}]
  %s2 = inlined_call_operand.vmem [shape: f32[1,128], index: 2, kind: input, shape index: {}]
  %s3 = inlined_call_operand.vmem [shape: bf16[800,128], index: 3, kind: output, shape index: {}]
  %s4 = sld [smem:[#allocation0]]
  $region53: #{dqn_forward.5} parent=0
    _
  %s6 = ssub.s32 1, %s4
  %s7 = scalar_select 0, %s6, %s4
  loop: start=0, step=1, limit=7
  $region2: #{dqn_forward.5} parent=0 // loop_pre_header
    _
  $region3: #{dqn_forward.5} parent=0 // loop_header
    %s9 = sphi 0, %s13
    %p10 = scmp.ge.s32.totalorder %s9, 7
    %s16 = sphi 0, %s35
    %s17 = sphi 0, %s31
    %s18 = sphi 0, %s27
    %s19 = sphi 0, %s16
    %s20 = sphi 0, %s17
    %s21 = sphi 0, %s18
    %s22 = sphi 0, %s19
    %s23 = sphi 0, %s20
    %s24 = sphi 0, %s21
    %s40 = sphi 0, %s42
    %s43 = sphi 0, %s40
    %s44 = sphi 0, %s43
    %s60 = sphi 0, %s44
    %s68 = sphi 0, %s70
    %s71 = sphi 0, %s68
    %s72 = sphi 0, %s71
    %s88 = sphi 0, %s72
    %s94 = sphi 0, %s96
    %s97 = sphi 0, %s94
    %s98 = sphi 0, %s97
    %s114 = sphi 0, %s98
    %s122 = sphi 0, %s124
    %s125 = sphi 0, %s122
    %s126 = sphi 0, %s125
    %s142 = sphi 0, %s126
  $region4: #{dqn_forward.5} parent=0 // loop_header_branch
    %12 = sbr.rel (%p10) target = $region8
  $region5: #{dqn_forward.5} parent=0 // loop_body
    %s14 = ssub.s32 %s9, 1
    %s15 = ssub.s32 %s9, 2
    %s25 = sadd.s32 1, %s18
    %p26 = scmp.ge.s32.totalorder %s25, 1
    %s27 = scalar_select %p26, 0, %s25
    %s28 = sadd.s32 1, %s17
    %s29 = scalar_select %p26, %s28, %s17
    %p30 = scmp.ge.s32.totalorder %s29, 1
    %s31 = scalar_select %p30, 0, %s29
    %s32 = sadd.s32 1, %s16
    %s33 = scalar_select %p30, %s32, %s16
    %p34 = scmp.ge.s32.totalorder %s33, 5
    %s35 = scalar_select %p34, 0, %s33
    %s36 = ssub.s32 %s16, %s35
    %s37 = ssub.s32 %s18, %s27
    %s38 = sor.u32 %s36, %s37
    %p39 = scmp.eq.s32.totalorder %s38, 0
    %s41 = sadd.s32 %s40, 1
    %s42 = scalar_select %p39, %s40, %s41
    %p45 = pneg %p39
    %p46 = scmp.eq.s32.totalorder %s9, 4
    %p47 = por %p45, %p46
    %p48 = scmp.ne.s32.totalorder %s40, %s43
    %p49 = scmp.eq.s32.totalorder %s9, 0
    %p50 = por %p48, %p49
    %p51 = scmp.ne.s32.totalorder %s40, %s43
    %p52 = scmp.eq.s32.totalorder %s14, 4
    %p53 = por %p51, %p52
    %p54 = scmp.ne.s32.totalorder %s43, %s44
    %p55 = scmp.eq.s32.totalorder %s14, 0
    %p56 = por %p54, %p55
    %p57 = scmp.ne.s32.totalorder %s43, %s44
    %p58 = scmp.eq.s32.totalorder %s15, 4
    %p59 = por %p57, %p58
    %p61 = scmp.ne.s32.totalorder %s44, %s60
    %p62 = scmp.eq.s32.totalorder %s15, 0
    %p63 = por %p61, %p62
    %s64 = ssub.s32 %s18, %s27
    %s65 = ssub.s32 %s17, %s31
    %s66 = sor.u32 %s64, %s65
    %p67 = scmp.eq.s32.totalorder %s66, 0
    %s69 = sadd.s32 %s68, 1
    %s70 = scalar_select %p67, %s68, %s69
    %p73 = pneg %p67
    %p74 = scmp.eq.s32.totalorder %s9, 4
    %p75 = por %p73, %p74
    %p76 = scmp.ne.s32.totalorder %s68, %s71
    %p77 = scmp.eq.s32.totalorder %s9, 0
    %p78 = por %p76, %p77
    %p79 = scmp.ne.s32.totalorder %s68, %s71
    %p80 = scmp.eq.s32.totalorder %s14, 4
    %p81 = por %p79, %p80
    %p82 = scmp.ne.s32.totalorder %s71, %s72
    %p83 = scmp.eq.s32.totalorder %s14, 0
    %p84 = por %p82, %p83
    %p85 = scmp.ne.s32.totalorder %s71, %s72
    %p86 = scmp.eq.s32.totalorder %s15, 4
    %p87 = por %p85, %p86
    %p89 = scmp.ne.s32.totalorder %s72, %s88
    %p90 = scmp.eq.s32.totalorder %s15, 0
    %p91 = por %p89, %p90
    %s92 = ssub.s32 %s17, %s31
    %p93 = scmp.eq.s32.totalorder %s92, 0
    %s95 = sadd.s32 %s94, 1
    %s96 = scalar_select %p93, %s94, %s95
    %p99 = pneg %p93
    %p100 = scmp.eq.s32.totalorder %s9, 4
    %p101 = por %p99, %p100
    %p102 = scmp.ne.s32.totalorder %s94, %s97
    %p103 = scmp.eq.s32.totalorder %s9, 0
    %p104 = por %p102, %p103
    %p105 = scmp.ne.s32.totalorder %s94, %s97
    %p106 = scmp.eq.s32.totalorder %s14, 4
    %p107 = por %p105, %p106
    %p108 = scmp.ne.s32.totalorder %s97, %s98
    %p109 = scmp.eq.s32.totalorder %s14, 0
    %p110 = por %p108, %p109
    %p111 = scmp.ne.s32.totalorder %s97, %s98
    %p112 = scmp.eq.s32.totalorder %s15, 4
    %p113 = por %p111, %p112
    %p115 = scmp.ne.s32.totalorder %s98, %s114
    %p116 = scmp.eq.s32.totalorder %s15, 0
    %p117 = por %p115, %p116
    %s118 = ssub.s32 %s16, %s35
    %s119 = ssub.s32 %s17, %s31
    %s120 = sor.u32 %s118, %s119
    %p121 = scmp.eq.s32.totalorder %s120, 0
    %s123 = sadd.s32 %s122, 1
    %s124 = scalar_select %p121, %s122, %s123
    %p127 = pneg %p121
    %p128 = scmp.eq.s32.totalorder %s9, 4
    %p129 = por %p127, %p128
    %p130 = scmp.ne.s32.totalorder %s122, %s125
    %p131 = scmp.eq.s32.totalorder %s9, 0
    %p132 = por %p130, %p131
    %p133 = scmp.ne.s32.totalorder %s122, %s125
    %p134 = scmp.eq.s32.totalorder %s14, 4
    %p135 = por %p133, %p134
    %p136 = scmp.ne.s32.totalorder %s125, %s126
    %p137 = scmp.eq.s32.totalorder %s14, 0
    %p138 = por %p136, %p137
    %p139 = scmp.ne.s32.totalorder %s125, %s126
    %p140 = scmp.eq.s32.totalorder %s15, 4
    %p141 = por %p139, %p140
    %p143 = scmp.ne.s32.totalorder %s126, %s142
    %p144 = scmp.eq.s32.totalorder %s15, 0
    %p145 = por %p143, %p144
    %p146 = scmp.le.s32.totalorder 1, %s9
    %p147 = scmp.lt.s32.totalorder %s9, 6
    %p148 = pnand %p146, %p147
    %p149 = pneg %p148
    // Predicated region
    $region9: #{dqn_forward.5} parent=5 // pred_check
      _
    $region10: #{dqn_forward.5} parent=5 // pred_check_branch
      %151 = sbr.rel (%p148) target = $region12
    $region11: #{dqn_forward.5} parent=5 // pred_region
      %s152 = ssub.s32 %s9, 1
      // Predicated region
      $region13: #{dqn_forward.5} parent=11 // pred_check
        %p153 = pneg %p84
      $region14: #{dqn_forward.5} parent=11 // pred_check_branch
        %155 = sbr.rel (%p153) target = $region16
      $region15: #{dqn_forward.5} parent=11 // pred_region
        %s156 = smul.u32 32, %s21
        %p157 = scmp.lt.s32.totalorder %s156, 31
        %s158 = scalar_select %p157, %s156, 31
        %p159 = scmp.lt.s32.totalorder %s20, 0
        %s160 = scalar_select %p159, %s20, 0
        %s161 = sadd.s32 %s160, %s158
        %s162 = smul.addr %s161, 4
        %s163 = scalar_lea.vmem %s1, %s162
        %s164 = smul.u32 32, %s21
      $region16: #{dqn_forward.5} parent=11 // pred_fallthru
        _
      // Predicated region
      $region17: #{dqn_forward.5} parent=11 // pred_check
        %p165 = pneg %p110
      $region18: #{dqn_forward.5} parent=11 // pred_check_branch
        %167 = sbr.rel (%p165) target = $region20
      $region19: #{dqn_forward.5} parent=11 // pred_region
        %p168 = scmp.lt.s32.totalorder %s20, 0
        %s169 = scalar_select %p168, %s20, 0
        %s170 = scalar_lea.vmem %s2, %s169
      $region20: #{dqn_forward.5} parent=11 // pred_fallthru
        _
    $region12: #{dqn_forward.5} parent=5 // pred_fallthru
      _
    %p171 = scmp.lt.s32.totalorder %s9, 5
    // Predicated region
    $region21: #{dqn_forward.5} parent=5 // pred_check
      %p172 = pneg %p171
    $region22: #{dqn_forward.5} parent=5 // pred_check_branch
      %174 = sbr.rel (%p172) target = $region24
    $region23: #{dqn_forward.5} parent=5 // pred_region
      // Predicated region
      $region25: #{dqn_forward.5} parent=23 // pred_check
        %p175 = pneg %p50
      $region26: #{dqn_forward.5} parent=23 // pred_check_branch
        %177 = sbr.rel (%p175) target = $region28
      $region27: #{dqn_forward.5} parent=23 // pred_region
        %s178 = smul.u32 20, %s16
        %s179 = smul.u32 2, %s18
        %p180 = scmp.lt.s32.totalorder %s178, 99
        %s181 = scalar_select %p180, %s178, 99
        %p182 = scmp.lt.s32.totalorder %s179, 1
        %s183 = scalar_select %p182, %s179, 1
        %s184 = smul.addr %s181, 2
        %s185 = sadd.s32 %s183, %s184
        %s186 = smul.addr %s185, 4
        %s187 = scalar_lea.vmem %s0, %s186
        %s188 = smul.u32 20, %s16
        %s189 = smul.u32 2, %s18
      $region28: #{dqn_forward.5} parent=23 // pred_fallthru
        _
    $region24: #{dqn_forward.5} parent=5 // pred_fallthru
      _
    %p190 = scmp.le.s32.totalorder 1, %s9
    %p191 = scmp.lt.s32.totalorder %s9, 6
    %p192 = pnand %p190, %p191
    %p193 = pneg %p192
    // Predicated region
    $region29: #{dqn_forward.5} parent=5 // pred_check
      _
    $region30: #{dqn_forward.5} parent=5 // pred_check_branch
      %195 = sbr.rel (%p192) target = $region32
    $region31: #{dqn_forward.5} parent=5 // pred_region
      %s196 = ssub.s32 %s9, 1
      %s197 = smul.u32 20, %s19
      %s198 = smul.u32 2, %s21
      %p199 = scmp.lt.s32.totalorder %s197, 99
      %s200 = scalar_select %p199, %s197, 99
      %p201 = scmp.lt.s32.totalorder %s198, 1
      %s202 = scalar_select %p201, %s198, 1
      %s203 = smul.addr %s200, 2
      %s204 = sadd.s32 %s202, %s203
      %s205 = smul.addr %s204, 4
      %s206 = scalar_lea.vmem %s0, %s205
      %p207 = pneg %p56
      %p208 = pneg %p53
      %s209 = smul.u32 32, %s21
      %p210 = scmp.lt.s32.totalorder %s209, 31
      %s211 = scalar_select %p210, %s209, 31
      %p212 = scmp.lt.s32.totalorder %s20, 0
      %s213 = scalar_select %p212, %s20, 0
      %s214 = sadd.s32 %s213, %s211
      %s215 = smul.addr %s214, 4
      %s216 = scalar_lea.vmem %s1, %s215
      %p217 = pneg %p84
      %p218 = pneg %p81
      %p219 = scmp.lt.s32.totalorder %s20, 0
      %s220 = scalar_select %p219, %s20, 0
      %s221 = scalar_lea.vmem %s2, %s220
      %p222 = pneg %p110
      %p223 = pneg %p107
      %p224 = pneg %p138
      %p225 = pneg %p135
      %s226 = smul.u32 20, %s19
      %p227 = scmp.lt.s32.totalorder %s226, 99
      %s228 = scalar_select %p227, %s226, 99
      %p229 = scmp.lt.s32.totalorder %s20, 0
      %s230 = scalar_select %p229, %s20, 0
      %s231 = sadd.s32 %s230, %s228
      %s232 = smul.addr %s231, 4
      %s233 = scalar_lea.vmem %s3, %s232
      %s234 = smul.u32 20, %s19
      %s235 = smul.u32 2, %s21
      %p236 = scmp.lt.s32.totalorder %s234, 99
      %s237 = scalar_select %p236, %s234, 99
      %p238 = scmp.lt.s32.totalorder %s235, 1
      %s239 = scalar_select %p238, %s235, 1
      %s240 = smul.addr %s237, 2
      %s241 = sadd.s32 %s239, %s240
      %s242 = smul.addr %s241, 4
      %s243 = scalar_lea.vmem %s0, %s242
      %s244 = smul.u32 20, %s19
      %s245 = smul.u32 2, %s21
      %s246 = smul.u32 32, %s21
      %p247 = scmp.lt.s32.totalorder %s246, 31
      %s248 = scalar_select %p247, %s246, 31
      %p249 = scmp.lt.s32.totalorder %s20, 0
      %s250 = scalar_select %p249, %s20, 0
      %s251 = sadd.s32 %s250, %s248
      %s252 = smul.addr %s251, 4
      %s253 = scalar_lea.vmem %s1, %s252
      %s254 = smul.u32 32, %s21
      %p255 = scmp.lt.s32.totalorder %s20, 0
      %s256 = scalar_select %p255, %s20, 0
      %s257 = scalar_lea.vmem %s2, %s256
      %s258 = smul.u32 20, %s19
      %p259 = scmp.lt.s32.totalorder %s258, 99
      %s260 = scalar_select %p259, %s258, 99
      %p261 = scmp.lt.s32.totalorder %s20, 0
      %s262 = scalar_select %p261, %s20, 0
      %s263 = sadd.s32 %s262, %s260
      %s264 = smul.addr %s263, 4
      %s265 = scalar_lea.vmem %s3, %s264
      %s266 = smul.u32 20, %s19
      %p267 = scmp.eq.s32.totalorder %s21, 0
      // Predicated region
      $region33: #{dqn_forward.5} parent=31 // pred_check
        %p268 = pneg %p267
      $region34: #{dqn_forward.5} parent=31 // pred_check_branch
        %270 = sbr.rel (%p268) target = $region36
      $region35: #{dqn_forward.5} parent=31 // pred_region
        %271 = vst [vmem:[#allocation2] sm:$0xff] 0.0
        %272 = vst [vmem:[#allocation2 + $0x8] sm:$0xff] 0.0
        %273 = vst [vmem:[#allocation2 + $0x10] sm:$0xff] 0.0
        %274 = vst [vmem:[#allocation2 + $0x18] sm:$0xff] 0.0
        %275 = vst [vmem:[#allocation2 + $0x20] sm:$0xff] 0.0
        %276 = vst [vmem:[#allocation2 + $0x28] sm:$0xff] 0.0
        %277 = vst [vmem:[#allocation2 + $0x30] sm:$0xff] 0.0
        %278 = vst [vmem:[#allocation2 + $0x38] sm:$0xff] 0.0
        %279 = vst [vmem:[#allocation2 + $0x40] sm:$0xff] 0.0
        %280 = vst [vmem:[#allocation2 + $0x48] sm:$0xff] 0.0
        %281 = vst [vmem:[#allocation2 + $0x50] sm:$0xff] 0.0
        %282 = vst [vmem:[#allocation2 + $0x58] sm:$0xff] 0.0
        %283 = vst [vmem:[#allocation2 + $0x60] sm:$0xff] 0.0
        %284 = vst [vmem:[#allocation2 + $0x68] sm:$0xff] 0.0
        %285 = vst [vmem:[#allocation2 + $0x70] sm:$0xff] 0.0
        %286 = vst [vmem:[#allocation2 + $0x78] sm:$0xff] 0.0
        %287 = vst [vmem:[#allocation2 + $0x80] sm:$0xff] 0.0
        %288 = vst [vmem:[#allocation2 + $0x88] sm:$0xff] 0.0
        %289 = vst [vmem:[#allocation2 + $0x90] sm:$0xff] 0.0
        %290 = vst [vmem:[#allocation2 + $0x98] sm:$0xff] 0.0
      $region36: #{dqn_forward.5} parent=31 // pred_fallthru
        _
      %v291 = vld [vmem:[#allocation2] sm:$0xff]
      %v292 = vld [vmem:[#allocation2 + $0x8] sm:$0xff]
      %v293 = vld [vmem:[#allocation2 + $0x10] sm:$0xff]
      %v294 = vld [vmem:[#allocation2 + $0x18] sm:$0xff]
      %v295 = vld [vmem:[#allocation2 + $0x20] sm:$0xff]
      %v296 = vld [vmem:[#allocation2 + $0x28] sm:$0xff]
      %v297 = vld [vmem:[#allocation2 + $0x30] sm:$0xff]
      %v298 = vld [vmem:[#allocation2 + $0x38] sm:$0xff]
      %v299 = vld [vmem:[#allocation2 + $0x40] sm:$0xff]
      %v300 = vld [vmem:[#allocation2 + $0x48] sm:$0xff]
      %v301 = vld [vmem:[#allocation2 + $0x50] sm:$0xff]
      %v302 = vld [vmem:[#allocation2 + $0x58] sm:$0xff]
      %v303 = vld [vmem:[#allocation2 + $0x60] sm:$0xff]
      %v304 = vld [vmem:[#allocation2 + $0x68] sm:$0xff]
      %v305 = vld [vmem:[#allocation2 + $0x70] sm:$0xff]
      %v306 = vld [vmem:[#allocation2 + $0x78] sm:$0xff]
      %v307 = vld [vmem:[#allocation2 + $0x80] sm:$0xff]
      %v308 = vld [vmem:[#allocation2 + $0x88] sm:$0xff]
      %v309 = vld [vmem:[#allocation2 + $0x90] sm:$0xff]
      %v310 = vld [vmem:[#allocation2 + $0x98] sm:$0xff]
      %v311 = vld [vmem:[%s243] sm:$0xff]
      %v312 = vld [vmem:[%s243 + $0x8] sm:$0xff]
      %v313 = vld [vmem:[%s243 + $0x10] sm:$0xff]
      %v314 = vld [vmem:[%s243 + $0x18] sm:$0xff]
      %v315 = vld [vmem:[%s243 + $0x20] sm:$0xff]
      %v316 = vld [vmem:[%s243 + $0x28] sm:$0xff]
      %v317 = vld [vmem:[%s243 + $0x30] sm:$0xff]
      %v318 = vld [vmem:[%s243 + $0x38] sm:$0xff]
      %v319 = vld [vmem:[%s243 + $0x40] sm:$0xff]
      %v320 = vld [vmem:[%s243 + $0x48] sm:$0xff]
      %v321 = vld [vmem:[%s243 + $0x50] sm:$0xff]
      %v322 = vld [vmem:[%s243 + $0x58] sm:$0xff]
      %v323 = vld [vmem:[%s243 + $0x60] sm:$0xff]
      %v324 = vld [vmem:[%s243 + $0x68] sm:$0xff]
      %v325 = vld [vmem:[%s243 + $0x70] sm:$0xff]
      %v326 = vld [vmem:[%s243 + $0x78] sm:$0xff]
      %v327 = vld [vmem:[%s243 + $0x80] sm:$0xff]
      %v328 = vld [vmem:[%s243 + $0x88] sm:$0xff]
      %v329 = vld [vmem:[%s243 + $0x90] sm:$0xff]
      %v330 = vld [vmem:[%s243 + $0x98] sm:$0xff]
      %v331 = vld [vmem:[%s253] sm:$0xf]
      %v332 = vld [vmem:[%s253 + $0x4] sm:$0xf]
      %v333 = vld [vmem:[%s253 + $0x8] sm:$0xf]
      %v334 = vld [vmem:[%s253 + $0xc] sm:$0xf]
      %v335 = vld [vmem:[%s253 + $0x10] sm:$0xf]
      %v336 = vld [vmem:[%s253 + $0x14] sm:$0xf]
      %v337 = vld [vmem:[%s253 + $0x18] sm:$0xf]
      %v338 = vld [vmem:[%s253 + $0x1c] sm:$0xf]
      %v339 = vld [vmem:[%s253 + $0x20] sm:$0xf]
      %v340 = vld [vmem:[%s253 + $0x24] sm:$0xf]
      %v341 = vld [vmem:[%s253 + $0x28] sm:$0xf]
      %v342 = vld [vmem:[%s253 + $0x2c] sm:$0xf]
      %v343 = vld [vmem:[%s253 + $0x30] sm:$0xf]
      %v344 = vld [vmem:[%s253 + $0x34] sm:$0xf]
      %v345 = vld [vmem:[%s253 + $0x38] sm:$0xf]
      %v346 = vld [vmem:[%s253 + $0x3c] sm:$0xf]
      %v347 = vld [vmem:[%s253 + $0x40] sm:$0xf]
      %v348 = vld [vmem:[%s253 + $0x44] sm:$0xf]
      %v349 = vld [vmem:[%s253 + $0x48] sm:$0xf]
      %v350 = vld [vmem:[%s253 + $0x4c] sm:$0xf]
      %v351 = vld [vmem:[%s253 + $0x50] sm:$0xf]
      %v352 = vld [vmem:[%s253 + $0x54] sm:$0xf]
      %v353 = vld [vmem:[%s253 + $0x58] sm:$0xf]
      %v354 = vld [vmem:[%s253 + $0x5c] sm:$0xf]
      %v355 = vld [vmem:[%s253 + $0x60] sm:$0xf]
      %v356 = vld [vmem:[%s253 + $0x64] sm:$0xf]
      %v357 = vld [vmem:[%s253 + $0x68] sm:$0xf]
      %v358 = vld [vmem:[%s253 + $0x6c] sm:$0xf]
      %v359 = vld [vmem:[%s253 + $0x70] sm:$0xf]
      %v360 = vld [vmem:[%s253 + $0x74] sm:$0xf]
      %v361 = vld [vmem:[%s253 + $0x78] sm:$0xf]
      %v362 = vld [vmem:[%s253 + $0x7c] sm:$0xf]
      %v383 = vunpack.c.l.b16 %v311
      %v384 = vunpack.c.h.b16 %v311
      %v385 = vunpack.c.l.b16 %v312
      %v386 = vunpack.c.h.b16 %v312
      %v387 = vunpack.c.l.b16 %v313
      %v388 = vunpack.c.h.b16 %v313
      %v389 = vunpack.c.l.b16 %v314
      %v390 = vunpack.c.h.b16 %v314
      %v391 = vunpack.c.l.b16 %v315
      %v392 = vunpack.c.h.b16 %v315
      %v393 = vunpack.c.l.b16 %v316
      %v394 = vunpack.c.h.b16 %v316
      %v395 = vunpack.c.l.b16 %v317
      %v396 = vunpack.c.h.b16 %v317
      %v397 = vunpack.c.l.b16 %v318
      %v398 = vunpack.c.h.b16 %v318
      %v399 = vunpack.c.l.b16 %v319
      %v400 = vunpack.c.h.b16 %v319
      %v401 = vunpack.c.l.b16 %v320
      %v402 = vunpack.c.h.b16 %v320
      %v403 = vunpack.c.l.b16 %v321
      %v404 = vunpack.c.h.b16 %v321
      %v405 = vunpack.c.l.b16 %v322
      %v406 = vunpack.c.h.b16 %v322
      %v407 = vunpack.c.l.b16 %v323
      %v408 = vunpack.c.h.b16 %v323
      %v409 = vunpack.c.l.b16 %v324
      %v410 = vunpack.c.h.b16 %v324
      %v411 = vunpack.c.l.b16 %v325
      %v412 = vunpack.c.h.b16 %v325
      %v413 = vunpack.c.l.b16 %v326
      %v414 = vunpack.c.h.b16 %v326
      %v415 = vunpack.c.l.b16 %v327
      %v416 = vunpack.c.h.b16 %v327
      %v417 = vunpack.c.l.b16 %v328
      %v418 = vunpack.c.h.b16 %v328
      %v419 = vunpack.c.l.b16 %v329
      %v420 = vunpack.c.h.b16 %v329
      %v421 = vunpack.c.l.b16 %v330
      %v422 = vunpack.c.h.b16 %v330
      %v423 = vpack.c.b16 %v385, %v383
      %v424 = vpack.c.b16 %v386, %v384
      %v425 = vpack.c.b16 %v389, %v387
      %v426 = vpack.c.b16 %v390, %v388
      %v427 = vpack.c.b16 %v393, %v391
      %v428 = vpack.c.b16 %v394, %v392
      %v429 = vpack.c.b16 %v397, %v395
      %v430 = vpack.c.b16 %v398, %v396
      %v431 = vpack.c.b16 %v401, %v399
      %v432 = vpack.c.b16 %v402, %v400
      %v433 = vpack.c.b16 %v405, %v403
      %v434 = vpack.c.b16 %v406, %v404
      %v435 = vpack.c.b16 %v409, %v407
      %v436 = vpack.c.b16 %v410, %v408
      %v437 = vpack.c.b16 %v413, %v411
      %v438 = vpack.c.b16 %v414, %v412
      %v439 = vpack.c.b16 %v417, %v415
      %v440 = vpack.c.b16 %v418, %v416
      %v441 = vpack.c.b16 %v421, %v419
      %v442 = vpack.c.b16 %v422, %v420
      %v495 = vunpack.c.l.b16 %v331
      %v496 = vunpack.c.l.b16 %v332
      %v497 = vunpack.c.l.b16 %v333
      %v498 = vunpack.c.l.b16 %v334
      %v499 = vunpack.c.l.b16 %v335
      %v500 = vunpack.c.l.b16 %v336
      %v501 = vunpack.c.l.b16 %v337
      %v502 = vunpack.c.l.b16 %v338
      %v503 = vunpack.c.l.b16 %v339
      %v504 = vunpack.c.l.b16 %v340
      %v505 = vunpack.c.l.b16 %v341
      %v506 = vunpack.c.l.b16 %v342
      %v507 = vunpack.c.l.b16 %v343
      %v508 = vunpack.c.l.b16 %v344
      %v509 = vunpack.c.l.b16 %v345
      %v510 = vunpack.c.l.b16 %v346
      %v511 = vunpack.c.l.b16 %v347
      %v512 = vunpack.c.l.b16 %v348
      %v513 = vunpack.c.l.b16 %v349
      %v514 = vunpack.c.l.b16 %v350
      %v515 = vunpack.c.l.b16 %v351
      %v516 = vunpack.c.l.b16 %v352
      %v517 = vunpack.c.l.b16 %v353
      %v518 = vunpack.c.l.b16 %v354
      %v519 = vunpack.c.l.b16 %v355
      %v520 = vunpack.c.l.b16 %v356
      %v521 = vunpack.c.l.b16 %v357
      %v522 = vunpack.c.l.b16 %v358
      %v523 = vunpack.c.l.b16 %v359
      %v524 = vunpack.c.l.b16 %v360
      %v525 = vunpack.c.l.b16 %v361
      %v526 = vunpack.c.l.b16 %v362
      %v527 = vpack.c.b16 %v496, %v495
      %v528 = vpack.c.b16 %v498, %v497
      %v529 = vpack.c.b16 %v500, %v499
      %v530 = vpack.c.b16 %v502, %v501
      %v531 = vpack.c.b16 %v504, %v503
      %v532 = vpack.c.b16 %v506, %v505
      %v533 = vpack.c.b16 %v508, %v507
      %v534 = vpack.c.b16 %v510, %v509
      %v535 = vpack.c.b16 %v512, %v511
      %v536 = vpack.c.b16 %v514, %v513
      %v537 = vpack.c.b16 %v516, %v515
      %v538 = vpack.c.b16 %v518, %v517
      %v539 = vpack.c.b16 %v520, %v519
      %v540 = vpack.c.b16 %v522, %v521
      %v541 = vpack.c.b16 %v524, %v523
      %v542 = vpack.c.b16 %v526, %v525
      %559 = vmatpush.bf16.msra.mxu0 %v534
      %560 = vmatpush.bf16.msra.mxu0 %v533
      %561 = vmatpush.bf16.msra.mxu0 %v532
      %562 = vmatpush.bf16.msra.mxu0 %v531
      %563 = vmatpush.bf16.msra.mxu0 %v530
      %564 = vmatpush.bf16.msra.mxu0 %v529
      %565 = vmatpush.bf16.msra.mxu0 %v528
      %566 = vmatpush.bf16.msra.mxu0 %v527
      %567 = vmatmul.bf16.gmra.mxu0 %v423
      %v568 = vpop.f32.mrf.mxu0
      %v569 = vadd.f32 0.0, %v568
      %v570 = vpop.f32.mrf.mxu0
      %v571 = vadd.f32 0.0, %v570
      %572 = vmatmul.bf16.gmra.mxu0 %v425
      %v573 = vpop.f32.mrf.mxu0
      %v574 = vadd.f32 0.0, %v573
      %v575 = vpop.f32.mrf.mxu0
      %v576 = vadd.f32 0.0, %v575
      %577 = vmatmul.bf16.gmra.mxu0 %v427
      %v578 = vpop.f32.mrf.mxu0
      %v579 = vadd.f32 0.0, %v578
      %v580 = vpop.f32.mrf.mxu0
      %v581 = vadd.f32 0.0, %v580
      %582 = vmatmul.bf16.gmra.mxu0 %v429
      %v583 = vpop.f32.mrf.mxu0
      %v584 = vadd.f32 0.0, %v583
      %v585 = vpop.f32.mrf.mxu0
      %v586 = vadd.f32 0.0, %v585
      %587 = vmatmul.bf16.gmra.mxu0 %v431
      %v588 = vpop.f32.mrf.mxu0
      %v589 = vadd.f32 0.0, %v588
      %v590 = vpop.f32.mrf.mxu0
      %v591 = vadd.f32 0.0, %v590
      %592 = vmatmul.bf16.gmra.mxu0 %v433
      %v593 = vpop.f32.mrf.mxu0
      %v594 = vadd.f32 0.0, %v593
      %v595 = vpop.f32.mrf.mxu0
      %v596 = vadd.f32 0.0, %v595
      %597 = vmatmul.bf16.gmra.mxu0 %v435
      %v598 = vpop.f32.mrf.mxu0
      %v599 = vadd.f32 0.0, %v598
      %v600 = vpop.f32.mrf.mxu0
      %v601 = vadd.f32 0.0, %v600
      %602 = vmatmul.bf16.gmra.mxu0 %v437
      %v603 = vpop.f32.mrf.mxu0
      %v604 = vadd.f32 0.0, %v603
      %v605 = vpop.f32.mrf.mxu0
      %v606 = vadd.f32 0.0, %v605
      %607 = vmatmul.bf16.gmra.mxu0 %v439
      %v608 = vpop.f32.mrf.mxu0
      %v609 = vadd.f32 0.0, %v608
      %v610 = vpop.f32.mrf.mxu0
      %v611 = vadd.f32 0.0, %v610
      %612 = vmatmul.bf16.gmra.mxu0 %v441
      %v613 = vpop.f32.mrf.mxu0
      %v614 = vadd.f32 0.0, %v613
      %v615 = vpop.f32.mrf.mxu0
      %v616 = vadd.f32 0.0, %v615
      %617 = vdwg.mxu0
      %618 = vmatpush.bf16.msra.mxu0 %v542
      %619 = vmatpush.bf16.msra.mxu0 %v541
      %620 = vmatpush.bf16.msra.mxu0 %v540
      %621 = vmatpush.bf16.msra.mxu0 %v539
      %622 = vmatpush.bf16.msra.mxu0 %v538
      %623 = vmatpush.bf16.msra.mxu0 %v537
      %624 = vmatpush.bf16.msra.mxu0 %v536
      %625 = vmatpush.bf16.msra.mxu0 %v535
      %626 = vmatmul.bf16.gmra.mxu0 %v424
      %v627 = vpop.f32.mrf.mxu0
      %v628 = vadd.f32 %v569, %v627
      %v629 = vpop.f32.mrf.mxu0
      %v630 = vadd.f32 %v571, %v629
      %631 = vmatmul.bf16.gmra.mxu0 %v426
      %v632 = vpop.f32.mrf.mxu0
      %v633 = vadd.f32 %v574, %v632
      %v634 = vpop.f32.mrf.mxu0
      %v635 = vadd.f32 %v576, %v634
      %636 = vmatmul.bf16.gmra.mxu0 %v428
      %v637 = vpop.f32.mrf.mxu0
      %v638 = vadd.f32 %v579, %v637
      %v639 = vpop.f32.mrf.mxu0
      %v640 = vadd.f32 %v581, %v639
      %641 = vmatmul.bf16.gmra.mxu0 %v430
      %v642 = vpop.f32.mrf.mxu0
      %v643 = vadd.f32 %v584, %v642
      %v644 = vpop.f32.mrf.mxu0
      %v645 = vadd.f32 %v586, %v644
      %646 = vmatmul.bf16.gmra.mxu0 %v432
      %v647 = vpop.f32.mrf.mxu0
      %v648 = vadd.f32 %v589, %v647
      %v649 = vpop.f32.mrf.mxu0
      %v650 = vadd.f32 %v591, %v649
      %651 = vmatmul.bf16.gmra.mxu0 %v434
      %v652 = vpop.f32.mrf.mxu0
      %v653 = vadd.f32 %v594, %v652
      %v654 = vpop.f32.mrf.mxu0
      %v655 = vadd.f32 %v596, %v654
      %656 = vmatmul.bf16.gmra.mxu0 %v436
      %v657 = vpop.f32.mrf.mxu0
      %v658 = vadd.f32 %v599, %v657
      %v659 = vpop.f32.mrf.mxu0
      %v660 = vadd.f32 %v601, %v659
      %661 = vmatmul.bf16.gmra.mxu0 %v438
      %v662 = vpop.f32.mrf.mxu0
      %v663 = vadd.f32 %v604, %v662
      %v664 = vpop.f32.mrf.mxu0
      %v665 = vadd.f32 %v606, %v664
      %666 = vmatmul.bf16.gmra.mxu0 %v440
      %v667 = vpop.f32.mrf.mxu0
      %v668 = vadd.f32 %v609, %v667
      %v669 = vpop.f32.mrf.mxu0
      %v670 = vadd.f32 %v611, %v669
      %671 = vmatmul.bf16.gmra.mxu0 %v442
      %v672 = vpop.f32.mrf.mxu0
      %v673 = vadd.f32 %v614, %v672
      %v674 = vpop.f32.mrf.mxu0
      %v675 = vadd.f32 %v616, %v674
      %676 = vdwg.mxu0
      %v677 = vadd.f32 %v291, %v628
      %v678 = vadd.f32 %v292, %v630
      %v679 = vadd.f32 %v293, %v633
      %v680 = vadd.f32 %v294, %v635
      %v681 = vadd.f32 %v295, %v638
      %v682 = vadd.f32 %v296, %v640
      %v683 = vadd.f32 %v297, %v643
      %v684 = vadd.f32 %v298, %v645
      %v685 = vadd.f32 %v299, %v648
      %v686 = vadd.f32 %v300, %v650
      %v687 = vadd.f32 %v301, %v653
      %v688 = vadd.f32 %v302, %v655
      %v689 = vadd.f32 %v303, %v658
      %v690 = vadd.f32 %v304, %v660
      %v691 = vadd.f32 %v305, %v663
      %v692 = vadd.f32 %v306, %v665
      %v693 = vadd.f32 %v307, %v668
      %v694 = vadd.f32 %v308, %v670
      %v695 = vadd.f32 %v309, %v673
      %v696 = vadd.f32 %v310, %v675
      %697 = vst [vmem:[#allocation2] sm:$0xff] %v677
      %698 = vst [vmem:[#allocation2 + $0x8] sm:$0xff] %v678
      %699 = vst [vmem:[#allocation2 + $0x10] sm:$0xff] %v679
      %700 = vst [vmem:[#allocation2 + $0x18] sm:$0xff] %v680
      %701 = vst [vmem:[#allocation2 + $0x20] sm:$0xff] %v681
      %702 = vst [vmem:[#allocation2 + $0x28] sm:$0xff] %v682
      %703 = vst [vmem:[#allocation2 + $0x30] sm:$0xff] %v683
      %704 = vst [vmem:[#allocation2 + $0x38] sm:$0xff] %v684
      %705 = vst [vmem:[#allocation2 + $0x40] sm:$0xff] %v685
      %706 = vst [vmem:[#allocation2 + $0x48] sm:$0xff] %v686
      %707 = vst [vmem:[#allocation2 + $0x50] sm:$0xff] %v687
      %708 = vst [vmem:[#allocation2 + $0x58] sm:$0xff] %v688
      %709 = vst [vmem:[#allocation2 + $0x60] sm:$0xff] %v689
      %710 = vst [vmem:[#allocation2 + $0x68] sm:$0xff] %v690
      %711 = vst [vmem:[#allocation2 + $0x70] sm:$0xff] %v691
      %712 = vst [vmem:[#allocation2 + $0x78] sm:$0xff] %v692
      %713 = vst [vmem:[#allocation2 + $0x80] sm:$0xff] %v693
      %714 = vst [vmem:[#allocation2 + $0x88] sm:$0xff] %v694
      %715 = vst [vmem:[#allocation2 + $0x90] sm:$0xff] %v695
      %716 = vst [vmem:[#allocation2 + $0x98] sm:$0xff] %v696
      // Predicated region
      $region37: #{dqn_forward.5} parent=31 // pred_check
        %p717 = pneg %p267
      $region38: #{dqn_forward.5} parent=31 // pred_check_branch
        %719 = sbr.rel (%p717) target = $region40
      $region39: #{dqn_forward.5} parent=31 // pred_region
        %v720 = vld [vmem:[#allocation2] sm:$0xff]
        %v721 = vld [vmem:[#allocation2 + $0x8] sm:$0xff]
        %v722 = vld [vmem:[#allocation2 + $0x10] sm:$0xff]
        %v723 = vld [vmem:[#allocation2 + $0x18] sm:$0xff]
        %v724 = vld [vmem:[#allocation2 + $0x20] sm:$0xff]
        %v725 = vld [vmem:[#allocation2 + $0x28] sm:$0xff]
        %v726 = vld [vmem:[#allocation2 + $0x30] sm:$0xff]
        %v727 = vld [vmem:[#allocation2 + $0x38] sm:$0xff]
        %v728 = vld [vmem:[#allocation2 + $0x40] sm:$0xff]
        %v729 = vld [vmem:[#allocation2 + $0x48] sm:$0xff]
        %v730 = vld [vmem:[#allocation2 + $0x50] sm:$0xff]
        %v731 = vld [vmem:[#allocation2 + $0x58] sm:$0xff]
        %v732 = vld [vmem:[#allocation2 + $0x60] sm:$0xff]
        %v733 = vld [vmem:[#allocation2 + $0x68] sm:$0xff]
        %v734 = vld [vmem:[#allocation2 + $0x70] sm:$0xff]
        %v735 = vld [vmem:[#allocation2 + $0x78] sm:$0xff]
        %v736 = vld [vmem:[#allocation2 + $0x80] sm:$0xff]
        %v737 = vld [vmem:[#allocation2 + $0x88] sm:$0xff]
        %v738 = vld [vmem:[#allocation2 + $0x90] sm:$0xff]
        %v739 = vld [vmem:[#allocation2 + $0x98] sm:$0xff]
        %v740 = vld [vmem:[%s257] sm:$0x1]
        %v742 = vperm.slane %v740, 0
        %v744 = vadd.f32 %v720, %v742
        %v745 = vadd.f32 %v721, %v742
        %v746 = vadd.f32 %v722, %v742
        %v747 = vadd.f32 %v723, %v742
        %v748 = vadd.f32 %v724, %v742
        %v749 = vadd.f32 %v725, %v742
        %v750 = vadd.f32 %v726, %v742
        %v751 = vadd.f32 %v727, %v742
        %v752 = vadd.f32 %v728, %v742
        %v753 = vadd.f32 %v729, %v742
        %v754 = vadd.f32 %v730, %v742
        %v755 = vadd.f32 %v731, %v742
        %v756 = vadd.f32 %v732, %v742
        %v757 = vadd.f32 %v733, %v742
        %v758 = vadd.f32 %v734, %v742
        %v759 = vadd.f32 %v735, %v742
        %v760 = vadd.f32 %v736, %v742
        %v761 = vadd.f32 %v737, %v742
        %v762 = vadd.f32 %v738, %v742
        %v763 = vadd.f32 %v739, %v742
        %v764 = vmax.f32 %v744, 0.0
        %v765 = vmax.f32 %v745, 0.0
        %v766 = vmax.f32 %v746, 0.0
        %v767 = vmax.f32 %v747, 0.0
        %v768 = vmax.f32 %v748, 0.0
        %v769 = vmax.f32 %v749, 0.0
        %v770 = vmax.f32 %v750, 0.0
        %v771 = vmax.f32 %v751, 0.0
        %v772 = vmax.f32 %v752, 0.0
        %v773 = vmax.f32 %v753, 0.0
        %v774 = vmax.f32 %v754, 0.0
        %v775 = vmax.f32 %v755, 0.0
        %v776 = vmax.f32 %v756, 0.0
        %v777 = vmax.f32 %v757, 0.0
        %v778 = vmax.f32 %v758, 0.0
        %v779 = vmax.f32 %v759, 0.0
        %v780 = vmax.f32 %v760, 0.0
        %v781 = vmax.f32 %v761, 0.0
        %v782 = vmax.f32 %v762, 0.0
        %v783 = vmax.f32 %v763, 0.0
        %v784 = vpack.c.bf16 %v764, %v764
        %v785 = vpack.c.bf16 %v765, %v765
        %v786 = vpack.c.bf16 %v766, %v766
        %v787 = vpack.c.bf16 %v767, %v767
        %v788 = vpack.c.bf16 %v768, %v768
        %v789 = vpack.c.bf16 %v769, %v769
        %v790 = vpack.c.bf16 %v770, %v770
        %v791 = vpack.c.bf16 %v771, %v771
        %v792 = vpack.c.bf16 %v772, %v772
        %v793 = vpack.c.bf16 %v773, %v773
        %v794 = vpack.c.bf16 %v774, %v774
        %v795 = vpack.c.bf16 %v775, %v775
        %v796 = vpack.c.bf16 %v776, %v776
        %v797 = vpack.c.bf16 %v777, %v777
        %v798 = vpack.c.bf16 %v778, %v778
        %v799 = vpack.c.bf16 %v779, %v779
        %v800 = vpack.c.bf16 %v780, %v780
        %v801 = vpack.c.bf16 %v781, %v781
        %v802 = vpack.c.bf16 %v782, %v782
        %v803 = vpack.c.bf16 %v783, %v783
        %804 = vst [vmem:[%s265] sm:$0xf] %v784
        %805 = vst [vmem:[%s265 + $0x4] sm:$0xf] %v785
        %806 = vst [vmem:[%s265 + $0x8] sm:$0xf] %v786
        %807 = vst [vmem:[%s265 + $0xc] sm:$0xf] %v787
        %808 = vst [vmem:[%s265 + $0x10] sm:$0xf] %v788
        %809 = vst [vmem:[%s265 + $0x14] sm:$0xf] %v789
        %810 = vst [vmem:[%s265 + $0x18] sm:$0xf] %v790
        %811 = vst [vmem:[%s265 + $0x1c] sm:$0xf] %v791
        %812 = vst [vmem:[%s265 + $0x20] sm:$0xf] %v792
        %813 = vst [vmem:[%s265 + $0x24] sm:$0xf] %v793
        %814 = vst [vmem:[%s265 + $0x28] sm:$0xf] %v794
        %815 = vst [vmem:[%s265 + $0x2c] sm:$0xf] %v795
        %816 = vst [vmem:[%s265 + $0x30] sm:$0xf] %v796
        %817 = vst [vmem:[%s265 + $0x34] sm:$0xf] %v797
        %818 = vst [vmem:[%s265 + $0x38] sm:$0xf] %v798
        %819 = vst [vmem:[%s265 + $0x3c] sm:$0xf] %v799
        %820 = vst [vmem:[%s265 + $0x40] sm:$0xf] %v800
        %821 = vst [vmem:[%s265 + $0x44] sm:$0xf] %v801
        %822 = vst [vmem:[%s265 + $0x48] sm:$0xf] %v802
        %823 = vst [vmem:[%s265 + $0x4c] sm:$0xf] %v803
      $region40: #{dqn_forward.5} parent=31 // pred_fallthru
        _
      %s824 = smul.u32 20, %s19
      %p825 = scmp.lt.s32.totalorder %s824, 99
      %s826 = scalar_select %p825, %s824, 99
      %p827 = scmp.lt.s32.totalorder %s20, 0
      %s828 = scalar_select %p827, %s20, 0
      %s829 = sadd.s32 %s828, %s826
      %s830 = smul.addr %s829, 4
      %s831 = scalar_lea.vmem %s3, %s830
      // Predicated region
      $region41: #{dqn_forward.5} parent=31 // pred_check
        %p832 = pneg %p135
      $region42: #{dqn_forward.5} parent=31 // pred_check_branch
        %834 = sbr.rel (%p832) target = $region44
      $region43: #{dqn_forward.5} parent=31 // pred_region
        %s835 = smul.u32 20, %s19
      $region44: #{dqn_forward.5} parent=31 // pred_fallthru
        _
    $region32: #{dqn_forward.5} parent=5 // pred_fallthru
      _
    %p836 = scmp.le.s32.totalorder 2, %s9
    // Predicated region
    $region45: #{dqn_forward.5} parent=5 // pred_check
      %p837 = pneg %p836
    $region46: #{dqn_forward.5} parent=5 // pred_check_branch
      %839 = sbr.rel (%p837) target = $region48
    $region47: #{dqn_forward.5} parent=5 // pred_region
      %s840 = ssub.s32 %s9, 2
      // Predicated region
      $region49: #{dqn_forward.5} parent=47 // pred_check
        %p841 = pneg %p141
      $region50: #{dqn_forward.5} parent=47 // pred_check_branch
        %843 = sbr.rel (%p841) target = $region52
      $region51: #{dqn_forward.5} parent=47 // pred_region
        %s844 = smul.u32 20, %s22
        %p845 = scmp.lt.s32.totalorder %s844, 99
        %s846 = scalar_select %p845, %s844, 99
        %p847 = scmp.lt.s32.totalorder %s23, 0
        %s848 = scalar_select %p847, %s23, 0
        %s849 = sadd.s32 %s848, %s846
        %s850 = smul.addr %s849, 4
        %s851 = scalar_lea.vmem %s3, %s850
      $region52: #{dqn_forward.5} parent=47 // pred_fallthru
        _
    $region48: #{dqn_forward.5} parent=5 // pred_fallthru
      _
  $region6: #{dqn_forward.5} parent=0 // loop_footer
    %s13 = sadd.s32 1, %s9
  $region7: #{dqn_forward.5} parent=0 // loop_footer_branch
    %8 = sbr.rel target = $region3
  $region8: #{dqn_forward.5} parent=0 // loop_exit
    _

// kernel: dqn_forward.6
$region0: #{dqn_forward.6}
  #allocation0 [shape = 'u32[]', space=smem, size = 0x4, offset = 0x4, fixed_abs, tag = 'smem constant byte address 0x4 - core index']
  #allocation1 [shape = 'u32[72,128]{1,0:T(1,128)}', space=vmem, size = 0x9000, scoped, tag = 'internal scratch']
  #allocation2 [shape = 'f32[176,128]{1,0:T(8,128)}', space=vmem, size = 0x16000, scoped, tag = 'scratch operand']
  %s0 = inlined_call_operand.vmem [shape: bf16[176,512], index: 0, kind: input, shape index: {}]
  %s1 = inlined_call_operand.vmem [shape: bf16[512,128], index: 1, kind: input, shape index: {}]
  %s2 = inlined_call_operand.vmem [shape: f32[1,128], index: 2, kind: input, shape index: {}]
  %s3 = inlined_call_operand.vmem [shape: bf16[176,128], index: 3, kind: output, shape index: {}]
  %s4 = sld [smem:[#allocation0]]
  $region30: #{dqn_forward.6} parent=0
    _
  %s6 = ssub.s32 1, %s4
  %s7 = scalar_select 0, %s6, %s4
  // Predicated region
  $region2: #{dqn_forward.6} parent=0 // pred_check
    _
  $region3: #{dqn_forward.6} parent=0 // pred_check_branch
    %9 = sbr.rel (0) target = $region5
  $region4: #{dqn_forward.6} parent=0 // pred_region
    _
  $region5: #{dqn_forward.6} parent=0 // pred_fallthru
    _
  // Predicated region
  $region6: #{dqn_forward.6} parent=0 // pred_check
    _
  $region7: #{dqn_forward.6} parent=0 // pred_check_branch
    %11 = sbr.rel (0) target = $region9
  $region8: #{dqn_forward.6} parent=0 // pred_region
    _
  $region9: #{dqn_forward.6} parent=0 // pred_fallthru
    _
  // Predicated region
  $region10: #{dqn_forward.6} parent=0 // pred_check
    _
  $region11: #{dqn_forward.6} parent=0 // pred_check_branch
    %13 = sbr.rel (0) target = $region13
  $region12: #{dqn_forward.6} parent=0 // pred_region
    _
  $region13: #{dqn_forward.6} parent=0 // pred_fallthru
    _
  %p14 = scmp.eq.s32.totalorder 0, 0
  // Predicated region
  $region14: #{dqn_forward.6} parent=0 // pred_check
    %p15 = pneg %p14
  $region15: #{dqn_forward.6} parent=0 // pred_check_branch
    %17 = sbr.rel (%p15) target = $region17
  $region16: #{dqn_forward.6} parent=0 // pred_region
    %18 = vst [vmem:[#allocation2] sm:$0xff] 0.0
    %19 = vst [vmem:[#allocation2 + $0x8] sm:$0xff] 0.0
    %20 = vst [vmem:[#allocation2 + $0x10] sm:$0xff] 0.0
    %21 = vst [vmem:[#allocation2 + $0x18] sm:$0xff] 0.0
    %22 = vst [vmem:[#allocation2 + $0x20] sm:$0xff] 0.0
    %23 = vst [vmem:[#allocation2 + $0x28] sm:$0xff] 0.0
    %24 = vst [vmem:[#allocation2 + $0x30] sm:$0xff] 0.0
    %25 = vst [vmem:[#allocation2 + $0x38] sm:$0xff] 0.0
    %26 = vst [vmem:[#allocation2 + $0x40] sm:$0xff] 0.0
    %27 = vst [vmem:[#allocation2 + $0x48] sm:$0xff] 0.0
    %28 = vst [vmem:[#allocation2 + $0x50] sm:$0xff] 0.0
    %29 = vst [vmem:[#allocation2 + $0x58] sm:$0xff] 0.0
    %30 = vst [vmem:[#allocation2 + $0x60] sm:$0xff] 0.0
    %31 = vst [vmem:[#allocation2 + $0x68] sm:$0xff] 0.0
    %32 = vst [vmem:[#allocation2 + $0x70] sm:$0xff] 0.0
    %33 = vst [vmem:[#allocation2 + $0x78] sm:$0xff] 0.0
    %34 = vst [vmem:[#allocation2 + $0x80] sm:$0xff] 0.0
    %35 = vst [vmem:[#allocation2 + $0x88] sm:$0xff] 0.0
    %36 = vst [vmem:[#allocation2 + $0x90] sm:$0xff] 0.0
    %37 = vst [vmem:[#allocation2 + $0x98] sm:$0xff] 0.0
    %38 = vst [vmem:[#allocation2 + $0xa0] sm:$0xff] 0.0
    %39 = vst [vmem:[#allocation2 + $0xa8] sm:$0xff] 0.0
  $region17: #{dqn_forward.6} parent=0 // pred_fallthru
    _
  %v40 = vld [vmem:[#allocation2] sm:$0xff]
  %v41 = vld [vmem:[#allocation2 + $0x8] sm:$0xff]
  %v42 = vld [vmem:[#allocation2 + $0x10] sm:$0xff]
  %v43 = vld [vmem:[#allocation2 + $0x18] sm:$0xff]
  %v44 = vld [vmem:[#allocation2 + $0x20] sm:$0xff]
  %v45 = vld [vmem:[#allocation2 + $0x28] sm:$0xff]
  %v46 = vld [vmem:[#allocation2 + $0x30] sm:$0xff]
  %v47 = vld [vmem:[#allocation2 + $0x38] sm:$0xff]
  %v48 = vld [vmem:[#allocation2 + $0x40] sm:$0xff]
  %v49 = vld [vmem:[#allocation2 + $0x48] sm:$0xff]
  %v50 = vld [vmem:[#allocation2 + $0x50] sm:$0xff]
  %v51 = vld [vmem:[#allocation2 + $0x58] sm:$0xff]
  %v52 = vld [vmem:[#allocation2 + $0x60] sm:$0xff]
  %v53 = vld [vmem:[#allocation2 + $0x68] sm:$0xff]
  %v54 = vld [vmem:[#allocation2 + $0x70] sm:$0xff]
  %v55 = vld [vmem:[#allocation2 + $0x78] sm:$0xff]
  %v56 = vld [vmem:[#allocation2 + $0x80] sm:$0xff]
  %v57 = vld [vmem:[#allocation2 + $0x88] sm:$0xff]
  %v58 = vld [vmem:[#allocation2 + $0x90] sm:$0xff]
  %v59 = vld [vmem:[#allocation2 + $0x98] sm:$0xff]
  %v60 = vld [vmem:[#allocation2 + $0xa0] sm:$0xff]
  %v61 = vld [vmem:[#allocation2 + $0xa8] sm:$0xff]
  %v62 = vld [vmem:[%s0] sm:$0xff]
  %v63 = vld [vmem:[%s0 + $0x8] sm:$0xff]
  %v64 = vld [vmem:[%s0 + $0x10] sm:$0xff]
  %v65 = vld [vmem:[%s0 + $0x18] sm:$0xff]
  %v66 = vld [vmem:[%s0 + $0x20] sm:$0xff]
  %v67 = vld [vmem:[%s0 + $0x28] sm:$0xff]
  %v68 = vld [vmem:[%s0 + $0x30] sm:$0xff]
  %v69 = vld [vmem:[%s0 + $0x38] sm:$0xff]
  %v70 = vld [vmem:[%s0 + $0x40] sm:$0xff]
  %v71 = vld [vmem:[%s0 + $0x48] sm:$0xff]
  %v72 = vld [vmem:[%s0 + $0x50] sm:$0xff]
  %v73 = vld [vmem:[%s0 + $0x58] sm:$0xff]
  %v74 = vld [vmem:[%s0 + $0x60] sm:$0xff]
  %v75 = vld [vmem:[%s0 + $0x68] sm:$0xff]
  %v76 = vld [vmem:[%s0 + $0x70] sm:$0xff]
  %v77 = vld [vmem:[%s0 + $0x78] sm:$0xff]
  %v78 = vld [vmem:[%s0 + $0x80] sm:$0xff]
  %v79 = vld [vmem:[%s0 + $0x88] sm:$0xff]
  %v80 = vld [vmem:[%s0 + $0x90] sm:$0xff]
  %v81 = vld [vmem:[%s0 + $0x98] sm:$0xff]
  %v82 = vld [vmem:[%s0 + $0xa0] sm:$0xff]
  %v83 = vld [vmem:[%s0 + $0xa8] sm:$0xff]
  %v84 = vld [vmem:[%s0 + $0xb0] sm:$0xff]
  %v85 = vld [vmem:[%s0 + $0xb8] sm:$0xff]
  %v86 = vld [vmem:[%s0 + $0xc0] sm:$0xff]
  %v87 = vld [vmem:[%s0 + $0xc8] sm:$0xff]
  %v88 = vld [vmem:[%s0 + $0xd0] sm:$0xff]
  %v89 = vld [vmem:[%s0 + $0xd8] sm:$0xff]
  %v90 = vld [vmem:[%s0 + $0xe0] sm:$0xff]
  %v91 = vld [vmem:[%s0 + $0xe8] sm:$0xff]
  %v92 = vld [vmem:[%s0 + $0xf0] sm:$0xff]
  %v93 = vld [vmem:[%s0 + $0xf8] sm:$0xff]
  %v94 = vld [vmem:[%s0 + $0x100] sm:$0xff]
  %v95 = vld [vmem:[%s0 + $0x108] sm:$0xff]
  %v96 = vld [vmem:[%s0 + $0x110] sm:$0xff]
  %v97 = vld [vmem:[%s0 + $0x118] sm:$0xff]
  %v98 = vld [vmem:[%s0 + $0x120] sm:$0xff]
  %v99 = vld [vmem:[%s0 + $0x128] sm:$0xff]
  %v100 = vld [vmem:[%s0 + $0x130] sm:$0xff]
  %v101 = vld [vmem:[%s0 + $0x138] sm:$0xff]
  %v102 = vld [vmem:[%s0 + $0x140] sm:$0xff]
  %v103 = vld [vmem:[%s0 + $0x148] sm:$0xff]
  %v104 = vld [vmem:[%s0 + $0x150] sm:$0xff]
  %v105 = vld [vmem:[%s0 + $0x158] sm:$0xff]
  %v106 = vld [vmem:[%s1] sm:$0xf]
  %v107 = vld [vmem:[%s1 + $0x4] sm:$0xf]
  %v108 = vld [vmem:[%s1 + $0x8] sm:$0xf]
  %v109 = vld [vmem:[%s1 + $0xc] sm:$0xf]
  %v110 = vld [vmem:[%s1 + $0x10] sm:$0xf]
  %v111 = vld [vmem:[%s1 + $0x14] sm:$0xf]
  %v112 = vld [vmem:[%s1 + $0x18] sm:$0xf]
  %v113 = vld [vmem:[%s1 + $0x1c] sm:$0xf]
  %v114 = vld [vmem:[%s1 + $0x20] sm:$0xf]
  %v115 = vld [vmem:[%s1 + $0x24] sm:$0xf]
  %v116 = vld [vmem:[%s1 + $0x28] sm:$0xf]
  %v117 = vld [vmem:[%s1 + $0x2c] sm:$0xf]
  %v118 = vld [vmem:[%s1 + $0x30] sm:$0xf]
  %v119 = vld [vmem:[%s1 + $0x34] sm:$0xf]
  %v120 = vld [vmem:[%s1 + $0x38] sm:$0xf]
  %v121 = vld [vmem:[%s1 + $0x3c] sm:$0xf]
  %v122 = vld [vmem:[%s1 + $0x40] sm:$0xf]
  %v123 = vld [vmem:[%s1 + $0x44] sm:$0xf]
  %v124 = vld [vmem:[%s1 + $0x48] sm:$0xf]
  %v125 = vld [vmem:[%s1 + $0x4c] sm:$0xf]
  %v126 = vld [vmem:[%s1 + $0x50] sm:$0xf]
  %v127 = vld [vmem:[%s1 + $0x54] sm:$0xf]
  %v128 = vld [vmem:[%s1 + $0x58] sm:$0xf]
  %v129 = vld [vmem:[%s1 + $0x5c] sm:$0xf]
  %v130 = vld [vmem:[%s1 + $0x60] sm:$0xf]
  %v131 = vld [vmem:[%s1 + $0x64] sm:$0xf]
  %v132 = vld [vmem:[%s1 + $0x68] sm:$0xf]
  %v133 = vld [vmem:[%s1 + $0x6c] sm:$0xf]
  %v134 = vld [vmem:[%s1 + $0x70] sm:$0xf]
  %v135 = vld [vmem:[%s1 + $0x74] sm:$0xf]
  %v136 = vld [vmem:[%s1 + $0x78] sm:$0xf]
  %v137 = vld [vmem:[%s1 + $0x7c] sm:$0xf]
  %v138 = vld [vmem:[%s1 + $0x80] sm:$0xf]
  %v139 = vld [vmem:[%s1 + $0x84] sm:$0xf]
  %v140 = vld [vmem:[%s1 + $0x88] sm:$0xf]
  %v141 = vld [vmem:[%s1 + $0x8c] sm:$0xf]
  %v142 = vld [vmem:[%s1 + $0x90] sm:$0xf]
  %v143 = vld [vmem:[%s1 + $0x94] sm:$0xf]
  %v144 = vld [vmem:[%s1 + $0x98] sm:$0xf]
  %v145 = vld [vmem:[%s1 + $0x9c] sm:$0xf]
  %v146 = vld [vmem:[%s1 + $0xa0] sm:$0xf]
  %v147 = vld [vmem:[%s1 + $0xa4] sm:$0xf]
  %v148 = vld [vmem:[%s1 + $0xa8] sm:$0xf]
  %v149 = vld [vmem:[%s1 + $0xac] sm:$0xf]
  %v150 = vld [vmem:[%s1 + $0xb0] sm:$0xf]
  %v151 = vld [vmem:[%s1 + $0xb4] sm:$0xf]
  %v152 = vld [vmem:[%s1 + $0xb8] sm:$0xf]
  %v153 = vld [vmem:[%s1 + $0xbc] sm:$0xf]
  %v154 = vld [vmem:[%s1 + $0xc0] sm:$0xf]
  %v155 = vld [vmem:[%s1 + $0xc4] sm:$0xf]
  %v156 = vld [vmem:[%s1 + $0xc8] sm:$0xf]
  %v157 = vld [vmem:[%s1 + $0xcc] sm:$0xf]
  %v158 = vld [vmem:[%s1 + $0xd0] sm:$0xf]
  %v159 = vld [vmem:[%s1 + $0xd4] sm:$0xf]
  %v160 = vld [vmem:[%s1 + $0xd8] sm:$0xf]
  %v161 = vld [vmem:[%s1 + $0xdc] sm:$0xf]
  %v162 = vld [vmem:[%s1 + $0xe0] sm:$0xf]
  %v163 = vld [vmem:[%s1 + $0xe4] sm:$0xf]
  %v164 = vld [vmem:[%s1 + $0xe8] sm:$0xf]
  %v165 = vld [vmem:[%s1 + $0xec] sm:$0xf]
  %v166 = vld [vmem:[%s1 + $0xf0] sm:$0xf]
  %v167 = vld [vmem:[%s1 + $0xf4] sm:$0xf]
  %v168 = vld [vmem:[%s1 + $0xf8] sm:$0xf]
  %v169 = vld [vmem:[%s1 + $0xfc] sm:$0xf]
  %v214 = vunpack.c.l.b16 %v62
  %v215 = vunpack.c.h.b16 %v62
  %v216 = vunpack.c.l.b16 %v63
  %v217 = vunpack.c.h.b16 %v63
  %v218 = vunpack.c.l.b16 %v64
  %v219 = vunpack.c.h.b16 %v64
  %v220 = vunpack.c.l.b16 %v65
  %v221 = vunpack.c.h.b16 %v65
  %v222 = vunpack.c.l.b16 %v66
  %v223 = vunpack.c.h.b16 %v66
  %v224 = vunpack.c.l.b16 %v67
  %v225 = vunpack.c.h.b16 %v67
  %v226 = vunpack.c.l.b16 %v68
  %v227 = vunpack.c.h.b16 %v68
  %v228 = vunpack.c.l.b16 %v69
  %v229 = vunpack.c.h.b16 %v69
  %v230 = vunpack.c.l.b16 %v70
  %v231 = vunpack.c.h.b16 %v70
  %v232 = vunpack.c.l.b16 %v71
  %v233 = vunpack.c.h.b16 %v71
  %v234 = vunpack.c.l.b16 %v72
  %v235 = vunpack.c.h.b16 %v72
  %v236 = vunpack.c.l.b16 %v73
  %v237 = vunpack.c.h.b16 %v73
  %v238 = vunpack.c.l.b16 %v74
  %v239 = vunpack.c.h.b16 %v74
  %v240 = vunpack.c.l.b16 %v75
  %v241 = vunpack.c.h.b16 %v75
  %v242 = vunpack.c.l.b16 %v76
  %v243 = vunpack.c.h.b16 %v76
  %v244 = vunpack.c.l.b16 %v77
  %v245 = vunpack.c.h.b16 %v77
  %v246 = vunpack.c.l.b16 %v78
  %v247 = vunpack.c.h.b16 %v78
  %v248 = vunpack.c.l.b16 %v79
  %v249 = vunpack.c.h.b16 %v79
  %v250 = vunpack.c.l.b16 %v80
  %v251 = vunpack.c.h.b16 %v80
  %v252 = vunpack.c.l.b16 %v81
  %v253 = vunpack.c.h.b16 %v81
  %v254 = vunpack.c.l.b16 %v82
  %v255 = vunpack.c.h.b16 %v82
  %v256 = vunpack.c.l.b16 %v83
  %v257 = vunpack.c.h.b16 %v83
  %v258 = vunpack.c.l.b16 %v84
  %v259 = vunpack.c.h.b16 %v84
  %v260 = vunpack.c.l.b16 %v85
  %v261 = vunpack.c.h.b16 %v85
  %v262 = vunpack.c.l.b16 %v86
  %v263 = vunpack.c.h.b16 %v86
  %v264 = vunpack.c.l.b16 %v87
  %v265 = vunpack.c.h.b16 %v87
  %v266 = vunpack.c.l.b16 %v88
  %v267 = vunpack.c.h.b16 %v88
  %v268 = vunpack.c.l.b16 %v89
  %v269 = vunpack.c.h.b16 %v89
  %v270 = vunpack.c.l.b16 %v90
  %v271 = vunpack.c.h.b16 %v90
  %v272 = vunpack.c.l.b16 %v91
  %v273 = vunpack.c.h.b16 %v91
  %v274 = vunpack.c.l.b16 %v92
  %v275 = vunpack.c.h.b16 %v92
  %v276 = vunpack.c.l.b16 %v93
  %v277 = vunpack.c.h.b16 %v93
  %v278 = vunpack.c.l.b16 %v94
  %v279 = vunpack.c.h.b16 %v94
  %v280 = vunpack.c.l.b16 %v95
  %v281 = vunpack.c.h.b16 %v95
  %v282 = vunpack.c.l.b16 %v96
  %v283 = vunpack.c.h.b16 %v96
  %v284 = vunpack.c.l.b16 %v97
  %v285 = vunpack.c.h.b16 %v97
  %v286 = vunpack.c.l.b16 %v98
  %v287 = vunpack.c.h.b16 %v98
  %v288 = vunpack.c.l.b16 %v99
  %v289 = vunpack.c.h.b16 %v99
  %v290 = vunpack.c.l.b16 %v100
  %v291 = vunpack.c.h.b16 %v100
  %v292 = vunpack.c.l.b16 %v101
  %v293 = vunpack.c.h.b16 %v101
  %v294 = vunpack.c.l.b16 %v102
  %v295 = vunpack.c.h.b16 %v102
  %v296 = vunpack.c.l.b16 %v103
  %v297 = vunpack.c.h.b16 %v103
  %v298 = vunpack.c.l.b16 %v104
  %v299 = vunpack.c.h.b16 %v104
  %v300 = vunpack.c.l.b16 %v105
  %v301 = vunpack.c.h.b16 %v105
  %v302 = vpack.c.b16 %v218, %v214
  %v303 = vpack.c.b16 %v219, %v215
  %v304 = vpack.c.b16 %v220, %v216
  %v305 = vpack.c.b16 %v221, %v217
  %v306 = vpack.c.b16 %v226, %v222
  %v307 = vpack.c.b16 %v227, %v223
  %v308 = vpack.c.b16 %v228, %v224
  %v309 = vpack.c.b16 %v229, %v225
  %v310 = vpack.c.b16 %v234, %v230
  %v311 = vpack.c.b16 %v235, %v231
  %v312 = vpack.c.b16 %v236, %v232
  %v313 = vpack.c.b16 %v237, %v233
  %v314 = vpack.c.b16 %v242, %v238
  %v315 = vpack.c.b16 %v243, %v239
  %v316 = vpack.c.b16 %v244, %v240
  %v317 = vpack.c.b16 %v245, %v241
  %v318 = vpack.c.b16 %v250, %v246
  %v319 = vpack.c.b16 %v251, %v247
  %v320 = vpack.c.b16 %v252, %v248
  %v321 = vpack.c.b16 %v253, %v249
  %v322 = vpack.c.b16 %v258, %v254
  %v323 = vpack.c.b16 %v259, %v255
  %v324 = vpack.c.b16 %v260, %v256
  %v325 = vpack.c.b16 %v261, %v257
  %v326 = vpack.c.b16 %v266, %v262
  %v327 = vpack.c.b16 %v267, %v263
  %v328 = vpack.c.b16 %v268, %v264
  %v329 = vpack.c.b16 %v269, %v265
  %v330 = vpack.c.b16 %v274, %v270
  %v331 = vpack.c.b16 %v275, %v271
  %v332 = vpack.c.b16 %v276, %v272
  %v333 = vpack.c.b16 %v277, %v273
  %v334 = vpack.c.b16 %v282, %v278
  %v335 = vpack.c.b16 %v283, %v279
  %v336 = vpack.c.b16 %v284, %v280
  %v337 = vpack.c.b16 %v285, %v281
  %v338 = vpack.c.b16 %v290, %v286
  %v339 = vpack.c.b16 %v291, %v287
  %v340 = vpack.c.b16 %v292, %v288
  %v341 = vpack.c.b16 %v293, %v289
  %v342 = vpack.c.b16 %v298, %v294
  %v343 = vpack.c.b16 %v299, %v295
  %v344 = vpack.c.b16 %v300, %v296
  %v345 = vpack.c.b16 %v301, %v297
  %v454 = vunpack.c.l.b16 %v106
  %v455 = vunpack.c.l.b16 %v107
  %v456 = vunpack.c.l.b16 %v108
  %v457 = vunpack.c.l.b16 %v109
  %v458 = vunpack.c.l.b16 %v110
  %v459 = vunpack.c.l.b16 %v111
  %v460 = vunpack.c.l.b16 %v112
  %v461 = vunpack.c.l.b16 %v113
  %v462 = vunpack.c.l.b16 %v114
  %v463 = vunpack.c.l.b16 %v115
  %v464 = vunpack.c.l.b16 %v116
  %v465 = vunpack.c.l.b16 %v117
  %v466 = vunpack.c.l.b16 %v118
  %v467 = vunpack.c.l.b16 %v119
  %v468 = vunpack.c.l.b16 %v120
  %v469 = vunpack.c.l.b16 %v121
  %v470 = vunpack.c.l.b16 %v122
  %v471 = vunpack.c.l.b16 %v123
  %v472 = vunpack.c.l.b16 %v124
  %v473 = vunpack.c.l.b16 %v125
  %v474 = vunpack.c.l.b16 %v126
  %v475 = vunpack.c.l.b16 %v127
  %v476 = vunpack.c.l.b16 %v128
  %v477 = vunpack.c.l.b16 %v129
  %v478 = vunpack.c.l.b16 %v130
  %v479 = vunpack.c.l.b16 %v131
  %v480 = vunpack.c.l.b16 %v132
  %v481 = vunpack.c.l.b16 %v133
  %v482 = vunpack.c.l.b16 %v134
  %v483 = vunpack.c.l.b16 %v135
  %v484 = vunpack.c.l.b16 %v136
  %v485 = vunpack.c.l.b16 %v137
  %v486 = vunpack.c.l.b16 %v138
  %v487 = vunpack.c.l.b16 %v139
  %v488 = vunpack.c.l.b16 %v140
  %v489 = vunpack.c.l.b16 %v141
  %v490 = vunpack.c.l.b16 %v142
  %v491 = vunpack.c.l.b16 %v143
  %v492 = vunpack.c.l.b16 %v144
  %v493 = vunpack.c.l.b16 %v145
  %v494 = vunpack.c.l.b16 %v146
  %v495 = vunpack.c.l.b16 %v147
  %v496 = vunpack.c.l.b16 %v148
  %v497 = vunpack.c.l.b16 %v149
  %v498 = vunpack.c.l.b16 %v150
  %v499 = vunpack.c.l.b16 %v151
  %v500 = vunpack.c.l.b16 %v152
  %v501 = vunpack.c.l.b16 %v153
  %v502 = vunpack.c.l.b16 %v154
  %v503 = vunpack.c.l.b16 %v155
  %v504 = vunpack.c.l.b16 %v156
  %v505 = vunpack.c.l.b16 %v157
  %v506 = vunpack.c.l.b16 %v158
  %v507 = vunpack.c.l.b16 %v159
  %v508 = vunpack.c.l.b16 %v160
  %v509 = vunpack.c.l.b16 %v161
  %v510 = vunpack.c.l.b16 %v162
  %v511 = vunpack.c.l.b16 %v163
  %v512 = vunpack.c.l.b16 %v164
  %v513 = vunpack.c.l.b16 %v165
  %v514 = vunpack.c.l.b16 %v166
  %v515 = vunpack.c.l.b16 %v167
  %v516 = vunpack.c.l.b16 %v168
  %v517 = vunpack.c.l.b16 %v169
  %v518 = vpack.c.b16 %v455, %v454
  %v519 = vpack.c.b16 %v457, %v456
  %v520 = vpack.c.b16 %v459, %v458
  %v521 = vpack.c.b16 %v461, %v460
  %v522 = vpack.c.b16 %v463, %v462
  %v523 = vpack.c.b16 %v465, %v464
  %v524 = vpack.c.b16 %v467, %v466
  %v525 = vpack.c.b16 %v469, %v468
  %v526 = vpack.c.b16 %v471, %v470
  %v527 = vpack.c.b16 %v473, %v472
  %v528 = vpack.c.b16 %v475, %v474
  %v529 = vpack.c.b16 %v477, %v476
  %v530 = vpack.c.b16 %v479, %v478
  %v531 = vpack.c.b16 %v481, %v480
  %v532 = vpack.c.b16 %v483, %v482
  %v533 = vpack.c.b16 %v485, %v484
  %v534 = vpack.c.b16 %v487, %v486
  %v535 = vpack.c.b16 %v489, %v488
  %v536 = vpack.c.b16 %v491, %v490
  %v537 = vpack.c.b16 %v493, %v492
  %v538 = vpack.c.b16 %v495, %v494
  %v539 = vpack.c.b16 %v497, %v496
  %v540 = vpack.c.b16 %v499, %v498
  %v541 = vpack.c.b16 %v501, %v500
  %v542 = vpack.c.b16 %v503, %v502
  %v543 = vpack.c.b16 %v505, %v504
  %v544 = vpack.c.b16 %v507, %v506
  %v545 = vpack.c.b16 %v509, %v508
  %v546 = vpack.c.b16 %v511, %v510
  %v547 = vpack.c.b16 %v513, %v512
  %v548 = vpack.c.b16 %v515, %v514
  %v549 = vpack.c.b16 %v517, %v516
  %582 = vmatpush.bf16.msra.mxu0 %v525
  %583 = vmatpush.bf16.msra.mxu0 %v524
  %584 = vmatpush.bf16.msra.mxu0 %v523
  %585 = vmatpush.bf16.msra.mxu0 %v522
  %586 = vmatpush.bf16.msra.mxu0 %v521
  %587 = vmatpush.bf16.msra.mxu0 %v520
  %588 = vmatpush.bf16.msra.mxu0 %v519
  %589 = vmatpush.bf16.msra.mxu0 %v518
  %590 = vmatmul.bf16.gmra.mxu0 %v302
  %v591 = vpop.f32.mrf.mxu0
  %v592 = vadd.f32 0.0, %v591
  %v593 = vpop.f32.mrf.mxu0
  %v594 = vadd.f32 0.0, %v593
  %595 = vmatmul.bf16.gmra.mxu0 %v306
  %v596 = vpop.f32.mrf.mxu0
  %v597 = vadd.f32 0.0, %v596
  %v598 = vpop.f32.mrf.mxu0
  %v599 = vadd.f32 0.0, %v598
  %600 = vmatmul.bf16.gmra.mxu0 %v310
  %v601 = vpop.f32.mrf.mxu0
  %v602 = vadd.f32 0.0, %v601
  %v603 = vpop.f32.mrf.mxu0
  %v604 = vadd.f32 0.0, %v603
  %605 = vmatmul.bf16.gmra.mxu0 %v314
  %v606 = vpop.f32.mrf.mxu0
  %v607 = vadd.f32 0.0, %v606
  %v608 = vpop.f32.mrf.mxu0
  %v609 = vadd.f32 0.0, %v608
  %610 = vmatmul.bf16.gmra.mxu0 %v318
  %v611 = vpop.f32.mrf.mxu0
  %v612 = vadd.f32 0.0, %v611
  %v613 = vpop.f32.mrf.mxu0
  %v614 = vadd.f32 0.0, %v613
  %615 = vmatmul.bf16.gmra.mxu0 %v322
  %v616 = vpop.f32.mrf.mxu0
  %v617 = vadd.f32 0.0, %v616
  %v618 = vpop.f32.mrf.mxu0
  %v619 = vadd.f32 0.0, %v618
  %620 = vmatmul.bf16.gmra.mxu0 %v326
  %v621 = vpop.f32.mrf.mxu0
  %v622 = vadd.f32 0.0, %v621
  %v623 = vpop.f32.mrf.mxu0
  %v624 = vadd.f32 0.0, %v623
  %625 = vmatmul.bf16.gmra.mxu0 %v330
  %v626 = vpop.f32.mrf.mxu0
  %v627 = vadd.f32 0.0, %v626
  %v628 = vpop.f32.mrf.mxu0
  %v629 = vadd.f32 0.0, %v628
  %630 = vmatmul.bf16.gmra.mxu0 %v334
  %v631 = vpop.f32.mrf.mxu0
  %v632 = vadd.f32 0.0, %v631
  %v633 = vpop.f32.mrf.mxu0
  %v634 = vadd.f32 0.0, %v633
  %635 = vmatmul.bf16.gmra.mxu0 %v338
  %v636 = vpop.f32.mrf.mxu0
  %v637 = vadd.f32 0.0, %v636
  %v638 = vpop.f32.mrf.mxu0
  %v639 = vadd.f32 0.0, %v638
  %640 = vmatmul.bf16.gmra.mxu0 %v342
  %v641 = vpop.f32.mrf.mxu0
  %v642 = vadd.f32 0.0, %v641
  %v643 = vpop.f32.mrf.mxu0
  %v644 = vadd.f32 0.0, %v643
  %645 = vdwg.mxu0
  %646 = vmatpush.bf16.msra.mxu0 %v533
  %647 = vmatpush.bf16.msra.mxu0 %v532
  %648 = vmatpush.bf16.msra.mxu0 %v531
  %649 = vmatpush.bf16.msra.mxu0 %v530
  %650 = vmatpush.bf16.msra.mxu0 %v529
  %651 = vmatpush.bf16.msra.mxu0 %v528
  %652 = vmatpush.bf16.msra.mxu0 %v527
  %653 = vmatpush.bf16.msra.mxu0 %v526
  %654 = vmatmul.bf16.gmra.mxu0 %v303
  %v655 = vpop.f32.mrf.mxu0
  %v656 = vadd.f32 %v592, %v655
  %v657 = vpop.f32.mrf.mxu0
  %v658 = vadd.f32 %v594, %v657
  %659 = vmatmul.bf16.gmra.mxu0 %v307
  %v660 = vpop.f32.mrf.mxu0
  %v661 = vadd.f32 %v597, %v660
  %v662 = vpop.f32.mrf.mxu0
  %v663 = vadd.f32 %v599, %v662
  %664 = vmatmul.bf16.gmra.mxu0 %v311
  %v665 = vpop.f32.mrf.mxu0
  %v666 = vadd.f32 %v602, %v665
  %v667 = vpop.f32.mrf.mxu0
  %v668 = vadd.f32 %v604, %v667
  %669 = vmatmul.bf16.gmra.mxu0 %v315
  %v670 = vpop.f32.mrf.mxu0
  %v671 = vadd.f32 %v607, %v670
  %v672 = vpop.f32.mrf.mxu0
  %v673 = vadd.f32 %v609, %v672
  %674 = vmatmul.bf16.gmra.mxu0 %v319
  %v675 = vpop.f32.mrf.mxu0
  %v676 = vadd.f32 %v612, %v675
  %v677 = vpop.f32.mrf.mxu0
  %v678 = vadd.f32 %v614, %v677
  %679 = vmatmul.bf16.gmra.mxu0 %v323
  %v680 = vpop.f32.mrf.mxu0
  %v681 = vadd.f32 %v617, %v680
  %v682 = vpop.f32.mrf.mxu0
  %v683 = vadd.f32 %v619, %v682
  %684 = vmatmul.bf16.gmra.mxu0 %v327
  %v685 = vpop.f32.mrf.mxu0
  %v686 = vadd.f32 %v622, %v685
  %v687 = vpop.f32.mrf.mxu0
  %v688 = vadd.f32 %v624, %v687
  %689 = vmatmul.bf16.gmra.mxu0 %v331
  %v690 = vpop.f32.mrf.mxu0
  %v691 = vadd.f32 %v627, %v690
  %v692 = vpop.f32.mrf.mxu0
  %v693 = vadd.f32 %v629, %v692
  %694 = vmatmul.bf16.gmra.mxu0 %v335
  %v695 = vpop.f32.mrf.mxu0
  %v696 = vadd.f32 %v632, %v695
  %v697 = vpop.f32.mrf.mxu0
  %v698 = vadd.f32 %v634, %v697
  %699 = vmatmul.bf16.gmra.mxu0 %v339
  %v700 = vpop.f32.mrf.mxu0
  %v701 = vadd.f32 %v637, %v700
  %v702 = vpop.f32.mrf.mxu0
  %v703 = vadd.f32 %v639, %v702
  %704 = vmatmul.bf16.gmra.mxu0 %v343
  %v705 = vpop.f32.mrf.mxu0
  %v706 = vadd.f32 %v642, %v705
  %v707 = vpop.f32.mrf.mxu0
  %v708 = vadd.f32 %v644, %v707
  %709 = vdwg.mxu0
  %710 = vmatpush.bf16.msra.mxu0 %v541
  %711 = vmatpush.bf16.msra.mxu0 %v540
  %712 = vmatpush.bf16.msra.mxu0 %v539
  %713 = vmatpush.bf16.msra.mxu0 %v538
  %714 = vmatpush.bf16.msra.mxu0 %v537
  %715 = vmatpush.bf16.msra.mxu0 %v536
  %716 = vmatpush.bf16.msra.mxu0 %v535
  %717 = vmatpush.bf16.msra.mxu0 %v534
  %718 = vmatmul.bf16.gmra.mxu0 %v304
  %v719 = vpop.f32.mrf.mxu0
  %v720 = vadd.f32 %v656, %v719
  %v721 = vpop.f32.mrf.mxu0
  %v722 = vadd.f32 %v658, %v721
  %723 = vmatmul.bf16.gmra.mxu0 %v308
  %v724 = vpop.f32.mrf.mxu0
  %v725 = vadd.f32 %v661, %v724
  %v726 = vpop.f32.mrf.mxu0
  %v727 = vadd.f32 %v663, %v726
  %728 = vmatmul.bf16.gmra.mxu0 %v312
  %v729 = vpop.f32.mrf.mxu0
  %v730 = vadd.f32 %v666, %v729
  %v731 = vpop.f32.mrf.mxu0
  %v732 = vadd.f32 %v668, %v731
  %733 = vmatmul.bf16.gmra.mxu0 %v316
  %v734 = vpop.f32.mrf.mxu0
  %v735 = vadd.f32 %v671, %v734
  %v736 = vpop.f32.mrf.mxu0
  %v737 = vadd.f32 %v673, %v736
  %738 = vmatmul.bf16.gmra.mxu0 %v320
  %v739 = vpop.f32.mrf.mxu0
  %v740 = vadd.f32 %v676, %v739
  %v741 = vpop.f32.mrf.mxu0
  %v742 = vadd.f32 %v678, %v741
  %743 = vmatmul.bf16.gmra.mxu0 %v324
  %v744 = vpop.f32.mrf.mxu0
  %v745 = vadd.f32 %v681, %v744
  %v746 = vpop.f32.mrf.mxu0
  %v747 = vadd.f32 %v683, %v746
  %748 = vmatmul.bf16.gmra.mxu0 %v328
  %v749 = vpop.f32.mrf.mxu0
  %v750 = vadd.f32 %v686, %v749
  %v751 = vpop.f32.mrf.mxu0
  %v752 = vadd.f32 %v688, %v751
  %753 = vmatmul.bf16.gmra.mxu0 %v332
  %v754 = vpop.f32.mrf.mxu0
  %v755 = vadd.f32 %v691, %v754
  %v756 = vpop.f32.mrf.mxu0
  %v757 = vadd.f32 %v693, %v756
  %758 = vmatmul.bf16.gmra.mxu0 %v336
  %v759 = vpop.f32.mrf.mxu0
  %v760 = vadd.f32 %v696, %v759
  %v761 = vpop.f32.mrf.mxu0
  %v762 = vadd.f32 %v698, %v761
  %763 = vmatmul.bf16.gmra.mxu0 %v340
  %v764 = vpop.f32.mrf.mxu0
  %v765 = vadd.f32 %v701, %v764
  %v766 = vpop.f32.mrf.mxu0
  %v767 = vadd.f32 %v703, %v766
  %768 = vmatmul.bf16.gmra.mxu0 %v344
  %v769 = vpop.f32.mrf.mxu0
  %v770 = vadd.f32 %v706, %v769
  %v771 = vpop.f32.mrf.mxu0
  %v772 = vadd.f32 %v708, %v771
  %773 = vdwg.mxu0
  %774 = vmatpush.bf16.msra.mxu0 %v549
  %775 = vmatpush.bf16.msra.mxu0 %v548
  %776 = vmatpush.bf16.msra.mxu0 %v547
  %777 = vmatpush.bf16.msra.mxu0 %v546
  %778 = vmatpush.bf16.msra.mxu0 %v545
  %779 = vmatpush.bf16.msra.mxu0 %v544
  %780 = vmatpush.bf16.msra.mxu0 %v543
  %781 = vmatpush.bf16.msra.mxu0 %v542
  %782 = vmatmul.bf16.gmra.mxu0 %v305
  %v783 = vpop.f32.mrf.mxu0
  %v784 = vadd.f32 %v720, %v783
  %v785 = vpop.f32.mrf.mxu0
  %v786 = vadd.f32 %v722, %v785
  %787 = vmatmul.bf16.gmra.mxu0 %v309
  %v788 = vpop.f32.mrf.mxu0
  %v789 = vadd.f32 %v725, %v788
  %v790 = vpop.f32.mrf.mxu0
  %v791 = vadd.f32 %v727, %v790
  %792 = vmatmul.bf16.gmra.mxu0 %v313
  %v793 = vpop.f32.mrf.mxu0
  %v794 = vadd.f32 %v730, %v793
  %v795 = vpop.f32.mrf.mxu0
  %v796 = vadd.f32 %v732, %v795
  %797 = vmatmul.bf16.gmra.mxu0 %v317
  %v798 = vpop.f32.mrf.mxu0
  %v799 = vadd.f32 %v735, %v798
  %v800 = vpop.f32.mrf.mxu0
  %v801 = vadd.f32 %v737, %v800
  %802 = vmatmul.bf16.gmra.mxu0 %v321
  %v803 = vpop.f32.mrf.mxu0
  %v804 = vadd.f32 %v740, %v803
  %v805 = vpop.f32.mrf.mxu0
  %v806 = vadd.f32 %v742, %v805
  %807 = vmatmul.bf16.gmra.mxu0 %v325
  %v808 = vpop.f32.mrf.mxu0
  %v809 = vadd.f32 %v745, %v808
  %v810 = vpop.f32.mrf.mxu0
  %v811 = vadd.f32 %v747, %v810
  %812 = vmatmul.bf16.gmra.mxu0 %v329
  %v813 = vpop.f32.mrf.mxu0
  %v814 = vadd.f32 %v750, %v813
  %v815 = vpop.f32.mrf.mxu0
  %v816 = vadd.f32 %v752, %v815
  %817 = vmatmul.bf16.gmra.mxu0 %v333
  %v818 = vpop.f32.mrf.mxu0
  %v819 = vadd.f32 %v755, %v818
  %v820 = vpop.f32.mrf.mxu0
  %v821 = vadd.f32 %v757, %v820
  %822 = vmatmul.bf16.gmra.mxu0 %v337
  %v823 = vpop.f32.mrf.mxu0
  %v824 = vadd.f32 %v760, %v823
  %v825 = vpop.f32.mrf.mxu0
  %v826 = vadd.f32 %v762, %v825
  %827 = vmatmul.bf16.gmra.mxu0 %v341
  %v828 = vpop.f32.mrf.mxu0
  %v829 = vadd.f32 %v765, %v828
  %v830 = vpop.f32.mrf.mxu0
  %v831 = vadd.f32 %v767, %v830
  %832 = vmatmul.bf16.gmra.mxu0 %v345
  %v833 = vpop.f32.mrf.mxu0
  %v834 = vadd.f32 %v770, %v833
  %v835 = vpop.f32.mrf.mxu0
  %v836 = vadd.f32 %v772, %v835
  %837 = vdwg.mxu0
  %v838 = vadd.f32 %v40, %v784
  %v839 = vadd.f32 %v41, %v786
  %v840 = vadd.f32 %v42, %v789
  %v841 = vadd.f32 %v43, %v791
  %v842 = vadd.f32 %v44, %v794
  %v843 = vadd.f32 %v45, %v796
  %v844 = vadd.f32 %v46, %v799
  %v845 = vadd.f32 %v47, %v801
  %v846 = vadd.f32 %v48, %v804
  %v847 = vadd.f32 %v49, %v806
  %v848 = vadd.f32 %v50, %v809
  %v849 = vadd.f32 %v51, %v811
  %v850 = vadd.f32 %v52, %v814
  %v851 = vadd.f32 %v53, %v816
  %v852 = vadd.f32 %v54, %v819
  %v853 = vadd.f32 %v55, %v821
  %v854 = vadd.f32 %v56, %v824
  %v855 = vadd.f32 %v57, %v826
  %v856 = vadd.f32 %v58, %v829
  %v857 = vadd.f32 %v59, %v831
  %v858 = vadd.f32 %v60, %v834
  %v859 = vadd.f32 %v61, %v836
  %860 = vst [vmem:[#allocation2] sm:$0xff] %v838
  %861 = vst [vmem:[#allocation2 + $0x8] sm:$0xff] %v839
  %862 = vst [vmem:[#allocation2 + $0x10] sm:$0xff] %v840
  %863 = vst [vmem:[#allocation2 + $0x18] sm:$0xff] %v841
  %864 = vst [vmem:[#allocation2 + $0x20] sm:$0xff] %v842
  %865 = vst [vmem:[#allocation2 + $0x28] sm:$0xff] %v843
  %866 = vst [vmem:[#allocation2 + $0x30] sm:$0xff] %v844
  %867 = vst [vmem:[#allocation2 + $0x38] sm:$0xff] %v845
  %868 = vst [vmem:[#allocation2 + $0x40] sm:$0xff] %v846
  %869 = vst [vmem:[#allocation2 + $0x48] sm:$0xff] %v847
  %870 = vst [vmem:[#allocation2 + $0x50] sm:$0xff] %v848
  %871 = vst [vmem:[#allocation2 + $0x58] sm:$0xff] %v849
  %872 = vst [vmem:[#allocation2 + $0x60] sm:$0xff] %v850
  %873 = vst [vmem:[#allocation2 + $0x68] sm:$0xff] %v851
  %874 = vst [vmem:[#allocation2 + $0x70] sm:$0xff] %v852
  %875 = vst [vmem:[#allocation2 + $0x78] sm:$0xff] %v853
  %876 = vst [vmem:[#allocation2 + $0x80] sm:$0xff] %v854
  %877 = vst [vmem:[#allocation2 + $0x88] sm:$0xff] %v855
  %878 = vst [vmem:[#allocation2 + $0x90] sm:$0xff] %v856
  %879 = vst [vmem:[#allocation2 + $0x98] sm:$0xff] %v857
  %880 = vst [vmem:[#allocation2 + $0xa0] sm:$0xff] %v858
  %881 = vst [vmem:[#allocation2 + $0xa8] sm:$0xff] %v859
  // Predicated region
  $region18: #{dqn_forward.6} parent=0 // pred_check
    %p882 = pneg %p14
  $region19: #{dqn_forward.6} parent=0 // pred_check_branch
    %884 = sbr.rel (%p882) target = $region21
  $region20: #{dqn_forward.6} parent=0 // pred_region
    %v885 = vld [vmem:[#allocation2] sm:$0xff]
    %v886 = vld [vmem:[#allocation2 + $0x8] sm:$0xff]
    %v887 = vld [vmem:[#allocation2 + $0x10] sm:$0xff]
    %v888 = vld [vmem:[#allocation2 + $0x18] sm:$0xff]
    %v889 = vld [vmem:[#allocation2 + $0x20] sm:$0xff]
    %v890 = vld [vmem:[#allocation2 + $0x28] sm:$0xff]
    %v891 = vld [vmem:[#allocation2 + $0x30] sm:$0xff]
    %v892 = vld [vmem:[#allocation2 + $0x38] sm:$0xff]
    %v893 = vld [vmem:[#allocation2 + $0x40] sm:$0xff]
    %v894 = vld [vmem:[#allocation2 + $0x48] sm:$0xff]
    %v895 = vld [vmem:[#allocation2 + $0x50] sm:$0xff]
    %v896 = vld [vmem:[#allocation2 + $0x58] sm:$0xff]
    %v897 = vld [vmem:[#allocation2 + $0x60] sm:$0xff]
    %v898 = vld [vmem:[#allocation2 + $0x68] sm:$0xff]
    %v899 = vld [vmem:[#allocation2 + $0x70] sm:$0xff]
    %v900 = vld [vmem:[#allocation2 + $0x78] sm:$0xff]
    %v901 = vld [vmem:[#allocation2 + $0x80] sm:$0xff]
    %v902 = vld [vmem:[#allocation2 + $0x88] sm:$0xff]
    %v903 = vld [vmem:[#allocation2 + $0x90] sm:$0xff]
    %v904 = vld [vmem:[#allocation2 + $0x98] sm:$0xff]
    %v905 = vld [vmem:[#allocation2 + $0xa0] sm:$0xff]
    %v906 = vld [vmem:[#allocation2 + $0xa8] sm:$0xff]
    %v907 = vld [vmem:[%s2] sm:$0x1]
    %v909 = vperm.slane %v907, 0
    %v911 = vadd.f32 %v885, %v909
    %v912 = vadd.f32 %v886, %v909
    %v913 = vadd.f32 %v887, %v909
    %v914 = vadd.f32 %v888, %v909
    %v915 = vadd.f32 %v889, %v909
    %v916 = vadd.f32 %v890, %v909
    %v917 = vadd.f32 %v891, %v909
    %v918 = vadd.f32 %v892, %v909
    %v919 = vadd.f32 %v893, %v909
    %v920 = vadd.f32 %v894, %v909
    %v921 = vadd.f32 %v895, %v909
    %v922 = vadd.f32 %v896, %v909
    %v923 = vadd.f32 %v897, %v909
    %v924 = vadd.f32 %v898, %v909
    %v925 = vadd.f32 %v899, %v909
    %v926 = vadd.f32 %v900, %v909
    %v927 = vadd.f32 %v901, %v909
    %v928 = vadd.f32 %v902, %v909
    %v929 = vadd.f32 %v903, %v909
    %v930 = vadd.f32 %v904, %v909
    %v931 = vadd.f32 %v905, %v909
    %v932 = vadd.f32 %v906, %v909
    %v933 = vmax.f32 %v911, 0.0
    %v934 = vmax.f32 %v912, 0.0
    %v935 = vmax.f32 %v913, 0.0
    %v936 = vmax.f32 %v914, 0.0
    %v937 = vmax.f32 %v915, 0.0
    %v938 = vmax.f32 %v916, 0.0
    %v939 = vmax.f32 %v917, 0.0
    %v940 = vmax.f32 %v918, 0.0
    %v941 = vmax.f32 %v919, 0.0
    %v942 = vmax.f32 %v920, 0.0
    %v943 = vmax.f32 %v921, 0.0
    %v944 = vmax.f32 %v922, 0.0
    %v945 = vmax.f32 %v923, 0.0
    %v946 = vmax.f32 %v924, 0.0
    %v947 = vmax.f32 %v925, 0.0
    %v948 = vmax.f32 %v926, 0.0
    %v949 = vmax.f32 %v927, 0.0
    %v950 = vmax.f32 %v928, 0.0
    %v951 = vmax.f32 %v929, 0.0
    %v952 = vmax.f32 %v930, 0.0
    %v953 = vmax.f32 %v931, 0.0
    %v954 = vmax.f32 %v932, 0.0
    %v955 = vpack.c.bf16 %v933, %v933
    %v956 = vpack.c.bf16 %v934, %v934
    %v957 = vpack.c.bf16 %v935, %v935
    %v958 = vpack.c.bf16 %v936, %v936
    %v959 = vpack.c.bf16 %v937, %v937
    %v960 = vpack.c.bf16 %v938, %v938
    %v961 = vpack.c.bf16 %v939, %v939
    %v962 = vpack.c.bf16 %v940, %v940
    %v963 = vpack.c.bf16 %v941, %v941
    %v964 = vpack.c.bf16 %v942, %v942
    %v965 = vpack.c.bf16 %v943, %v943
    %v966 = vpack.c.bf16 %v944, %v944
    %v967 = vpack.c.bf16 %v945, %v945
    %v968 = vpack.c.bf16 %v946, %v946
    %v969 = vpack.c.bf16 %v947, %v947
    %v970 = vpack.c.bf16 %v948, %v948
    %v971 = vpack.c.bf16 %v949, %v949
    %v972 = vpack.c.bf16 %v950, %v950
    %v973 = vpack.c.bf16 %v951, %v951
    %v974 = vpack.c.bf16 %v952, %v952
    %v975 = vpack.c.bf16 %v953, %v953
    %v976 = vpack.c.bf16 %v954, %v954
    %977 = vst [vmem:[%s3] sm:$0xf] %v955
    %978 = vst [vmem:[%s3 + $0x4] sm:$0xf] %v956
    %979 = vst [vmem:[%s3 + $0x8] sm:$0xf] %v957
    %980 = vst [vmem:[%s3 + $0xc] sm:$0xf] %v958
    %981 = vst [vmem:[%s3 + $0x10] sm:$0xf] %v959
    %982 = vst [vmem:[%s3 + $0x14] sm:$0xf] %v960
    %983 = vst [vmem:[%s3 + $0x18] sm:$0xf] %v961
    %984 = vst [vmem:[%s3 + $0x1c] sm:$0xf] %v962
    %985 = vst [vmem:[%s3 + $0x20] sm:$0xf] %v963
    %986 = vst [vmem:[%s3 + $0x24] sm:$0xf] %v964
    %987 = vst [vmem:[%s3 + $0x28] sm:$0xf] %v965
    %988 = vst [vmem:[%s3 + $0x2c] sm:$0xf] %v966
    %989 = vst [vmem:[%s3 + $0x30] sm:$0xf] %v967
    %990 = vst [vmem:[%s3 + $0x34] sm:$0xf] %v968
    %991 = vst [vmem:[%s3 + $0x38] sm:$0xf] %v969
    %992 = vst [vmem:[%s3 + $0x3c] sm:$0xf] %v970
    %993 = vst [vmem:[%s3 + $0x40] sm:$0xf] %v971
    %994 = vst [vmem:[%s3 + $0x44] sm:$0xf] %v972
    %995 = vst [vmem:[%s3 + $0x48] sm:$0xf] %v973
    %996 = vst [vmem:[%s3 + $0x4c] sm:$0xf] %v974
    %997 = vst [vmem:[%s3 + $0x50] sm:$0xf] %v975
    %998 = vst [vmem:[%s3 + $0x54] sm:$0xf] %v976
  $region21: #{dqn_forward.6} parent=0 // pred_fallthru
    _
  // Predicated region
  $region22: #{dqn_forward.6} parent=0 // pred_check
    _
  $region23: #{dqn_forward.6} parent=0 // pred_check_branch
    %1000 = sbr.rel (0) target = $region25
  $region24: #{dqn_forward.6} parent=0 // pred_region
    _
  $region25: #{dqn_forward.6} parent=0 // pred_fallthru
    _
  // Predicated region
  $region26: #{dqn_forward.6} parent=0 // pred_check
    _
  $region27: #{dqn_forward.6} parent=0 // pred_check_branch
    %1002 = sbr.rel (0) target = $region29
  $region28: #{dqn_forward.6} parent=0 // pred_region
    _
  $region29: #{dqn_forward.6} parent=0 // pred_fallthru
    _

// kernel: dqn_forward.7
$region0: #{dqn_forward.7}
  #allocation0 [shape = 'u32[]', space=smem, size = 0x4, offset = 0x4, fixed_abs, tag = 'smem constant byte address 0x4 - core index']
  #allocation1 [shape = 'u32[72,128]{1,0:T(1,128)}', space=vmem, size = 0x9000, scoped, tag = 'internal scratch']
  #allocation2 [shape = 'f32[112,128]{1,0:T(8,128)}', space=vmem, size = 0xe000, scoped, tag = 'scratch operand']
  %s0 = inlined_call_operand.vmem [shape: bf16[112,640], index: 0, kind: input, shape index: {}]
  %s1 = inlined_call_operand.vmem [shape: bf16[640,128], index: 1, kind: input, shape index: {}]
  %s2 = inlined_call_operand.vmem [shape: f32[1,128], index: 2, kind: input, shape index: {}]
  %s3 = inlined_call_operand.vmem [shape: bf16[112,128], index: 3, kind: output, shape index: {}]
  %s4 = sld [smem:[#allocation0]]
  $region30: #{dqn_forward.7} parent=0
    _
  %s6 = ssub.s32 1, %s4
  %s7 = scalar_select 0, %s6, %s4
  // Predicated region
  $region2: #{dqn_forward.7} parent=0 // pred_check
    _
  $region3: #{dqn_forward.7} parent=0 // pred_check_branch
    %9 = sbr.rel (0) target = $region5
  $region4: #{dqn_forward.7} parent=0 // pred_region
    _
  $region5: #{dqn_forward.7} parent=0 // pred_fallthru
    _
  // Predicated region
  $region6: #{dqn_forward.7} parent=0 // pred_check
    _
  $region7: #{dqn_forward.7} parent=0 // pred_check_branch
    %11 = sbr.rel (0) target = $region9
  $region8: #{dqn_forward.7} parent=0 // pred_region
    _
  $region9: #{dqn_forward.7} parent=0 // pred_fallthru
    _
  // Predicated region
  $region10: #{dqn_forward.7} parent=0 // pred_check
    _
  $region11: #{dqn_forward.7} parent=0 // pred_check_branch
    %13 = sbr.rel (0) target = $region13
  $region12: #{dqn_forward.7} parent=0 // pred_region
    _
  $region13: #{dqn_forward.7} parent=0 // pred_fallthru
    _
  %p14 = scmp.eq.s32.totalorder 0, 0
  // Predicated region
  $region14: #{dqn_forward.7} parent=0 // pred_check
    %p15 = pneg %p14
  $region15: #{dqn_forward.7} parent=0 // pred_check_branch
    %17 = sbr.rel (%p15) target = $region17
  $region16: #{dqn_forward.7} parent=0 // pred_region
    %18 = vst [vmem:[#allocation2] sm:$0xff] 0.0
    %19 = vst [vmem:[#allocation2 + $0x8] sm:$0xff] 0.0
    %20 = vst [vmem:[#allocation2 + $0x10] sm:$0xff] 0.0
    %21 = vst [vmem:[#allocation2 + $0x18] sm:$0xff] 0.0
    %22 = vst [vmem:[#allocation2 + $0x20] sm:$0xff] 0.0
    %23 = vst [vmem:[#allocation2 + $0x28] sm:$0xff] 0.0
    %24 = vst [vmem:[#allocation2 + $0x30] sm:$0xff] 0.0
    %25 = vst [vmem:[#allocation2 + $0x38] sm:$0xff] 0.0
    %26 = vst [vmem:[#allocation2 + $0x40] sm:$0xff] 0.0
    %27 = vst [vmem:[#allocation2 + $0x48] sm:$0xff] 0.0
    %28 = vst [vmem:[#allocation2 + $0x50] sm:$0xff] 0.0
    %29 = vst [vmem:[#allocation2 + $0x58] sm:$0xff] 0.0
    %30 = vst [vmem:[#allocation2 + $0x60] sm:$0xff] 0.0
    %31 = vst [vmem:[#allocation2 + $0x68] sm:$0xff] 0.0
  $region17: #{dqn_forward.7} parent=0 // pred_fallthru
    _
  %v32 = vld [vmem:[#allocation2] sm:$0xff]
  %v33 = vld [vmem:[#allocation2 + $0x8] sm:$0xff]
  %v34 = vld [vmem:[#allocation2 + $0x10] sm:$0xff]
  %v35 = vld [vmem:[#allocation2 + $0x18] sm:$0xff]
  %v36 = vld [vmem:[#allocation2 + $0x20] sm:$0xff]
  %v37 = vld [vmem:[#allocation2 + $0x28] sm:$0xff]
  %v38 = vld [vmem:[#allocation2 + $0x30] sm:$0xff]
  %v39 = vld [vmem:[#allocation2 + $0x38] sm:$0xff]
  %v40 = vld [vmem:[#allocation2 + $0x40] sm:$0xff]
  %v41 = vld [vmem:[#allocation2 + $0x48] sm:$0xff]
  %v42 = vld [vmem:[#allocation2 + $0x50] sm:$0xff]
  %v43 = vld [vmem:[#allocation2 + $0x58] sm:$0xff]
  %v44 = vld [vmem:[#allocation2 + $0x60] sm:$0xff]
  %v45 = vld [vmem:[#allocation2 + $0x68] sm:$0xff]
  %v46 = vld [vmem:[%s0] sm:$0xff]
  %v47 = vld [vmem:[%s0 + $0x8] sm:$0xff]
  %v48 = vld [vmem:[%s0 + $0x10] sm:$0xf]
  %v49 = vld [vmem:[%s0 + $0x14] sm:$0xff]
  %v50 = vld [vmem:[%s0 + $0x1c] sm:$0xff]
  %v51 = vld [vmem:[%s0 + $0x24] sm:$0xf]
  %v52 = vld [vmem:[%s0 + $0x28] sm:$0xff]
  %v53 = vld [vmem:[%s0 + $0x30] sm:$0xff]
  %v54 = vld [vmem:[%s0 + $0x38] sm:$0xf]
  %v55 = vld [vmem:[%s0 + $0x3c] sm:$0xff]
  %v56 = vld [vmem:[%s0 + $0x44] sm:$0xff]
  %v57 = vld [vmem:[%s0 + $0x4c] sm:$0xf]
  %v58 = vld [vmem:[%s0 + $0x50] sm:$0xff]
  %v59 = vld [vmem:[%s0 + $0x58] sm:$0xff]
  %v60 = vld [vmem:[%s0 + $0x60] sm:$0xf]
  %v61 = vld [vmem:[%s0 + $0x64] sm:$0xff]
  %v62 = vld [vmem:[%s0 + $0x6c] sm:$0xff]
  %v63 = vld [vmem:[%s0 + $0x74] sm:$0xf]
  %v64 = vld [vmem:[%s0 + $0x78] sm:$0xff]
  %v65 = vld [vmem:[%s0 + $0x80] sm:$0xff]
  %v66 = vld [vmem:[%s0 + $0x88] sm:$0xf]
  %v67 = vld [vmem:[%s0 + $0x8c] sm:$0xff]
  %v68 = vld [vmem:[%s0 + $0x94] sm:$0xff]
  %v69 = vld [vmem:[%s0 + $0x9c] sm:$0xf]
  %v70 = vld [vmem:[%s0 + $0xa0] sm:$0xff]
  %v71 = vld [vmem:[%s0 + $0xa8] sm:$0xff]
  %v72 = vld [vmem:[%s0 + $0xb0] sm:$0xf]
  %v73 = vld [vmem:[%s0 + $0xb4] sm:$0xff]
  %v74 = vld [vmem:[%s0 + $0xbc] sm:$0xff]
  %v75 = vld [vmem:[%s0 + $0xc4] sm:$0xf]
  %v76 = vld [vmem:[%s0 + $0xc8] sm:$0xff]
  %v77 = vld [vmem:[%s0 + $0xd0] sm:$0xff]
  %v78 = vld [vmem:[%s0 + $0xd8] sm:$0xf]
  %v79 = vld [vmem:[%s0 + $0xdc] sm:$0xff]
  %v80 = vld [vmem:[%s0 + $0xe4] sm:$0xff]
  %v81 = vld [vmem:[%s0 + $0xec] sm:$0xf]
  %v82 = vld [vmem:[%s0 + $0xf0] sm:$0xff]
  %v83 = vld [vmem:[%s0 + $0xf8] sm:$0xff]
  %v84 = vld [vmem:[%s0 + $0x100] sm:$0xf]
  %v85 = vld [vmem:[%s0 + $0x104] sm:$0xff]
  %v86 = vld [vmem:[%s0 + $0x10c] sm:$0xff]
  %v87 = vld [vmem:[%s0 + $0x114] sm:$0xf]
  %v88 = vld [vmem:[%s1] sm:$0xf]
  %v89 = vld [vmem:[%s1 + $0x4] sm:$0xf]
  %v90 = vld [vmem:[%s1 + $0x8] sm:$0xf]
  %v91 = vld [vmem:[%s1 + $0xc] sm:$0xf]
  %v92 = vld [vmem:[%s1 + $0x10] sm:$0xf]
  %v93 = vld [vmem:[%s1 + $0x14] sm:$0xf]
  %v94 = vld [vmem:[%s1 + $0x18] sm:$0xf]
  %v95 = vld [vmem:[%s1 + $0x1c] sm:$0xf]
  %v96 = vld [vmem:[%s1 + $0x20] sm:$0xf]
  %v97 = vld [vmem:[%s1 + $0x24] sm:$0xf]
  %v98 = vld [vmem:[%s1 + $0x28] sm:$0xf]
  %v99 = vld [vmem:[%s1 + $0x2c] sm:$0xf]
  %v100 = vld [vmem:[%s1 + $0x30] sm:$0xf]
  %v101 = vld [vmem:[%s1 + $0x34] sm:$0xf]
  %v102 = vld [vmem:[%s1 + $0x38] sm:$0xf]
  %v103 = vld [vmem:[%s1 + $0x3c] sm:$0xf]
  %v104 = vld [vmem:[%s1 + $0x40] sm:$0xf]
  %v105 = vld [vmem:[%s1 + $0x44] sm:$0xf]
  %v106 = vld [vmem:[%s1 + $0x48] sm:$0xf]
  %v107 = vld [vmem:[%s1 + $0x4c] sm:$0xf]
  %v108 = vld [vmem:[%s1 + $0x50] sm:$0xf]
  %v109 = vld [vmem:[%s1 + $0x54] sm:$0xf]
  %v110 = vld [vmem:[%s1 + $0x58] sm:$0xf]
  %v111 = vld [vmem:[%s1 + $0x5c] sm:$0xf]
  %v112 = vld [vmem:[%s1 + $0x60] sm:$0xf]
  %v113 = vld [vmem:[%s1 + $0x64] sm:$0xf]
  %v114 = vld [vmem:[%s1 + $0x68] sm:$0xf]
  %v115 = vld [vmem:[%s1 + $0x6c] sm:$0xf]
  %v116 = vld [vmem:[%s1 + $0x70] sm:$0xf]
  %v117 = vld [vmem:[%s1 + $0x74] sm:$0xf]
  %v118 = vld [vmem:[%s1 + $0x78] sm:$0xf]
  %v119 = vld [vmem:[%s1 + $0x7c] sm:$0xf]
  %v120 = vld [vmem:[%s1 + $0x80] sm:$0xf]
  %v121 = vld [vmem:[%s1 + $0x84] sm:$0xf]
  %v122 = vld [vmem:[%s1 + $0x88] sm:$0xf]
  %v123 = vld [vmem:[%s1 + $0x8c] sm:$0xf]
  %v124 = vld [vmem:[%s1 + $0x90] sm:$0xf]
  %v125 = vld [vmem:[%s1 + $0x94] sm:$0xf]
  %v126 = vld [vmem:[%s1 + $0x98] sm:$0xf]
  %v127 = vld [vmem:[%s1 + $0x9c] sm:$0xf]
  %v128 = vld [vmem:[%s1 + $0xa0] sm:$0xf]
  %v129 = vld [vmem:[%s1 + $0xa4] sm:$0xf]
  %v130 = vld [vmem:[%s1 + $0xa8] sm:$0xf]
  %v131 = vld [vmem:[%s1 + $0xac] sm:$0xf]
  %v132 = vld [vmem:[%s1 + $0xb0] sm:$0xf]
  %v133 = vld [vmem:[%s1 + $0xb4] sm:$0xf]
  %v134 = vld [vmem:[%s1 + $0xb8] sm:$0xf]
  %v135 = vld [vmem:[%s1 + $0xbc] sm:$0xf]
  %v136 = vld [vmem:[%s1 + $0xc0] sm:$0xf]
  %v137 = vld [vmem:[%s1 + $0xc4] sm:$0xf]
  %v138 = vld [vmem:[%s1 + $0xc8] sm:$0xf]
  %v139 = vld [vmem:[%s1 + $0xcc] sm:$0xf]
  %v140 = vld [vmem:[%s1 + $0xd0] sm:$0xf]
  %v141 = vld [vmem:[%s1 + $0xd4] sm:$0xf]
  %v142 = vld [vmem:[%s1 + $0xd8] sm:$0xf]
  %v143 = vld [vmem:[%s1 + $0xdc] sm:$0xf]
  %v144 = vld [vmem:[%s1 + $0xe0] sm:$0xf]
  %v145 = vld [vmem:[%s1 + $0xe4] sm:$0xf]
  %v146 = vld [vmem:[%s1 + $0xe8] sm:$0xf]
  %v147 = vld [vmem:[%s1 + $0xec] sm:$0xf]
  %v148 = vld [vmem:[%s1 + $0xf0] sm:$0xf]
  %v149 = vld [vmem:[%s1 + $0xf4] sm:$0xf]
  %v150 = vld [vmem:[%s1 + $0xf8] sm:$0xf]
  %v151 = vld [vmem:[%s1 + $0xfc] sm:$0xf]
  %v152 = vld [vmem:[%s1 + $0x100] sm:$0xf]
  %v153 = vld [vmem:[%s1 + $0x104] sm:$0xf]
  %v154 = vld [vmem:[%s1 + $0x108] sm:$0xf]
  %v155 = vld [vmem:[%s1 + $0x10c] sm:$0xf]
  %v156 = vld [vmem:[%s1 + $0x110] sm:$0xf]
  %v157 = vld [vmem:[%s1 + $0x114] sm:$0xf]
  %v158 = vld [vmem:[%s1 + $0x118] sm:$0xf]
  %v159 = vld [vmem:[%s1 + $0x11c] sm:$0xf]
  %v160 = vld [vmem:[%s1 + $0x120] sm:$0xf]
  %v161 = vld [vmem:[%s1 + $0x124] sm:$0xf]
  %v162 = vld [vmem:[%s1 + $0x128] sm:$0xf]
  %v163 = vld [vmem:[%s1 + $0x12c] sm:$0xf]
  %v164 = vld [vmem:[%s1 + $0x130] sm:$0xf]
  %v165 = vld [vmem:[%s1 + $0x134] sm:$0xf]
  %v166 = vld [vmem:[%s1 + $0x138] sm:$0xf]
  %v167 = vld [vmem:[%s1 + $0x13c] sm:$0xf]
  %v210 = vunpack.c.l.b16 %v46
  %v211 = vunpack.c.h.b16 %v46
  %v212 = vunpack.c.l.b16 %v47
  %v213 = vunpack.c.h.b16 %v47
  %v214 = vunpack.c.l.b16 %v48
  %v215 = vunpack.c.l.b16 %v49
  %v216 = vunpack.c.h.b16 %v49
  %v217 = vunpack.c.l.b16 %v50
  %v218 = vunpack.c.h.b16 %v50
  %v219 = vunpack.c.l.b16 %v51
  %v220 = vunpack.c.l.b16 %v52
  %v221 = vunpack.c.h.b16 %v52
  %v222 = vunpack.c.l.b16 %v53
  %v223 = vunpack.c.h.b16 %v53
  %v224 = vunpack.c.l.b16 %v54
  %v225 = vunpack.c.l.b16 %v55
  %v226 = vunpack.c.h.b16 %v55
  %v227 = vunpack.c.l.b16 %v56
  %v228 = vunpack.c.h.b16 %v56
  %v229 = vunpack.c.l.b16 %v57
  %v230 = vunpack.c.l.b16 %v58
  %v231 = vunpack.c.h.b16 %v58
  %v232 = vunpack.c.l.b16 %v59
  %v233 = vunpack.c.h.b16 %v59
  %v234 = vunpack.c.l.b16 %v60
  %v235 = vunpack.c.l.b16 %v61
  %v236 = vunpack.c.h.b16 %v61
  %v237 = vunpack.c.l.b16 %v62
  %v238 = vunpack.c.h.b16 %v62
  %v239 = vunpack.c.l.b16 %v63
  %v240 = vunpack.c.l.b16 %v64
  %v241 = vunpack.c.h.b16 %v64
  %v242 = vunpack.c.l.b16 %v65
  %v243 = vunpack.c.h.b16 %v65
  %v244 = vunpack.c.l.b16 %v66
  %v245 = vunpack.c.l.b16 %v67
  %v246 = vunpack.c.h.b16 %v67
  %v247 = vunpack.c.l.b16 %v68
  %v248 = vunpack.c.h.b16 %v68
  %v249 = vunpack.c.l.b16 %v69
  %v250 = vunpack.c.l.b16 %v70
  %v251 = vunpack.c.h.b16 %v70
  %v252 = vunpack.c.l.b16 %v71
  %v253 = vunpack.c.h.b16 %v71
  %v254 = vunpack.c.l.b16 %v72
  %v255 = vunpack.c.l.b16 %v73
  %v256 = vunpack.c.h.b16 %v73
  %v257 = vunpack.c.l.b16 %v74
  %v258 = vunpack.c.h.b16 %v74
  %v259 = vunpack.c.l.b16 %v75
  %v260 = vunpack.c.l.b16 %v76
  %v261 = vunpack.c.h.b16 %v76
  %v262 = vunpack.c.l.b16 %v77
  %v263 = vunpack.c.h.b16 %v77
  %v264 = vunpack.c.l.b16 %v78
  %v265 = vunpack.c.l.b16 %v79
  %v266 = vunpack.c.h.b16 %v79
  %v267 = vunpack.c.l.b16 %v80
  %v268 = vunpack.c.h.b16 %v80
  %v269 = vunpack.c.l.b16 %v81
  %v270 = vunpack.c.l.b16 %v82
  %v271 = vunpack.c.h.b16 %v82
  %v272 = vunpack.c.l.b16 %v83
  %v273 = vunpack.c.h.b16 %v83
  %v274 = vunpack.c.l.b16 %v84
  %v275 = vunpack.c.l.b16 %v85
  %v276 = vunpack.c.h.b16 %v85
  %v277 = vunpack.c.l.b16 %v86
  %v278 = vunpack.c.h.b16 %v86
  %v279 = vunpack.c.l.b16 %v87
  %v280 = vpack.c.b16 %v215, %v210
  %v281 = vpack.c.b16 %v216, %v211
  %v282 = vpack.c.b16 %v217, %v212
  %v283 = vpack.c.b16 %v218, %v213
  %v284 = vpack.c.b16 %v219, %v214
  %v285 = vpack.c.b16 %v225, %v220
  %v286 = vpack.c.b16 %v226, %v221
  %v287 = vpack.c.b16 %v227, %v222
  %v288 = vpack.c.b16 %v228, %v223
  %v289 = vpack.c.b16 %v229, %v224
  %v290 = vpack.c.b16 %v235, %v230
  %v291 = vpack.c.b16 %v236, %v231
  %v292 = vpack.c.b16 %v237, %v232
  %v293 = vpack.c.b16 %v238, %v233
  %v294 = vpack.c.b16 %v239, %v234
  %v295 = vpack.c.b16 %v245, %v240
  %v296 = vpack.c.b16 %v246, %v241
  %v297 = vpack.c.b16 %v247, %v242
  %v298 = vpack.c.b16 %v248, %v243
  %v299 = vpack.c.b16 %v249, %v244
  %v300 = vpack.c.b16 %v255, %v250
  %v301 = vpack.c.b16 %v256, %v251
  %v302 = vpack.c.b16 %v257, %v252
  %v303 = vpack.c.b16 %v258, %v253
  %v304 = vpack.c.b16 %v259, %v254
  %v305 = vpack.c.b16 %v265, %v260
  %v306 = vpack.c.b16 %v266, %v261
  %v307 = vpack.c.b16 %v267, %v262
  %v308 = vpack.c.b16 %v268, %v263
  %v309 = vpack.c.b16 %v269, %v264
  %v310 = vpack.c.b16 %v275, %v270
  %v311 = vpack.c.b16 %v276, %v271
  %v312 = vpack.c.b16 %v277, %v272
  %v313 = vpack.c.b16 %v278, %v273
  %v314 = vpack.c.b16 %v279, %v274
  %v430 = vunpack.c.l.b16 %v88
  %v431 = vunpack.c.l.b16 %v89
  %v432 = vunpack.c.l.b16 %v90
  %v433 = vunpack.c.l.b16 %v91
  %v434 = vunpack.c.l.b16 %v92
  %v435 = vunpack.c.l.b16 %v93
  %v436 = vunpack.c.l.b16 %v94
  %v437 = vunpack.c.l.b16 %v95
  %v438 = vunpack.c.l.b16 %v96
  %v439 = vunpack.c.l.b16 %v97
  %v440 = vunpack.c.l.b16 %v98
  %v441 = vunpack.c.l.b16 %v99
  %v442 = vunpack.c.l.b16 %v100
  %v443 = vunpack.c.l.b16 %v101
  %v444 = vunpack.c.l.b16 %v102
  %v445 = vunpack.c.l.b16 %v103
  %v446 = vunpack.c.l.b16 %v104
  %v447 = vunpack.c.l.b16 %v105
  %v448 = vunpack.c.l.b16 %v106
  %v449 = vunpack.c.l.b16 %v107
  %v450 = vunpack.c.l.b16 %v108
  %v451 = vunpack.c.l.b16 %v109
  %v452 = vunpack.c.l.b16 %v110
  %v453 = vunpack.c.l.b16 %v111
  %v454 = vunpack.c.l.b16 %v112
  %v455 = vunpack.c.l.b16 %v113
  %v456 = vunpack.c.l.b16 %v114
  %v457 = vunpack.c.l.b16 %v115
  %v458 = vunpack.c.l.b16 %v116
  %v459 = vunpack.c.l.b16 %v117
  %v460 = vunpack.c.l.b16 %v118
  %v461 = vunpack.c.l.b16 %v119
  %v462 = vunpack.c.l.b16 %v120
  %v463 = vunpack.c.l.b16 %v121
  %v464 = vunpack.c.l.b16 %v122
  %v465 = vunpack.c.l.b16 %v123
  %v466 = vunpack.c.l.b16 %v124
  %v467 = vunpack.c.l.b16 %v125
  %v468 = vunpack.c.l.b16 %v126
  %v469 = vunpack.c.l.b16 %v127
  %v470 = vunpack.c.l.b16 %v128
  %v471 = vunpack.c.l.b16 %v129
  %v472 = vunpack.c.l.b16 %v130
  %v473 = vunpack.c.l.b16 %v131
  %v474 = vunpack.c.l.b16 %v132
  %v475 = vunpack.c.l.b16 %v133
  %v476 = vunpack.c.l.b16 %v134
  %v477 = vunpack.c.l.b16 %v135
  %v478 = vunpack.c.l.b16 %v136
  %v479 = vunpack.c.l.b16 %v137
  %v480 = vunpack.c.l.b16 %v138
  %v481 = vunpack.c.l.b16 %v139
  %v482 = vunpack.c.l.b16 %v140
  %v483 = vunpack.c.l.b16 %v141
  %v484 = vunpack.c.l.b16 %v142
  %v485 = vunpack.c.l.b16 %v143
  %v486 = vunpack.c.l.b16 %v144
  %v487 = vunpack.c.l.b16 %v145
  %v488 = vunpack.c.l.b16 %v146
  %v489 = vunpack.c.l.b16 %v147
  %v490 = vunpack.c.l.b16 %v148
  %v491 = vunpack.c.l.b16 %v149
  %v492 = vunpack.c.l.b16 %v150
  %v493 = vunpack.c.l.b16 %v151
  %v494 = vunpack.c.l.b16 %v152
  %v495 = vunpack.c.l.b16 %v153
  %v496 = vunpack.c.l.b16 %v154
  %v497 = vunpack.c.l.b16 %v155
  %v498 = vunpack.c.l.b16 %v156
  %v499 = vunpack.c.l.b16 %v157
  %v500 = vunpack.c.l.b16 %v158
  %v501 = vunpack.c.l.b16 %v159
  %v502 = vunpack.c.l.b16 %v160
  %v503 = vunpack.c.l.b16 %v161
  %v504 = vunpack.c.l.b16 %v162
  %v505 = vunpack.c.l.b16 %v163
  %v506 = vunpack.c.l.b16 %v164
  %v507 = vunpack.c.l.b16 %v165
  %v508 = vunpack.c.l.b16 %v166
  %v509 = vunpack.c.l.b16 %v167
  %v510 = vpack.c.b16 %v431, %v430
  %v511 = vpack.c.b16 %v433, %v432
  %v512 = vpack.c.b16 %v435, %v434
  %v513 = vpack.c.b16 %v437, %v436
  %v514 = vpack.c.b16 %v439, %v438
  %v515 = vpack.c.b16 %v441, %v440
  %v516 = vpack.c.b16 %v443, %v442
  %v517 = vpack.c.b16 %v445, %v444
  %v518 = vpack.c.b16 %v447, %v446
  %v519 = vpack.c.b16 %v449, %v448
  %v520 = vpack.c.b16 %v451, %v450
  %v521 = vpack.c.b16 %v453, %v452
  %v522 = vpack.c.b16 %v455, %v454
  %v523 = vpack.c.b16 %v457, %v456
  %v524 = vpack.c.b16 %v459, %v458
  %v525 = vpack.c.b16 %v461, %v460
  %v526 = vpack.c.b16 %v463, %v462
  %v527 = vpack.c.b16 %v465, %v464
  %v528 = vpack.c.b16 %v467, %v466
  %v529 = vpack.c.b16 %v469, %v468
  %v530 = vpack.c.b16 %v471, %v470
  %v531 = vpack.c.b16 %v473, %v472
  %v532 = vpack.c.b16 %v475, %v474
  %v533 = vpack.c.b16 %v477, %v476
  %v534 = vpack.c.b16 %v479, %v478
  %v535 = vpack.c.b16 %v481, %v480
  %v536 = vpack.c.b16 %v483, %v482
  %v537 = vpack.c.b16 %v485, %v484
  %v538 = vpack.c.b16 %v487, %v486
  %v539 = vpack.c.b16 %v489, %v488
  %v540 = vpack.c.b16 %v491, %v490
  %v541 = vpack.c.b16 %v493, %v492
  %v542 = vpack.c.b16 %v495, %v494
  %v543 = vpack.c.b16 %v497, %v496
  %v544 = vpack.c.b16 %v499, %v498
  %v545 = vpack.c.b16 %v501, %v500
  %v546 = vpack.c.b16 %v503, %v502
  %v547 = vpack.c.b16 %v505, %v504
  %v548 = vpack.c.b16 %v507, %v506
  %v549 = vpack.c.b16 %v509, %v508
  %590 = vmatpush.bf16.msra.mxu0 %v517
  %591 = vmatpush.bf16.msra.mxu0 %v516
  %592 = vmatpush.bf16.msra.mxu0 %v515
  %593 = vmatpush.bf16.msra.mxu0 %v514
  %594 = vmatpush.bf16.msra.mxu0 %v513
  %595 = vmatpush.bf16.msra.mxu0 %v512
  %596 = vmatpush.bf16.msra.mxu0 %v511
  %597 = vmatpush.bf16.msra.mxu0 %v510
  %598 = vmatmul.bf16.gmra.mxu0 %v280
  %v599 = vpop.f32.mrf.mxu0
  %v600 = vadd.f32 0.0, %v599
  %v601 = vpop.f32.mrf.mxu0
  %v602 = vadd.f32 0.0, %v601
  %603 = vmatmul.bf16.gmra.mxu0 %v285
  %v604 = vpop.f32.mrf.mxu0
  %v605 = vadd.f32 0.0, %v604
  %v606 = vpop.f32.mrf.mxu0
  %v607 = vadd.f32 0.0, %v606
  %608 = vmatmul.bf16.gmra.mxu0 %v290
  %v609 = vpop.f32.mrf.mxu0
  %v610 = vadd.f32 0.0, %v609
  %v611 = vpop.f32.mrf.mxu0
  %v612 = vadd.f32 0.0, %v611
  %613 = vmatmul.bf16.gmra.mxu0 %v295
  %v614 = vpop.f32.mrf.mxu0
  %v615 = vadd.f32 0.0, %v614
  %v616 = vpop.f32.mrf.mxu0
  %v617 = vadd.f32 0.0, %v616
  %618 = vmatmul.bf16.gmra.mxu0 %v300
  %v619 = vpop.f32.mrf.mxu0
  %v620 = vadd.f32 0.0, %v619
  %v621 = vpop.f32.mrf.mxu0
  %v622 = vadd.f32 0.0, %v621
  %623 = vmatmul.bf16.gmra.mxu0 %v305
  %v624 = vpop.f32.mrf.mxu0
  %v625 = vadd.f32 0.0, %v624
  %v626 = vpop.f32.mrf.mxu0
  %v627 = vadd.f32 0.0, %v626
  %628 = vmatmul.bf16.gmra.mxu0 %v310
  %v629 = vpop.f32.mrf.mxu0
  %v630 = vadd.f32 0.0, %v629
  %v631 = vpop.f32.mrf.mxu0
  %v632 = vadd.f32 0.0, %v631
  %633 = vdwg.mxu0
  %634 = vmatpush.bf16.msra.mxu0 %v525
  %635 = vmatpush.bf16.msra.mxu0 %v524
  %636 = vmatpush.bf16.msra.mxu0 %v523
  %637 = vmatpush.bf16.msra.mxu0 %v522
  %638 = vmatpush.bf16.msra.mxu0 %v521
  %639 = vmatpush.bf16.msra.mxu0 %v520
  %640 = vmatpush.bf16.msra.mxu0 %v519
  %641 = vmatpush.bf16.msra.mxu0 %v518
  %642 = vmatmul.bf16.gmra.mxu0 %v281
  %v643 = vpop.f32.mrf.mxu0
  %v644 = vadd.f32 %v600, %v643
  %v645 = vpop.f32.mrf.mxu0
  %v646 = vadd.f32 %v602, %v645
  %647 = vmatmul.bf16.gmra.mxu0 %v286
  %v648 = vpop.f32.mrf.mxu0
  %v649 = vadd.f32 %v605, %v648
  %v650 = vpop.f32.mrf.mxu0
  %v651 = vadd.f32 %v607, %v650
  %652 = vmatmul.bf16.gmra.mxu0 %v291
  %v653 = vpop.f32.mrf.mxu0
  %v654 = vadd.f32 %v610, %v653
  %v655 = vpop.f32.mrf.mxu0
  %v656 = vadd.f32 %v612, %v655
  %657 = vmatmul.bf16.gmra.mxu0 %v296
  %v658 = vpop.f32.mrf.mxu0
  %v659 = vadd.f32 %v615, %v658
  %v660 = vpop.f32.mrf.mxu0
  %v661 = vadd.f32 %v617, %v660
  %662 = vmatmul.bf16.gmra.mxu0 %v301
  %v663 = vpop.f32.mrf.mxu0
  %v664 = vadd.f32 %v620, %v663
  %v665 = vpop.f32.mrf.mxu0
  %v666 = vadd.f32 %v622, %v665
  %667 = vmatmul.bf16.gmra.mxu0 %v306
  %v668 = vpop.f32.mrf.mxu0
  %v669 = vadd.f32 %v625, %v668
  %v670 = vpop.f32.mrf.mxu0
  %v671 = vadd.f32 %v627, %v670
  %672 = vmatmul.bf16.gmra.mxu0 %v311
  %v673 = vpop.f32.mrf.mxu0
  %v674 = vadd.f32 %v630, %v673
  %v675 = vpop.f32.mrf.mxu0
  %v676 = vadd.f32 %v632, %v675
  %677 = vdwg.mxu0
  %678 = vmatpush.bf16.msra.mxu0 %v533
  %679 = vmatpush.bf16.msra.mxu0 %v532
  %680 = vmatpush.bf16.msra.mxu0 %v531
  %681 = vmatpush.bf16.msra.mxu0 %v530
  %682 = vmatpush.bf16.msra.mxu0 %v529
  %683 = vmatpush.bf16.msra.mxu0 %v528
  %684 = vmatpush.bf16.msra.mxu0 %v527
  %685 = vmatpush.bf16.msra.mxu0 %v526
  %686 = vmatmul.bf16.gmra.mxu0 %v282
  %v687 = vpop.f32.mrf.mxu0
  %v688 = vadd.f32 %v644, %v687
  %v689 = vpop.f32.mrf.mxu0
  %v690 = vadd.f32 %v646, %v689
  %691 = vmatmul.bf16.gmra.mxu0 %v287
  %v692 = vpop.f32.mrf.mxu0
  %v693 = vadd.f32 %v649, %v692
  %v694 = vpop.f32.mrf.mxu0
  %v695 = vadd.f32 %v651, %v694
  %696 = vmatmul.bf16.gmra.mxu0 %v292
  %v697 = vpop.f32.mrf.mxu0
  %v698 = vadd.f32 %v654, %v697
  %v699 = vpop.f32.mrf.mxu0
  %v700 = vadd.f32 %v656, %v699
  %701 = vmatmul.bf16.gmra.mxu0 %v297
  %v702 = vpop.f32.mrf.mxu0
  %v703 = vadd.f32 %v659, %v702
  %v704 = vpop.f32.mrf.mxu0
  %v705 = vadd.f32 %v661, %v704
  %706 = vmatmul.bf16.gmra.mxu0 %v302
  %v707 = vpop.f32.mrf.mxu0
  %v708 = vadd.f32 %v664, %v707
  %v709 = vpop.f32.mrf.mxu0
  %v710 = vadd.f32 %v666, %v709
  %711 = vmatmul.bf16.gmra.mxu0 %v307
  %v712 = vpop.f32.mrf.mxu0
  %v713 = vadd.f32 %v669, %v712
  %v714 = vpop.f32.mrf.mxu0
  %v715 = vadd.f32 %v671, %v714
  %716 = vmatmul.bf16.gmra.mxu0 %v312
  %v717 = vpop.f32.mrf.mxu0
  %v718 = vadd.f32 %v674, %v717
  %v719 = vpop.f32.mrf.mxu0
  %v720 = vadd.f32 %v676, %v719
  %721 = vdwg.mxu0
  %722 = vmatpush.bf16.msra.mxu0 %v541
  %723 = vmatpush.bf16.msra.mxu0 %v540
  %724 = vmatpush.bf16.msra.mxu0 %v539
  %725 = vmatpush.bf16.msra.mxu0 %v538
  %726 = vmatpush.bf16.msra.mxu0 %v537
  %727 = vmatpush.bf16.msra.mxu0 %v536
  %728 = vmatpush.bf16.msra.mxu0 %v535
  %729 = vmatpush.bf16.msra.mxu0 %v534
  %730 = vmatmul.bf16.gmra.mxu0 %v283
  %v731 = vpop.f32.mrf.mxu0
  %v732 = vadd.f32 %v688, %v731
  %v733 = vpop.f32.mrf.mxu0
  %v734 = vadd.f32 %v690, %v733
  %735 = vmatmul.bf16.gmra.mxu0 %v288
  %v736 = vpop.f32.mrf.mxu0
  %v737 = vadd.f32 %v693, %v736
  %v738 = vpop.f32.mrf.mxu0
  %v739 = vadd.f32 %v695, %v738
  %740 = vmatmul.bf16.gmra.mxu0 %v293
  %v741 = vpop.f32.mrf.mxu0
  %v742 = vadd.f32 %v698, %v741
  %v743 = vpop.f32.mrf.mxu0
  %v744 = vadd.f32 %v700, %v743
  %745 = vmatmul.bf16.gmra.mxu0 %v298
  %v746 = vpop.f32.mrf.mxu0
  %v747 = vadd.f32 %v703, %v746
  %v748 = vpop.f32.mrf.mxu0
  %v749 = vadd.f32 %v705, %v748
  %750 = vmatmul.bf16.gmra.mxu0 %v303
  %v751 = vpop.f32.mrf.mxu0
  %v752 = vadd.f32 %v708, %v751
  %v753 = vpop.f32.mrf.mxu0
  %v754 = vadd.f32 %v710, %v753
  %755 = vmatmul.bf16.gmra.mxu0 %v308
  %v756 = vpop.f32.mrf.mxu0
  %v757 = vadd.f32 %v713, %v756
  %v758 = vpop.f32.mrf.mxu0
  %v759 = vadd.f32 %v715, %v758
  %760 = vmatmul.bf16.gmra.mxu0 %v313
  %v761 = vpop.f32.mrf.mxu0
  %v762 = vadd.f32 %v718, %v761
  %v763 = vpop.f32.mrf.mxu0
  %v764 = vadd.f32 %v720, %v763
  %765 = vdwg.mxu0
  %766 = vmatpush.bf16.msra.mxu0 %v549
  %767 = vmatpush.bf16.msra.mxu0 %v548
  %768 = vmatpush.bf16.msra.mxu0 %v547
  %769 = vmatpush.bf16.msra.mxu0 %v546
  %770 = vmatpush.bf16.msra.mxu0 %v545
  %771 = vmatpush.bf16.msra.mxu0 %v544
  %772 = vmatpush.bf16.msra.mxu0 %v543
  %773 = vmatpush.bf16.msra.mxu0 %v542
  %774 = vmatmul.bf16.gmra.mxu0 %v284
  %v775 = vpop.f32.mrf.mxu0
  %v776 = vadd.f32 %v732, %v775
  %v777 = vpop.f32.mrf.mxu0
  %v778 = vadd.f32 %v734, %v777
  %779 = vmatmul.bf16.gmra.mxu0 %v289
  %v780 = vpop.f32.mrf.mxu0
  %v781 = vadd.f32 %v737, %v780
  %v782 = vpop.f32.mrf.mxu0
  %v783 = vadd.f32 %v739, %v782
  %784 = vmatmul.bf16.gmra.mxu0 %v294
  %v785 = vpop.f32.mrf.mxu0
  %v786 = vadd.f32 %v742, %v785
  %v787 = vpop.f32.mrf.mxu0
  %v788 = vadd.f32 %v744, %v787
  %789 = vmatmul.bf16.gmra.mxu0 %v299
  %v790 = vpop.f32.mrf.mxu0
  %v791 = vadd.f32 %v747, %v790
  %v792 = vpop.f32.mrf.mxu0
  %v793 = vadd.f32 %v749, %v792
  %794 = vmatmul.bf16.gmra.mxu0 %v304
  %v795 = vpop.f32.mrf.mxu0
  %v796 = vadd.f32 %v752, %v795
  %v797 = vpop.f32.mrf.mxu0
  %v798 = vadd.f32 %v754, %v797
  %799 = vmatmul.bf16.gmra.mxu0 %v309
  %v800 = vpop.f32.mrf.mxu0
  %v801 = vadd.f32 %v757, %v800
  %v802 = vpop.f32.mrf.mxu0
  %v803 = vadd.f32 %v759, %v802
  %804 = vmatmul.bf16.gmra.mxu0 %v314
  %v805 = vpop.f32.mrf.mxu0
  %v806 = vadd.f32 %v762, %v805
  %v807 = vpop.f32.mrf.mxu0
  %v808 = vadd.f32 %v764, %v807
  %809 = vdwg.mxu0
  %v810 = vadd.f32 %v32, %v776
  %v811 = vadd.f32 %v33, %v778
  %v812 = vadd.f32 %v34, %v781
  %v813 = vadd.f32 %v35, %v783
  %v814 = vadd.f32 %v36, %v786
  %v815 = vadd.f32 %v37, %v788
  %v816 = vadd.f32 %v38, %v791
  %v817 = vadd.f32 %v39, %v793
  %v818 = vadd.f32 %v40, %v796
  %v819 = vadd.f32 %v41, %v798
  %v820 = vadd.f32 %v42, %v801
  %v821 = vadd.f32 %v43, %v803
  %v822 = vadd.f32 %v44, %v806
  %v823 = vadd.f32 %v45, %v808
  %824 = vst [vmem:[#allocation2] sm:$0xff] %v810
  %825 = vst [vmem:[#allocation2 + $0x8] sm:$0xff] %v811
  %826 = vst [vmem:[#allocation2 + $0x10] sm:$0xff] %v812
  %827 = vst [vmem:[#allocation2 + $0x18] sm:$0xff] %v813
  %828 = vst [vmem:[#allocation2 + $0x20] sm:$0xff] %v814
  %829 = vst [vmem:[#allocation2 + $0x28] sm:$0xff] %v815
  %830 = vst [vmem:[#allocation2 + $0x30] sm:$0xff] %v816
  %831 = vst [vmem:[#allocation2 + $0x38] sm:$0xff] %v817
  %832 = vst [vmem:[#allocation2 + $0x40] sm:$0xff] %v818
  %833 = vst [vmem:[#allocation2 + $0x48] sm:$0xff] %v819
  %834 = vst [vmem:[#allocation2 + $0x50] sm:$0xff] %v820
  %835 = vst [vmem:[#allocation2 + $0x58] sm:$0xff] %v821
  %836 = vst [vmem:[#allocation2 + $0x60] sm:$0xff] %v822
  %837 = vst [vmem:[#allocation2 + $0x68] sm:$0xff] %v823
  // Predicated region
  $region18: #{dqn_forward.7} parent=0 // pred_check
    %p838 = pneg %p14
  $region19: #{dqn_forward.7} parent=0 // pred_check_branch
    %840 = sbr.rel (%p838) target = $region21
  $region20: #{dqn_forward.7} parent=0 // pred_region
    %v841 = vld [vmem:[#allocation2] sm:$0xff]
    %v842 = vld [vmem:[#allocation2 + $0x8] sm:$0xff]
    %v843 = vld [vmem:[#allocation2 + $0x10] sm:$0xff]
    %v844 = vld [vmem:[#allocation2 + $0x18] sm:$0xff]
    %v845 = vld [vmem:[#allocation2 + $0x20] sm:$0xff]
    %v846 = vld [vmem:[#allocation2 + $0x28] sm:$0xff]
    %v847 = vld [vmem:[#allocation2 + $0x30] sm:$0xff]
    %v848 = vld [vmem:[#allocation2 + $0x38] sm:$0xff]
    %v849 = vld [vmem:[#allocation2 + $0x40] sm:$0xff]
    %v850 = vld [vmem:[#allocation2 + $0x48] sm:$0xff]
    %v851 = vld [vmem:[#allocation2 + $0x50] sm:$0xff]
    %v852 = vld [vmem:[#allocation2 + $0x58] sm:$0xff]
    %v853 = vld [vmem:[#allocation2 + $0x60] sm:$0xff]
    %v854 = vld [vmem:[#allocation2 + $0x68] sm:$0xff]
    %v855 = vld [vmem:[%s2] sm:$0x1]
    %v857 = vperm.slane %v855, 0
    %v859 = vadd.f32 %v841, %v857
    %v860 = vadd.f32 %v842, %v857
    %v861 = vadd.f32 %v843, %v857
    %v862 = vadd.f32 %v844, %v857
    %v863 = vadd.f32 %v845, %v857
    %v864 = vadd.f32 %v846, %v857
    %v865 = vadd.f32 %v847, %v857
    %v866 = vadd.f32 %v848, %v857
    %v867 = vadd.f32 %v849, %v857
    %v868 = vadd.f32 %v850, %v857
    %v869 = vadd.f32 %v851, %v857
    %v870 = vadd.f32 %v852, %v857
    %v871 = vadd.f32 %v853, %v857
    %v872 = vadd.f32 %v854, %v857
    %v873 = vmax.f32 %v859, 0.0
    %v874 = vmax.f32 %v860, 0.0
    %v875 = vmax.f32 %v861, 0.0
    %v876 = vmax.f32 %v862, 0.0
    %v877 = vmax.f32 %v863, 0.0
    %v878 = vmax.f32 %v864, 0.0
    %v879 = vmax.f32 %v865, 0.0
    %v880 = vmax.f32 %v866, 0.0
    %v881 = vmax.f32 %v867, 0.0
    %v882 = vmax.f32 %v868, 0.0
    %v883 = vmax.f32 %v869, 0.0
    %v884 = vmax.f32 %v870, 0.0
    %v885 = vmax.f32 %v871, 0.0
    %v886 = vmax.f32 %v872, 0.0
    %v887 = vpack.c.bf16 %v873, %v873
    %v888 = vpack.c.bf16 %v874, %v874
    %v889 = vpack.c.bf16 %v875, %v875
    %v890 = vpack.c.bf16 %v876, %v876
    %v891 = vpack.c.bf16 %v877, %v877
    %v892 = vpack.c.bf16 %v878, %v878
    %v893 = vpack.c.bf16 %v879, %v879
    %v894 = vpack.c.bf16 %v880, %v880
    %v895 = vpack.c.bf16 %v881, %v881
    %v896 = vpack.c.bf16 %v882, %v882
    %v897 = vpack.c.bf16 %v883, %v883
    %v898 = vpack.c.bf16 %v884, %v884
    %v899 = vpack.c.bf16 %v885, %v885
    %v900 = vpack.c.bf16 %v886, %v886
    %901 = vst [vmem:[%s3] sm:$0xf] %v887
    %902 = vst [vmem:[%s3 + $0x4] sm:$0xf] %v888
    %903 = vst [vmem:[%s3 + $0x8] sm:$0xf] %v889
    %904 = vst [vmem:[%s3 + $0xc] sm:$0xf] %v890
    %905 = vst [vmem:[%s3 + $0x10] sm:$0xf] %v891
    %906 = vst [vmem:[%s3 + $0x14] sm:$0xf] %v892
    %907 = vst [vmem:[%s3 + $0x18] sm:$0xf] %v893
    %908 = vst [vmem:[%s3 + $0x1c] sm:$0xf] %v894
    %909 = vst [vmem:[%s3 + $0x20] sm:$0xf] %v895
    %910 = vst [vmem:[%s3 + $0x24] sm:$0xf] %v896
    %911 = vst [vmem:[%s3 + $0x28] sm:$0xf] %v897
    %912 = vst [vmem:[%s3 + $0x2c] sm:$0xf] %v898
    %913 = vst [vmem:[%s3 + $0x30] sm:$0xf] %v899
    %914 = vst [vmem:[%s3 + $0x34] sm:$0xf] %v900
  $region21: #{dqn_forward.7} parent=0 // pred_fallthru
    _
  // Predicated region
  $region22: #{dqn_forward.7} parent=0 // pred_check
    _
  $region23: #{dqn_forward.7} parent=0 // pred_check_branch
    %916 = sbr.rel (0) target = $region25
  $region24: #{dqn_forward.7} parent=0 // pred_region
    _
  $region25: #{dqn_forward.7} parent=0 // pred_fallthru
    _
  // Predicated region
  $region26: #{dqn_forward.7} parent=0 // pred_check
    _
  $region27: #{dqn_forward.7} parent=0 // pred_check_branch
    %918 = sbr.rel (0) target = $region29
  $region28: #{dqn_forward.7} parent=0 // pred_region
    _
  $region29: #{dqn_forward.7} parent=0 // pred_fallthru
    _

// kernel: dqn_forward.8
$region0: #{dqn_forward.8}
  #allocation0 [shape = 'u32[]', space=smem, size = 0x4, offset = 0x4, fixed_abs, tag = 'smem constant byte address 0x4 - core index']
  #allocation1 [shape = 'u32[72,128]{1,0:T(1,128)}', space=vmem, size = 0x9000, scoped, tag = 'internal scratch']
  #allocation2 [shape = 'f32[16,256]{1,0:T(8,128)}', space=vmem, size = 0x4000, scoped, tag = 'scratch operand']
  %s0 = inlined_call_operand.vmem [shape: bf16[16,3200], index: 0, kind: input, shape index: {}]
  %s1 = inlined_call_operand.vmem [shape: bf16[3200,512], index: 1, kind: input, shape index: {}]
  %s2 = inlined_call_operand.vmem [shape: f32[1,512], index: 2, kind: input, shape index: {}]
  %s3 = inlined_call_operand.vmem [shape: bf16[16,512], index: 3, kind: output, shape index: {}]
  %s4 = sld [smem:[#allocation0]]
  $region151: #{dqn_forward.8} parent=0
    _
  %s6 = ssub.s32 1, %s4
  %s7 = scalar_select 0, %s6, %s4
  $region1: #{dqn_forward.8} parent=0
    #allocation3 [shape = 'u8[40960]{0}', space=vmem, size = 0xa000, scoped, tag = 'input window, operand 0']
    #allocation4 [shape = 'u8[655360]{0}', space=vmem, size = 0xa0000, scoped, tag = 'input window, operand 1']
    #allocation5 [shape = 'u8[16384]{0}', space=vmem, size = 0x4000, scoped, tag = 'output window, operand 0']
    loop: start=0, step=1, limit=12
    $region2: #{dqn_forward.8} parent=1 // loop_pre_header
      _
    $region3: #{dqn_forward.8} parent=1 // loop_header
      %s9 = sphi 0, %s13
      %p10 = scmp.ge.s32.totalorder %s9, 12
      %s16 = sphi 0, %s35
      %s17 = sphi 0, %s31
      %s18 = sphi 0, %s27
      %s19 = sphi 0, %s16
      %s20 = sphi 0, %s17
      %s21 = sphi 0, %s18
      %s22 = sphi 0, %s19
      %s23 = sphi 0, %s20
      %s24 = sphi 0, %s21
      %s40 = sphi 0, %s42
      %s43 = sphi 0, %s40
      %s44 = sphi 0, %s43
      %s60 = sphi 0, %s44
      %s68 = sphi 0, %s70
      %s71 = sphi 0, %s68
      %s72 = sphi 0, %s71
      %s88 = sphi 0, %s72
      %s94 = sphi 0, %s96
      %s97 = sphi 0, %s94
      %s98 = sphi 0, %s97
      %s114 = sphi 0, %s98
      %s122 = sphi 0, %s124
      %s125 = sphi 0, %s122
      %s126 = sphi 0, %s125
      %s142 = sphi 0, %s126
    $region4: #{dqn_forward.8} parent=1 // loop_header_branch
      %12 = sbr.rel (%p10) target = $region8
    $region5: #{dqn_forward.8} parent=1 // loop_body
      %s14 = ssub.s32 %s9, 1
      %s15 = ssub.s32 %s9, 2
      %s25 = sadd.s32 1, %s18
      %p26 = scmp.ge.s32.totalorder %s25, 5
      %s27 = scalar_select %p26, 0, %s25
      %s28 = sadd.s32 1, %s17
      %s29 = scalar_select %p26, %s28, %s17
      %p30 = scmp.ge.s32.totalorder %s29, 2
      %s31 = scalar_select %p30, 0, %s29
      %s32 = sadd.s32 1, %s16
      %s33 = scalar_select %p30, %s32, %s16
      %p34 = scmp.ge.s32.totalorder %s33, 1
      %s35 = scalar_select %p34, 0, %s33
      %s36 = ssub.s32 %s16, %s35
      %s37 = ssub.s32 %s18, %s27
      %s38 = sor.u32 %s36, %s37
      %p39 = scmp.eq.s32.totalorder %s38, 0
      %s41 = sadd.s32 %s40, 1
      %s42 = scalar_select %p39, %s40, %s41
      %p45 = pneg %p39
      %p46 = scmp.eq.s32.totalorder %s9, 9
      %p47 = por %p45, %p46
      %p48 = scmp.ne.s32.totalorder %s40, %s43
      %p49 = scmp.eq.s32.totalorder %s9, 0
      %p50 = por %p48, %p49
      %p51 = scmp.ne.s32.totalorder %s40, %s43
      %p52 = scmp.eq.s32.totalorder %s14, 9
      %p53 = por %p51, %p52
      %p54 = scmp.ne.s32.totalorder %s43, %s44
      %p55 = scmp.eq.s32.totalorder %s14, 0
      %p56 = por %p54, %p55
      %p57 = scmp.ne.s32.totalorder %s43, %s44
      %p58 = scmp.eq.s32.totalorder %s15, 9
      %p59 = por %p57, %p58
      %p61 = scmp.ne.s32.totalorder %s44, %s60
      %p62 = scmp.eq.s32.totalorder %s15, 0
      %p63 = por %p61, %p62
      %s64 = ssub.s32 %s18, %s27
      %s65 = ssub.s32 %s17, %s31
      %s66 = sor.u32 %s64, %s65
      %p67 = scmp.eq.s32.totalorder %s66, 0
      %s69 = sadd.s32 %s68, 1
      %s70 = scalar_select %p67, %s68, %s69
      %p73 = pneg %p67
      %p74 = scmp.eq.s32.totalorder %s9, 9
      %p75 = por %p73, %p74
      %p76 = scmp.ne.s32.totalorder %s68, %s71
      %p77 = scmp.eq.s32.totalorder %s9, 0
      %p78 = por %p76, %p77
      %p79 = scmp.ne.s32.totalorder %s68, %s71
      %p80 = scmp.eq.s32.totalorder %s14, 9
      %p81 = por %p79, %p80
      %p82 = scmp.ne.s32.totalorder %s71, %s72
      %p83 = scmp.eq.s32.totalorder %s14, 0
      %p84 = por %p82, %p83
      %p85 = scmp.ne.s32.totalorder %s71, %s72
      %p86 = scmp.eq.s32.totalorder %s15, 9
      %p87 = por %p85, %p86
      %p89 = scmp.ne.s32.totalorder %s72, %s88
      %p90 = scmp.eq.s32.totalorder %s15, 0
      %p91 = por %p89, %p90
      %s92 = ssub.s32 %s17, %s31
      %p93 = scmp.eq.s32.totalorder %s92, 0
      %s95 = sadd.s32 %s94, 1
      %s96 = scalar_select %p93, %s94, %s95
      %p99 = pneg %p93
      %p100 = scmp.eq.s32.totalorder %s9, 9
      %p101 = por %p99, %p100
      %p102 = scmp.ne.s32.totalorder %s94, %s97
      %p103 = scmp.eq.s32.totalorder %s9, 0
      %p104 = por %p102, %p103
      %p105 = scmp.ne.s32.totalorder %s94, %s97
      %p106 = scmp.eq.s32.totalorder %s14, 9
      %p107 = por %p105, %p106
      %p108 = scmp.ne.s32.totalorder %s97, %s98
      %p109 = scmp.eq.s32.totalorder %s14, 0
      %p110 = por %p108, %p109
      %p111 = scmp.ne.s32.totalorder %s97, %s98
      %p112 = scmp.eq.s32.totalorder %s15, 9
      %p113 = por %p111, %p112
      %p115 = scmp.ne.s32.totalorder %s98, %s114
      %p116 = scmp.eq.s32.totalorder %s15, 0
      %p117 = por %p115, %p116
      %s118 = ssub.s32 %s16, %s35
      %s119 = ssub.s32 %s17, %s31
      %s120 = sor.u32 %s118, %s119
      %p121 = scmp.eq.s32.totalorder %s120, 0
      %s123 = sadd.s32 %s122, 1
      %s124 = scalar_select %p121, %s122, %s123
      %p127 = pneg %p121
      %p128 = scmp.eq.s32.totalorder %s9, 9
      %p129 = por %p127, %p128
      %p130 = scmp.ne.s32.totalorder %s122, %s125
      %p131 = scmp.eq.s32.totalorder %s9, 0
      %p132 = por %p130, %p131
      %p133 = scmp.ne.s32.totalorder %s122, %s125
      %p134 = scmp.eq.s32.totalorder %s14, 9
      %p135 = por %p133, %p134
      %p136 = scmp.ne.s32.totalorder %s125, %s126
      %p137 = scmp.eq.s32.totalorder %s14, 0
      %p138 = por %p136, %p137
      %p139 = scmp.ne.s32.totalorder %s125, %s126
      %p140 = scmp.eq.s32.totalorder %s15, 9
      %p141 = por %p139, %p140
      %p143 = scmp.ne.s32.totalorder %s126, %s142
      %p144 = scmp.eq.s32.totalorder %s15, 0
      %p145 = por %p143, %p144
      %p146 = scmp.le.s32.totalorder 1, %s9
      %p147 = scmp.lt.s32.totalorder %s9, 11
      %p148 = pnand %p146, %p147
      %p149 = pneg %p148
      // Predicated region
      $region9: #{dqn_forward.8} parent=5 // pred_check
        _
      $region10: #{dqn_forward.8} parent=5 // pred_check_branch
        %151 = sbr.rel (%p148) target = $region12
      $region11: #{dqn_forward.8} parent=5 // pred_region
        %s152 = ssub.s32 %s9, 1
      $region12: #{dqn_forward.8} parent=5 // pred_fallthru
        _
      %p153 = scmp.lt.s32.totalorder %s9, 10
      // Predicated region
      $region13: #{dqn_forward.8} parent=5 // pred_check
        %p154 = pneg %p153
      $region14: #{dqn_forward.8} parent=5 // pred_check_branch
        %156 = sbr.rel (%p154) target = $region16
      $region15: #{dqn_forward.8} parent=5 // pred_region
        // Predicated region
        $region17: #{dqn_forward.8} parent=15 // pred_check
          %p157 = pneg %p50
        $region18: #{dqn_forward.8} parent=15 // pred_check_branch
          %159 = sbr.rel (%p157) target = $region20
        $region19: #{dqn_forward.8} parent=15 // pred_region
          %s160 = sand.u32 %s40, 1
          %s161 = sand.u32 %s40, 1
          %s162 = smul.addr %s161, 40
          %s163 = scalar_lea.vmem [#allocation3], %s162
          %s164 = smul.u32 2, %s16
          %s165 = smul.u32 5, %s18
          %s166 = smul.addr %s164, 25
          %s167 = sadd.s32 %s165, %s166
          %s168 = smul.addr %s167, 4
          %s169 = scalar_lea.vmem %s0, %s168
          // Predicated region
          $region21: #{dqn_forward.8} parent=19 // pred_check
            _
          $region22: #{dqn_forward.8} parent=19 // pred_check_branch
            %171 = sbr.rel (0) target = $region24
          $region23: #{dqn_forward.8} parent=19 // pred_region
            // Predicated region
            $region25: #{dqn_forward.8} parent=23 // pred_check
              _
            $region26: #{dqn_forward.8} parent=23 // pred_check_branch
              %173 = sbr.rel (0) target = $region28
            $region27: #{dqn_forward.8} parent=23 // pred_region
              %s174 = scalar_lea.vmem %s169, 16
              %s175 = scalar_lea.vmem %s163, 16 [#allocation3]
              loop: start=0, step=1, limit=1
              $region29: #{dqn_forward.8} parent=27 // loop_pre_header
                _
              $region30: #{dqn_forward.8} parent=27 // loop_header
                %s177 = sphi 0, %s181
                %p178 = scmp.ge.s32.totalorder %s177, 1
                %s182 = sphi %s169, %s169
                %s183 = sphi %s163, %s163
              $region31: #{dqn_forward.8} parent=27 // loop_header_branch
                %180 = sbr.rel (%p178) target = $region35
              $region32: #{dqn_forward.8} parent=27 // loop_body
                %v184 = vld [vmem:[%s182] sm:$0xff]
                %185 = vst [vmem:[%s183] sm:$0xff] %v184
                %v186 = vld [vmem:[%s182 + $0x8] sm:$0xff]
                %187 = vst [vmem:[%s183 + $0x8] sm:$0xff] %v186
                %v188 = vld [vmem:[%s182 + $0x64] sm:$0xff]
                %189 = vst [vmem:[%s183 + $0x14] sm:$0xff] %v188
                %v190 = vld [vmem:[%s182 + $0x6c] sm:$0xff]
                %191 = vst [vmem:[%s183 + $0x1c] sm:$0xff] %v190
              $region33: #{dqn_forward.8} parent=27 // loop_footer
                %s181 = sadd.s32 1, %s177
              $region34: #{dqn_forward.8} parent=27 // loop_footer_branch
                %176 = sbr.rel target = $region30
              $region35: #{dqn_forward.8} parent=27 // loop_exit
                _
              %s193 = ssub.s32 16, 1
              loop: start=0, step=1, limit=1
              $region36: #{dqn_forward.8} parent=27 // loop_pre_header
                _
              $region37: #{dqn_forward.8} parent=27 // loop_header
                %s195 = sphi 0, %s199
                %p196 = scmp.ge.s32.totalorder %s195, 1
                %s200 = sphi %s174, %s174
                %s201 = sphi %s175, %s175
              $region38: #{dqn_forward.8} parent=27 // loop_header_branch
                %198 = sbr.rel (%p196) target = $region42
              $region39: #{dqn_forward.8} parent=27 // loop_body
                %v202 = vld [vmem:[%s200] sm:%s193]
                %203 = vst [vmem:[%s201] sm:%s193] %v202
                %v204 = vld [vmem:[%s200 + $0x64] sm:%s193]
                %205 = vst [vmem:[%s201 + $0x14] sm:%s193] %v204
              $region40: #{dqn_forward.8} parent=27 // loop_footer
                %s199 = sadd.s32 1, %s195
              $region41: #{dqn_forward.8} parent=27 // loop_footer_branch
                %194 = sbr.rel target = $region37
              $region42: #{dqn_forward.8} parent=27 // loop_exit
                _
            $region28: #{dqn_forward.8} parent=23 // pred_fallthru
              _
          $region24: #{dqn_forward.8} parent=19 // pred_fallthru
            _
          %206 = vnop
        $region20: #{dqn_forward.8} parent=15 // pred_fallthru
          _
        // Predicated region
        $region43: #{dqn_forward.8} parent=15 // pred_check
          %p207 = pneg %p78
        $region44: #{dqn_forward.8} parent=15 // pred_check_branch
          %209 = sbr.rel (%p207) target = $region46
        $region45: #{dqn_forward.8} parent=15 // pred_region
          %s210 = sand.u32 %s68, 1
          %s211 = sand.u32 %s68, 1
          %s212 = smul.addr %s211, 640
          %s213 = scalar_lea.vmem [#allocation4], %s212
          %s214 = smul.u32 80, %s18
          %s215 = smul.u32 2, %s17
          %s216 = smul.addr %s214, 4
          %s217 = sadd.s32 %s215, %s216
          %s218 = smul.addr %s217, 4
          %s219 = scalar_lea.vmem %s1, %s218
          // Predicated region
          $region47: #{dqn_forward.8} parent=45 // pred_check
            _
          $region48: #{dqn_forward.8} parent=45 // pred_check_branch
            %221 = sbr.rel (0) target = $region50
          $region49: #{dqn_forward.8} parent=45 // pred_region
            // Predicated region
            $region51: #{dqn_forward.8} parent=49 // pred_check
              _
            $region52: #{dqn_forward.8} parent=49 // pred_check_branch
              %223 = sbr.rel (0) target = $region54
            $region53: #{dqn_forward.8} parent=49 // pred_region
              // Predicated region
              $region66: #{dqn_forward.8} parent=53 // pred_check
                _
              $region67: #{dqn_forward.8} parent=53 // pred_check_branch
                %397 = sbr.rel (0) target = $region69
              $region68: #{dqn_forward.8} parent=53 // pred_region
                loop: start=0, step=1, limit=1
                $region70: #{dqn_forward.8} parent=68 // loop_pre_header
                  _
                $region71: #{dqn_forward.8} parent=68 // loop_header
                  %s399 = sphi 0, %s403
                  %p400 = scmp.ge.s32.totalorder %s399, 1
                  %s404 = sphi %s219, %s219
                  %s405 = sphi %s213, %s213
                $region72: #{dqn_forward.8} parent=68 // loop_header_branch
                  %402 = sbr.rel (%p400) target = $region76
                $region73: #{dqn_forward.8} parent=68 // loop_body
                  %v406 = vld [vmem:[%s404] sm:$0xff]
                  %407 = vst [vmem:[%s405] sm:$0xff] %v406
                  %v408 = vld [vmem:[%s404 + $0x10] sm:$0xff]
                  %409 = vst [vmem:[%s405 + $0x8] sm:$0xff] %v408
                  %v410 = vld [vmem:[%s404 + $0x20] sm:$0xff]
                  %411 = vst [vmem:[%s405 + $0x10] sm:$0xff] %v410
                  %v412 = vld [vmem:[%s404 + $0x30] sm:$0xff]
                  %413 = vst [vmem:[%s405 + $0x18] sm:$0xff] %v412
                  %v414 = vld [vmem:[%s404 + $0x40] sm:$0xff]
                  %415 = vst [vmem:[%s405 + $0x20] sm:$0xff] %v414
                  %v416 = vld [vmem:[%s404 + $0x50] sm:$0xff]
                  %417 = vst [vmem:[%s405 + $0x28] sm:$0xff] %v416
                  %v418 = vld [vmem:[%s404 + $0x60] sm:$0xff]
                  %419 = vst [vmem:[%s405 + $0x30] sm:$0xff] %v418
                  %v420 = vld [vmem:[%s404 + $0x70] sm:$0xff]
                  %421 = vst [vmem:[%s405 + $0x38] sm:$0xff] %v420
                  %v422 = vld [vmem:[%s404 + $0x80] sm:$0xff]
                  %423 = vst [vmem:[%s405 + $0x40] sm:$0xff] %v422
                  %v424 = vld [vmem:[%s404 + $0x90] sm:$0xff]
                  %425 = vst [vmem:[%s405 + $0x48] sm:$0xff] %v424
                  %v426 = vld [vmem:[%s404 + $0xa0] sm:$0xff]
                  %427 = vst [vmem:[%s405 + $0x50] sm:$0xff] %v426
                  %v428 = vld [vmem:[%s404 + $0xb0] sm:$0xff]
                  %429 = vst [vmem:[%s405 + $0x58] sm:$0xff] %v428
                  %v430 = vld [vmem:[%s404 + $0xc0] sm:$0xff]
                  %431 = vst [vmem:[%s405 + $0x60] sm:$0xff] %v430
                  %v432 = vld [vmem:[%s404 + $0xd0] sm:$0xff]
                  %433 = vst [vmem:[%s405 + $0x68] sm:$0xff] %v432
                  %v434 = vld [vmem:[%s404 + $0xe0] sm:$0xff]
                  %435 = vst [vmem:[%s405 + $0x70] sm:$0xff] %v434
                  %v436 = vld [vmem:[%s404 + $0xf0] sm:$0xff]
                  %437 = vst [vmem:[%s405 + $0x78] sm:$0xff] %v436
                  %v438 = vld [vmem:[%s404 + $0x100] sm:$0xff]
                  %439 = vst [vmem:[%s405 + $0x80] sm:$0xff] %v438
                  %v440 = vld [vmem:[%s404 + $0x110] sm:$0xff]
                  %441 = vst [vmem:[%s405 + $0x88] sm:$0xff] %v440
                  %v442 = vld [vmem:[%s404 + $0x120] sm:$0xff]
                  %443 = vst [vmem:[%s405 + $0x90] sm:$0xff] %v442
                  %v444 = vld [vmem:[%s404 + $0x130] sm:$0xff]
                  %445 = vst [vmem:[%s405 + $0x98] sm:$0xff] %v444
                  %v446 = vld [vmem:[%s404 + $0x140] sm:$0xff]
                  %447 = vst [vmem:[%s405 + $0xa0] sm:$0xff] %v446
                  %v448 = vld [vmem:[%s404 + $0x150] sm:$0xff]
                  %449 = vst [vmem:[%s405 + $0xa8] sm:$0xff] %v448
                  %v450 = vld [vmem:[%s404 + $0x160] sm:$0xff]
                  %451 = vst [vmem:[%s405 + $0xb0] sm:$0xff] %v450
                  %v452 = vld [vmem:[%s404 + $0x170] sm:$0xff]
                  %453 = vst [vmem:[%s405 + $0xb8] sm:$0xff] %v452
                  %v454 = vld [vmem:[%s404 + $0x180] sm:$0xff]
                  %455 = vst [vmem:[%s405 + $0xc0] sm:$0xff] %v454
                  %v456 = vld [vmem:[%s404 + $0x190] sm:$0xff]
                  %457 = vst [vmem:[%s405 + $0xc8] sm:$0xff] %v456
                  %v458 = vld [vmem:[%s404 + $0x1a0] sm:$0xff]
                  %459 = vst [vmem:[%s405 + $0xd0] sm:$0xff] %v458
                  %v460 = vld [vmem:[%s404 + $0x1b0] sm:$0xff]
                  %461 = vst [vmem:[%s405 + $0xd8] sm:$0xff] %v460
                  %v462 = vld [vmem:[%s404 + $0x1c0] sm:$0xff]
                  %463 = vst [vmem:[%s405 + $0xe0] sm:$0xff] %v462
                  %v464 = vld [vmem:[%s404 + $0x1d0] sm:$0xff]
                  %465 = vst [vmem:[%s405 + $0xe8] sm:$0xff] %v464
                  %v466 = vld [vmem:[%s404 + $0x1e0] sm:$0xff]
                  %467 = vst [vmem:[%s405 + $0xf0] sm:$0xff] %v466
                  %v468 = vld [vmem:[%s404 + $0x1f0] sm:$0xff]
                  %469 = vst [vmem:[%s405 + $0xf8] sm:$0xff] %v468
                  %v470 = vld [vmem:[%s404 + $0x200] sm:$0xff]
                  %471 = vst [vmem:[%s405 + $0x100] sm:$0xff] %v470
                  %v472 = vld [vmem:[%s404 + $0x210] sm:$0xff]
                  %473 = vst [vmem:[%s405 + $0x108] sm:$0xff] %v472
                  %v474 = vld [vmem:[%s404 + $0x220] sm:$0xff]
                  %475 = vst [vmem:[%s405 + $0x110] sm:$0xff] %v474
                  %v476 = vld [vmem:[%s404 + $0x230] sm:$0xff]
                  %477 = vst [vmem:[%s405 + $0x118] sm:$0xff] %v476
                  %v478 = vld [vmem:[%s404 + $0x240] sm:$0xff]
                  %479 = vst [vmem:[%s405 + $0x120] sm:$0xff] %v478
                  %v480 = vld [vmem:[%s404 + $0x250] sm:$0xff]
                  %481 = vst [vmem:[%s405 + $0x128] sm:$0xff] %v480
                  %v482 = vld [vmem:[%s404 + $0x260] sm:$0xff]
                  %483 = vst [vmem:[%s405 + $0x130] sm:$0xff] %v482
                  %v484 = vld [vmem:[%s404 + $0x270] sm:$0xff]
                  %485 = vst [vmem:[%s405 + $0x138] sm:$0xff] %v484
                  %v486 = vld [vmem:[%s404 + $0x280] sm:$0xff]
                  %487 = vst [vmem:[%s405 + $0x140] sm:$0xff] %v486
                  %v488 = vld [vmem:[%s404 + $0x290] sm:$0xff]
                  %489 = vst [vmem:[%s405 + $0x148] sm:$0xff] %v488
                  %v490 = vld [vmem:[%s404 + $0x2a0] sm:$0xff]
                  %491 = vst [vmem:[%s405 + $0x150] sm:$0xff] %v490
                  %v492 = vld [vmem:[%s404 + $0x2b0] sm:$0xff]
                  %493 = vst [vmem:[%s405 + $0x158] sm:$0xff] %v492
                  %v494 = vld [vmem:[%s404 + $0x2c0] sm:$0xff]
                  %495 = vst [vmem:[%s405 + $0x160] sm:$0xff] %v494
                  %v496 = vld [vmem:[%s404 + $0x2d0] sm:$0xff]
                  %497 = vst [vmem:[%s405 + $0x168] sm:$0xff] %v496
                  %v498 = vld [vmem:[%s404 + $0x2e0] sm:$0xff]
                  %499 = vst [vmem:[%s405 + $0x170] sm:$0xff] %v498
                  %v500 = vld [vmem:[%s404 + $0x2f0] sm:$0xff]
                  %501 = vst [vmem:[%s405 + $0x178] sm:$0xff] %v500
                  %v502 = vld [vmem:[%s404 + $0x300] sm:$0xff]
                  %503 = vst [vmem:[%s405 + $0x180] sm:$0xff] %v502
                  %v504 = vld [vmem:[%s404 + $0x310] sm:$0xff]
                  %505 = vst [vmem:[%s405 + $0x188] sm:$0xff] %v504
                  %v506 = vld [vmem:[%s404 + $0x320] sm:$0xff]
                  %507 = vst [vmem:[%s405 + $0x190] sm:$0xff] %v506
                  %v508 = vld [vmem:[%s404 + $0x330] sm:$0xff]
                  %509 = vst [vmem:[%s405 + $0x198] sm:$0xff] %v508
                  %v510 = vld [vmem:[%s404 + $0x340] sm:$0xff]
                  %511 = vst [vmem:[%s405 + $0x1a0] sm:$0xff] %v510
                  %v512 = vld [vmem:[%s404 + $0x350] sm:$0xff]
                  %513 = vst [vmem:[%s405 + $0x1a8] sm:$0xff] %v512
                  %v514 = vld [vmem:[%s404 + $0x360] sm:$0xff]
                  %515 = vst [vmem:[%s405 + $0x1b0] sm:$0xff] %v514
                  %v516 = vld [vmem:[%s404 + $0x370] sm:$0xff]
                  %517 = vst [vmem:[%s405 + $0x1b8] sm:$0xff] %v516
                  %v518 = vld [vmem:[%s404 + $0x380] sm:$0xff]
                  %519 = vst [vmem:[%s405 + $0x1c0] sm:$0xff] %v518
                  %v520 = vld [vmem:[%s404 + $0x390] sm:$0xff]
                  %521 = vst [vmem:[%s405 + $0x1c8] sm:$0xff] %v520
                  %v522 = vld [vmem:[%s404 + $0x3a0] sm:$0xff]
                  %523 = vst [vmem:[%s405 + $0x1d0] sm:$0xff] %v522
                  %v524 = vld [vmem:[%s404 + $0x3b0] sm:$0xff]
                  %525 = vst [vmem:[%s405 + $0x1d8] sm:$0xff] %v524
                  %v526 = vld [vmem:[%s404 + $0x3c0] sm:$0xff]
                  %527 = vst [vmem:[%s405 + $0x1e0] sm:$0xff] %v526
                  %v528 = vld [vmem:[%s404 + $0x3d0] sm:$0xff]
                  %529 = vst [vmem:[%s405 + $0x1e8] sm:$0xff] %v528
                  %v530 = vld [vmem:[%s404 + $0x3e0] sm:$0xff]
                  %531 = vst [vmem:[%s405 + $0x1f0] sm:$0xff] %v530
                  %v532 = vld [vmem:[%s404 + $0x3f0] sm:$0xff]
                  %533 = vst [vmem:[%s405 + $0x1f8] sm:$0xff] %v532
                  %v534 = vld [vmem:[%s404 + $0x400] sm:$0xff]
                  %535 = vst [vmem:[%s405 + $0x200] sm:$0xff] %v534
                  %v536 = vld [vmem:[%s404 + $0x410] sm:$0xff]
                  %537 = vst [vmem:[%s405 + $0x208] sm:$0xff] %v536
                  %v538 = vld [vmem:[%s404 + $0x420] sm:$0xff]
                  %539 = vst [vmem:[%s405 + $0x210] sm:$0xff] %v538
                  %v540 = vld [vmem:[%s404 + $0x430] sm:$0xff]
                  %541 = vst [vmem:[%s405 + $0x218] sm:$0xff] %v540
                  %v542 = vld [vmem:[%s404 + $0x440] sm:$0xff]
                  %543 = vst [vmem:[%s405 + $0x220] sm:$0xff] %v542
                  %v544 = vld [vmem:[%s404 + $0x450] sm:$0xff]
                  %545 = vst [vmem:[%s405 + $0x228] sm:$0xff] %v544
                  %v546 = vld [vmem:[%s404 + $0x460] sm:$0xff]
                  %547 = vst [vmem:[%s405 + $0x230] sm:$0xff] %v546
                  %v548 = vld [vmem:[%s404 + $0x470] sm:$0xff]
                  %549 = vst [vmem:[%s405 + $0x238] sm:$0xff] %v548
                  %v550 = vld [vmem:[%s404 + $0x480] sm:$0xff]
                  %551 = vst [vmem:[%s405 + $0x240] sm:$0xff] %v550
                  %v552 = vld [vmem:[%s404 + $0x490] sm:$0xff]
                  %553 = vst [vmem:[%s405 + $0x248] sm:$0xff] %v552
                  %v554 = vld [vmem:[%s404 + $0x4a0] sm:$0xff]
                  %555 = vst [vmem:[%s405 + $0x250] sm:$0xff] %v554
                  %v556 = vld [vmem:[%s404 + $0x4b0] sm:$0xff]
                  %557 = vst [vmem:[%s405 + $0x258] sm:$0xff] %v556
                  %v558 = vld [vmem:[%s404 + $0x4c0] sm:$0xff]
                  %559 = vst [vmem:[%s405 + $0x260] sm:$0xff] %v558
                  %v560 = vld [vmem:[%s404 + $0x4d0] sm:$0xff]
                  %561 = vst [vmem:[%s405 + $0x268] sm:$0xff] %v560
                  %v562 = vld [vmem:[%s404 + $0x4e0] sm:$0xff]
                  %563 = vst [vmem:[%s405 + $0x270] sm:$0xff] %v562
                  %v564 = vld [vmem:[%s404 + $0x4f0] sm:$0xff]
                  %565 = vst [vmem:[%s405 + $0x278] sm:$0xff] %v564
                $region74: #{dqn_forward.8} parent=68 // loop_footer
                  %s403 = sadd.s32 1, %s399
                $region75: #{dqn_forward.8} parent=68 // loop_footer_branch
                  %398 = sbr.rel target = $region71
                $region76: #{dqn_forward.8} parent=68 // loop_exit
                  _
              $region69: #{dqn_forward.8} parent=53 // pred_fallthru
                _
              // Predicated region
              $region77: #{dqn_forward.8} parent=53 // pred_check
                _
              $region78: #{dqn_forward.8} parent=53 // pred_check_branch
                %567 = sbr.rel target = $region80
              $region79: #{dqn_forward.8} parent=53 // pred_region
                _
              $region80: #{dqn_forward.8} parent=53 // pred_fallthru
                _
            $region54: #{dqn_forward.8} parent=49 // pred_fallthru
              _
            // Predicated region
            $region55: #{dqn_forward.8} parent=49 // pred_check
              _
            $region56: #{dqn_forward.8} parent=49 // pred_check_branch
              %225 = sbr.rel target = $region58
            $region57: #{dqn_forward.8} parent=49 // pred_region
              %s227 = ssub.s32 256, 1
              loop: start=0, step=1, limit=1
              $region59: #{dqn_forward.8} parent=57 // loop_pre_header
                _
              $region60: #{dqn_forward.8} parent=57 // loop_header
                %s229 = sphi 0, %s233
                %p230 = scmp.ge.s32.totalorder %s229, 1
                %s234 = sphi %s219, %s219
                %s235 = sphi %s213, %s213
              $region61: #{dqn_forward.8} parent=57 // loop_header_branch
                %232 = sbr.rel (%p230) target = $region65
              $region62: #{dqn_forward.8} parent=57 // loop_body
                %v236 = vld [vmem:[%s234] sm:%s227]
                %237 = vst [vmem:[%s235] sm:%s227] %v236
                %v238 = vld [vmem:[%s234 + $0x10] sm:%s227]
                %239 = vst [vmem:[%s235 + $0x8] sm:%s227] %v238
                %v240 = vld [vmem:[%s234 + $0x20] sm:%s227]
                %241 = vst [vmem:[%s235 + $0x10] sm:%s227] %v240
                %v242 = vld [vmem:[%s234 + $0x30] sm:%s227]
                %243 = vst [vmem:[%s235 + $0x18] sm:%s227] %v242
                %v244 = vld [vmem:[%s234 + $0x40] sm:%s227]
                %245 = vst [vmem:[%s235 + $0x20] sm:%s227] %v244
                %v246 = vld [vmem:[%s234 + $0x50] sm:%s227]
                %247 = vst [vmem:[%s235 + $0x28] sm:%s227] %v246
                %v248 = vld [vmem:[%s234 + $0x60] sm:%s227]
                %249 = vst [vmem:[%s235 + $0x30] sm:%s227] %v248
                %v250 = vld [vmem:[%s234 + $0x70] sm:%s227]
                %251 = vst [vmem:[%s235 + $0x38] sm:%s227] %v250
                %v252 = vld [vmem:[%s234 + $0x80] sm:%s227]
                %253 = vst [vmem:[%s235 + $0x40] sm:%s227] %v252
                %v254 = vld [vmem:[%s234 + $0x90] sm:%s227]
                %255 = vst [vmem:[%s235 + $0x48] sm:%s227] %v254
                %v256 = vld [vmem:[%s234 + $0xa0] sm:%s227]
                %257 = vst [vmem:[%s235 + $0x50] sm:%s227] %v256
                %v258 = vld [vmem:[%s234 + $0xb0] sm:%s227]
                %259 = vst [vmem:[%s235 + $0x58] sm:%s227] %v258
                %v260 = vld [vmem:[%s234 + $0xc0] sm:%s227]
                %261 = vst [vmem:[%s235 + $0x60] sm:%s227] %v260
                %v262 = vld [vmem:[%s234 + $0xd0] sm:%s227]
                %263 = vst [vmem:[%s235 + $0x68] sm:%s227] %v262
                %v264 = vld [vmem:[%s234 + $0xe0] sm:%s227]
                %265 = vst [vmem:[%s235 + $0x70] sm:%s227] %v264
                %v266 = vld [vmem:[%s234 + $0xf0] sm:%s227]
                %267 = vst [vmem:[%s235 + $0x78] sm:%s227] %v266
                %v268 = vld [vmem:[%s234 + $0x100] sm:%s227]
                %269 = vst [vmem:[%s235 + $0x80] sm:%s227] %v268
                %v270 = vld [vmem:[%s234 + $0x110] sm:%s227]
                %271 = vst [vmem:[%s235 + $0x88] sm:%s227] %v270
                %v272 = vld [vmem:[%s234 + $0x120] sm:%s227]
                %273 = vst [vmem:[%s235 + $0x90] sm:%s227] %v272
                %v274 = vld [vmem:[%s234 + $0x130] sm:%s227]
                %275 = vst [vmem:[%s235 + $0x98] sm:%s227] %v274
                %v276 = vld [vmem:[%s234 + $0x140] sm:%s227]
                %277 = vst [vmem:[%s235 + $0xa0] sm:%s227] %v276
                %v278 = vld [vmem:[%s234 + $0x150] sm:%s227]
                %279 = vst [vmem:[%s235 + $0xa8] sm:%s227] %v278
                %v280 = vld [vmem:[%s234 + $0x160] sm:%s227]
                %281 = vst [vmem:[%s235 + $0xb0] sm:%s227] %v280
                %v282 = vld [vmem:[%s234 + $0x170] sm:%s227]
                %283 = vst [vmem:[%s235 + $0xb8] sm:%s227] %v282
                %v284 = vld [vmem:[%s234 + $0x180] sm:%s227]
                %285 = vst [vmem:[%s235 + $0xc0] sm:%s227] %v284
                %v286 = vld [vmem:[%s234 + $0x190] sm:%s227]
                %287 = vst [vmem:[%s235 + $0xc8] sm:%s227] %v286
                %v288 = vld [vmem:[%s234 + $0x1a0] sm:%s227]
                %289 = vst [vmem:[%s235 + $0xd0] sm:%s227] %v288
                %v290 = vld [vmem:[%s234 + $0x1b0] sm:%s227]
                %291 = vst [vmem:[%s235 + $0xd8] sm:%s227] %v290
                %v292 = vld [vmem:[%s234 + $0x1c0] sm:%s227]
                %293 = vst [vmem:[%s235 + $0xe0] sm:%s227] %v292
                %v294 = vld [vmem:[%s234 + $0x1d0] sm:%s227]
                %295 = vst [vmem:[%s235 + $0xe8] sm:%s227] %v294
                %v296 = vld [vmem:[%s234 + $0x1e0] sm:%s227]
                %297 = vst [vmem:[%s235 + $0xf0] sm:%s227] %v296
                %v298 = vld [vmem:[%s234 + $0x1f0] sm:%s227]
                %299 = vst [vmem:[%s235 + $0xf8] sm:%s227] %v298
                %v300 = vld [vmem:[%s234 + $0x200] sm:%s227]
                %301 = vst [vmem:[%s235 + $0x100] sm:%s227] %v300
                %v302 = vld [vmem:[%s234 + $0x210] sm:%s227]
                %303 = vst [vmem:[%s235 + $0x108] sm:%s227] %v302
                %v304 = vld [vmem:[%s234 + $0x220] sm:%s227]
                %305 = vst [vmem:[%s235 + $0x110] sm:%s227] %v304
                %v306 = vld [vmem:[%s234 + $0x230] sm:%s227]
                %307 = vst [vmem:[%s235 + $0x118] sm:%s227] %v306
                %v308 = vld [vmem:[%s234 + $0x240] sm:%s227]
                %309 = vst [vmem:[%s235 + $0x120] sm:%s227] %v308
                %v310 = vld [vmem:[%s234 + $0x250] sm:%s227]
                %311 = vst [vmem:[%s235 + $0x128] sm:%s227] %v310
                %v312 = vld [vmem:[%s234 + $0x260] sm:%s227]
                %313 = vst [vmem:[%s235 + $0x130] sm:%s227] %v312
                %v314 = vld [vmem:[%s234 + $0x270] sm:%s227]
                %315 = vst [vmem:[%s235 + $0x138] sm:%s227] %v314
                %v316 = vld [vmem:[%s234 + $0x280] sm:%s227]
                %317 = vst [vmem:[%s235 + $0x140] sm:%s227] %v316
                %v318 = vld [vmem:[%s234 + $0x290] sm:%s227]
                %319 = vst [vmem:[%s235 + $0x148] sm:%s227] %v318
                %v320 = vld [vmem:[%s234 + $0x2a0] sm:%s227]
                %321 = vst [vmem:[%s235 + $0x150] sm:%s227] %v320
                %v322 = vld [vmem:[%s234 + $0x2b0] sm:%s227]
                %323 = vst [vmem:[%s235 + $0x158] sm:%s227] %v322
                %v324 = vld [vmem:[%s234 + $0x2c0] sm:%s227]
                %325 = vst [vmem:[%s235 + $0x160] sm:%s227] %v324
                %v326 = vld [vmem:[%s234 + $0x2d0] sm:%s227]
                %327 = vst [vmem:[%s235 + $0x168] sm:%s227] %v326
                %v328 = vld [vmem:[%s234 + $0x2e0] sm:%s227]
                %329 = vst [vmem:[%s235 + $0x170] sm:%s227] %v328
                %v330 = vld [vmem:[%s234 + $0x2f0] sm:%s227]
                %331 = vst [vmem:[%s235 + $0x178] sm:%s227] %v330
                %v332 = vld [vmem:[%s234 + $0x300] sm:%s227]
                %333 = vst [vmem:[%s235 + $0x180] sm:%s227] %v332
                %v334 = vld [vmem:[%s234 + $0x310] sm:%s227]
                %335 = vst [vmem:[%s235 + $0x188] sm:%s227] %v334
                %v336 = vld [vmem:[%s234 + $0x320] sm:%s227]
                %337 = vst [vmem:[%s235 + $0x190] sm:%s227] %v336
                %v338 = vld [vmem:[%s234 + $0x330] sm:%s227]
                %339 = vst [vmem:[%s235 + $0x198] sm:%s227] %v338
                %v340 = vld [vmem:[%s234 + $0x340] sm:%s227]
                %341 = vst [vmem:[%s235 + $0x1a0] sm:%s227] %v340
                %v342 = vld [vmem:[%s234 + $0x350] sm:%s227]
                %343 = vst [vmem:[%s235 + $0x1a8] sm:%s227] %v342
                %v344 = vld [vmem:[%s234 + $0x360] sm:%s227]
                %345 = vst [vmem:[%s235 + $0x1b0] sm:%s227] %v344
                %v346 = vld [vmem:[%s234 + $0x370] sm:%s227]
                %347 = vst [vmem:[%s235 + $0x1b8] sm:%s227] %v346
                %v348 = vld [vmem:[%s234 + $0x380] sm:%s227]
                %349 = vst [vmem:[%s235 + $0x1c0] sm:%s227] %v348
                %v350 = vld [vmem:[%s234 + $0x390] sm:%s227]
                %351 = vst [vmem:[%s235 + $0x1c8] sm:%s227] %v350
                %v352 = vld [vmem:[%s234 + $0x3a0] sm:%s227]
                %353 = vst [vmem:[%s235 + $0x1d0] sm:%s227] %v352
                %v354 = vld [vmem:[%s234 + $0x3b0] sm:%s227]
                %355 = vst [vmem:[%s235 + $0x1d8] sm:%s227] %v354
                %v356 = vld [vmem:[%s234 + $0x3c0] sm:%s227]
                %357 = vst [vmem:[%s235 + $0x1e0] sm:%s227] %v356
                %v358 = vld [vmem:[%s234 + $0x3d0] sm:%s227]
                %359 = vst [vmem:[%s235 + $0x1e8] sm:%s227] %v358
                %v360 = vld [vmem:[%s234 + $0x3e0] sm:%s227]
                %361 = vst [vmem:[%s235 + $0x1f0] sm:%s227] %v360
                %v362 = vld [vmem:[%s234 + $0x3f0] sm:%s227]
                %363 = vst [vmem:[%s235 + $0x1f8] sm:%s227] %v362
                %v364 = vld [vmem:[%s234 + $0x400] sm:%s227]
                %365 = vst [vmem:[%s235 + $0x200] sm:%s227] %v364
                %v366 = vld [vmem:[%s234 + $0x410] sm:%s227]
                %367 = vst [vmem:[%s235 + $0x208] sm:%s227] %v366
                %v368 = vld [vmem:[%s234 + $0x420] sm:%s227]
                %369 = vst [vmem:[%s235 + $0x210] sm:%s227] %v368
                %v370 = vld [vmem:[%s234 + $0x430] sm:%s227]
                %371 = vst [vmem:[%s235 + $0x218] sm:%s227] %v370
                %v372 = vld [vmem:[%s234 + $0x440] sm:%s227]
                %373 = vst [vmem:[%s235 + $0x220] sm:%s227] %v372
                %v374 = vld [vmem:[%s234 + $0x450] sm:%s227]
                %375 = vst [vmem:[%s235 + $0x228] sm:%s227] %v374
                %v376 = vld [vmem:[%s234 + $0x460] sm:%s227]
                %377 = vst [vmem:[%s235 + $0x230] sm:%s227] %v376
                %v378 = vld [vmem:[%s234 + $0x470] sm:%s227]
                %379 = vst [vmem:[%s235 + $0x238] sm:%s227] %v378
                %v380 = vld [vmem:[%s234 + $0x480] sm:%s227]
                %381 = vst [vmem:[%s235 + $0x240] sm:%s227] %v380
                %v382 = vld [vmem:[%s234 + $0x490] sm:%s227]
                %383 = vst [vmem:[%s235 + $0x248] sm:%s227] %v382
                %v384 = vld [vmem:[%s234 + $0x4a0] sm:%s227]
                %385 = vst [vmem:[%s235 + $0x250] sm:%s227] %v384
                %v386 = vld [vmem:[%s234 + $0x4b0] sm:%s227]
                %387 = vst [vmem:[%s235 + $0x258] sm:%s227] %v386
                %v388 = vld [vmem:[%s234 + $0x4c0] sm:%s227]
                %389 = vst [vmem:[%s235 + $0x260] sm:%s227] %v388
                %v390 = vld [vmem:[%s234 + $0x4d0] sm:%s227]
                %391 = vst [vmem:[%s235 + $0x268] sm:%s227] %v390
                %v392 = vld [vmem:[%s234 + $0x4e0] sm:%s227]
                %393 = vst [vmem:[%s235 + $0x270] sm:%s227] %v392
                %v394 = vld [vmem:[%s234 + $0x4f0] sm:%s227]
                %395 = vst [vmem:[%s235 + $0x278] sm:%s227] %v394
              $region63: #{dqn_forward.8} parent=57 // loop_footer
                %s233 = sadd.s32 1, %s229
              $region64: #{dqn_forward.8} parent=57 // loop_footer_branch
                %228 = sbr.rel target = $region60
              $region65: #{dqn_forward.8} parent=57 // loop_exit
                _
            $region58: #{dqn_forward.8} parent=49 // pred_fallthru
              _
          $region50: #{dqn_forward.8} parent=45 // pred_fallthru
            _
          %568 = vnop
        $region46: #{dqn_forward.8} parent=15 // pred_fallthru
          _
        // Predicated region
        $region81: #{dqn_forward.8} parent=15 // pred_check
          %p569 = pneg %p104
        $region82: #{dqn_forward.8} parent=15 // pred_check_branch
          %571 = sbr.rel (%p569) target = $region84
        $region83: #{dqn_forward.8} parent=15 // pred_region
          %s572 = smul.u32 2, %s17
          %p573 = scmp.lt.s32.totalorder %s572, 3
          %s574 = scalar_select %p573, %s572, 3
          %s575 = scalar_lea.vmem %s2, %s574
          %s576 = smul.u32 2, %s17
        $region84: #{dqn_forward.8} parent=15 // pred_fallthru
          _
      $region16: #{dqn_forward.8} parent=5 // pred_fallthru
        _
      %p577 = scmp.le.s32.totalorder 1, %s9
      %p578 = scmp.lt.s32.totalorder %s9, 11
      %p579 = pnand %p577, %p578
      %p580 = pneg %p579
      // Predicated region
      $region85: #{dqn_forward.8} parent=5 // pred_check
        _
      $region86: #{dqn_forward.8} parent=5 // pred_check_branch
        %582 = sbr.rel (%p579) target = $region88
      $region87: #{dqn_forward.8} parent=5 // pred_region
        %s583 = ssub.s32 %s9, 1
        %s584 = sand.u32 %s43, 1
        %s585 = sand.u32 %s43, 1
        %s586 = smul.addr %s585, 40
        %s587 = scalar_lea.vmem [#allocation3], %s586
        // Predicated region
        $region89: #{dqn_forward.8} parent=87 // pred_check
          %p588 = pneg %p56
        $region90: #{dqn_forward.8} parent=87 // pred_check_branch
          %590 = sbr.rel (%p588) target = $region92
        $region91: #{dqn_forward.8} parent=87 // pred_region
          _
        $region92: #{dqn_forward.8} parent=87 // pred_fallthru
          _
        %s591 = sand.u32 %s71, 1
        %s592 = sand.u32 %s71, 1
        %s593 = smul.addr %s592, 640
        %s594 = scalar_lea.vmem [#allocation4], %s593
        // Predicated region
        $region93: #{dqn_forward.8} parent=87 // pred_check
          %p595 = pneg %p84
        $region94: #{dqn_forward.8} parent=87 // pred_check_branch
          %597 = sbr.rel (%p595) target = $region96
        $region95: #{dqn_forward.8} parent=87 // pred_region
          _
        $region96: #{dqn_forward.8} parent=87 // pred_fallthru
          _
        %s598 = sand.u32 %s43, 1
        %s599 = sand.u32 %s43, 1
        %s600 = smul.addr %s599, 40
        %s601 = scalar_lea.vmem [#allocation3], %s600
        %p602 = pneg %p56
        %p603 = pneg %p53
        %s604 = sand.u32 %s71, 1
        %s605 = sand.u32 %s71, 1
        %s606 = smul.addr %s605, 640
        %s607 = scalar_lea.vmem [#allocation4], %s606
        %p608 = pneg %p84
        %p609 = pneg %p81
        %s610 = smul.u32 2, %s20
        %p611 = scmp.lt.s32.totalorder %s610, 3
        %s612 = scalar_select %p611, %s610, 3
        %s613 = scalar_lea.vmem %s2, %s612
        %p614 = pneg %p110
        %p615 = pneg %p107
        %p616 = pneg %p138
        %p617 = pneg %p135
        %s618 = sand.u32 %s125, 1
        %s619 = sand.u32 %s125, 1
        %s620 = smul.addr %s619, 16
        %s621 = scalar_lea.vmem [#allocation5], %s620
        %s622 = smul.u32 2, %s19
        %s623 = smul.u32 5, %s21
        %s624 = smul.u32 80, %s21
        %s625 = smul.u32 2, %s20
        %s626 = smul.u32 2, %s20
        %p627 = scmp.lt.s32.totalorder %s626, 3
        %s628 = scalar_select %p627, %s626, 3
        %s629 = scalar_lea.vmem %s2, %s628
        %s630 = smul.u32 2, %s20
        %s631 = smul.u32 2, %s19
        %s632 = smul.u32 2, %s20
        %p633 = scmp.eq.s32.totalorder %s21, 0
        // Predicated region
        $region97: #{dqn_forward.8} parent=87 // pred_check
          %p634 = pneg %p633
        $region98: #{dqn_forward.8} parent=87 // pred_check_branch
          %636 = sbr.rel (%p634) target = $region100
        $region99: #{dqn_forward.8} parent=87 // pred_region
          %637 = vst [vmem:[#allocation2] sm:$0xff] 0.0
          %638 = vst [vmem:[#allocation2 + $0x8] sm:$0xff] 0.0
          %639 = vst [vmem:[#allocation2 + $0x10] sm:$0xff] 0.0
          %640 = vst [vmem:[#allocation2 + $0x18] sm:$0xff] 0.0
        $region100: #{dqn_forward.8} parent=87 // pred_fallthru
          _
        %v641 = vld [vmem:[#allocation2] sm:$0xff]
        %v642 = vld [vmem:[#allocation2 + $0x8] sm:$0xff]
        %v643 = vld [vmem:[#allocation2 + $0x10] sm:$0xff]
        %v644 = vld [vmem:[#allocation2 + $0x18] sm:$0xff]
        %v645 = vld [vmem:[%s587] sm:$0xff]
        %v646 = vld [vmem:[%s587 + $0x8] sm:$0xff]
        %v647 = vld [vmem:[%s587 + $0x10] sm:$0xf]
        %v648 = vld [vmem:[%s587 + $0x14] sm:$0xff]
        %v649 = vld [vmem:[%s587 + $0x1c] sm:$0xff]
        %v650 = vld [vmem:[%s587 + $0x24] sm:$0xf]
        %v651 = vld [vmem:[%s594] sm:$0xff]
        %v652 = vld [vmem:[%s594 + $0x8] sm:$0xff]
        %v653 = vld [vmem:[%s594 + $0x10] sm:$0xff]
        %v654 = vld [vmem:[%s594 + $0x18] sm:$0xff]
        %v655 = vld [vmem:[%s594 + $0x20] sm:$0xff]
        %v656 = vld [vmem:[%s594 + $0x28] sm:$0xff]
        %v657 = vld [vmem:[%s594 + $0x30] sm:$0xff]
        %v658 = vld [vmem:[%s594 + $0x38] sm:$0xff]
        %v659 = vld [vmem:[%s594 + $0x40] sm:$0xff]
        %v660 = vld [vmem:[%s594 + $0x48] sm:$0xff]
        %v661 = vld [vmem:[%s594 + $0x50] sm:$0xff]
        %v662 = vld [vmem:[%s594 + $0x58] sm:$0xff]
        %v663 = vld [vmem:[%s594 + $0x60] sm:$0xff]
        %v664 = vld [vmem:[%s594 + $0x68] sm:$0xff]
        %v665 = vld [vmem:[%s594 + $0x70] sm:$0xff]
        %v666 = vld [vmem:[%s594 + $0x78] sm:$0xff]
        %v667 = vld [vmem:[%s594 + $0x80] sm:$0xff]
        %v668 = vld [vmem:[%s594 + $0x88] sm:$0xff]
        %v669 = vld [vmem:[%s594 + $0x90] sm:$0xff]
        %v670 = vld [vmem:[%s594 + $0x98] sm:$0xff]
        %v671 = vld [vmem:[%s594 + $0xa0] sm:$0xff]
        %v672 = vld [vmem:[%s594 + $0xa8] sm:$0xff]
        %v673 = vld [vmem:[%s594 + $0xb0] sm:$0xff]
        %v674 = vld [vmem:[%s594 + $0xb8] sm:$0xff]
        %v675 = vld [vmem:[%s594 + $0xc0] sm:$0xff]
        %v676 = vld [vmem:[%s594 + $0xc8] sm:$0xff]
        %v677 = vld [vmem:[%s594 + $0xd0] sm:$0xff]
        %v678 = vld [vmem:[%s594 + $0xd8] sm:$0xff]
        %v679 = vld [vmem:[%s594 + $0xe0] sm:$0xff]
        %v680 = vld [vmem:[%s594 + $0xe8] sm:$0xff]
        %v681 = vld [vmem:[%s594 + $0xf0] sm:$0xff]
        %v682 = vld [vmem:[%s594 + $0xf8] sm:$0xff]
        %v683 = vld [vmem:[%s594 + $0x100] sm:$0xff]
        %v684 = vld [vmem:[%s594 + $0x108] sm:$0xff]
        %v685 = vld [vmem:[%s594 + $0x110] sm:$0xff]
        %v686 = vld [vmem:[%s594 + $0x118] sm:$0xff]
        %v687 = vld [vmem:[%s594 + $0x120] sm:$0xff]
        %v688 = vld [vmem:[%s594 + $0x128] sm:$0xff]
        %v689 = vld [vmem:[%s594 + $0x130] sm:$0xff]
        %v690 = vld [vmem:[%s594 + $0x138] sm:$0xff]
        %v691 = vld [vmem:[%s594 + $0x140] sm:$0xff]
        %v692 = vld [vmem:[%s594 + $0x148] sm:$0xff]
        %v693 = vld [vmem:[%s594 + $0x150] sm:$0xff]
        %v694 = vld [vmem:[%s594 + $0x158] sm:$0xff]
        %v695 = vld [vmem:[%s594 + $0x160] sm:$0xff]
        %v696 = vld [vmem:[%s594 + $0x168] sm:$0xff]
        %v697 = vld [vmem:[%s594 + $0x170] sm:$0xff]
        %v698 = vld [vmem:[%s594 + $0x178] sm:$0xff]
        %v699 = vld [vmem:[%s594 + $0x180] sm:$0xff]
        %v700 = vld [vmem:[%s594 + $0x188] sm:$0xff]
        %v701 = vld [vmem:[%s594 + $0x190] sm:$0xff]
        %v702 = vld [vmem:[%s594 + $0x198] sm:$0xff]
        %v703 = vld [vmem:[%s594 + $0x1a0] sm:$0xff]
        %v704 = vld [vmem:[%s594 + $0x1a8] sm:$0xff]
        %v705 = vld [vmem:[%s594 + $0x1b0] sm:$0xff]
        %v706 = vld [vmem:[%s594 + $0x1b8] sm:$0xff]
        %v707 = vld [vmem:[%s594 + $0x1c0] sm:$0xff]
        %v708 = vld [vmem:[%s594 + $0x1c8] sm:$0xff]
        %v709 = vld [vmem:[%s594 + $0x1d0] sm:$0xff]
        %v710 = vld [vmem:[%s594 + $0x1d8] sm:$0xff]
        %v711 = vld [vmem:[%s594 + $0x1e0] sm:$0xff]
        %v712 = vld [vmem:[%s594 + $0x1e8] sm:$0xff]
        %v713 = vld [vmem:[%s594 + $0x1f0] sm:$0xff]
        %v714 = vld [vmem:[%s594 + $0x1f8] sm:$0xff]
        %v715 = vld [vmem:[%s594 + $0x200] sm:$0xff]
        %v716 = vld [vmem:[%s594 + $0x208] sm:$0xff]
        %v717 = vld [vmem:[%s594 + $0x210] sm:$0xff]
        %v718 = vld [vmem:[%s594 + $0x218] sm:$0xff]
        %v719 = vld [vmem:[%s594 + $0x220] sm:$0xff]
        %v720 = vld [vmem:[%s594 + $0x228] sm:$0xff]
        %v721 = vld [vmem:[%s594 + $0x230] sm:$0xff]
        %v722 = vld [vmem:[%s594 + $0x238] sm:$0xff]
        %v723 = vld [vmem:[%s594 + $0x240] sm:$0xff]
        %v724 = vld [vmem:[%s594 + $0x248] sm:$0xff]
        %v725 = vld [vmem:[%s594 + $0x250] sm:$0xff]
        %v726 = vld [vmem:[%s594 + $0x258] sm:$0xff]
        %v727 = vld [vmem:[%s594 + $0x260] sm:$0xff]
        %v728 = vld [vmem:[%s594 + $0x268] sm:$0xff]
        %v729 = vld [vmem:[%s594 + $0x270] sm:$0xff]
        %v730 = vld [vmem:[%s594 + $0x278] sm:$0xff]
        %v737 = vunpack.c.l.b16 %v645
        %v738 = vunpack.c.h.b16 %v645
        %v739 = vunpack.c.l.b16 %v646
        %v740 = vunpack.c.h.b16 %v646
        %v741 = vunpack.c.l.b16 %v647
        %v742 = vunpack.c.l.b16 %v648
        %v743 = vunpack.c.h.b16 %v648
        %v744 = vunpack.c.l.b16 %v649
        %v745 = vunpack.c.h.b16 %v649
        %v746 = vunpack.c.l.b16 %v650
        %v747 = vpack.c.b16 %v742, %v737
        %v748 = vpack.c.b16 %v743, %v738
        %v749 = vpack.c.b16 %v744, %v739
        %v750 = vpack.c.b16 %v745, %v740
        %v751 = vpack.c.b16 %v746, %v741
        %v837 = vunpack.c.l.b16 %v651
        %v838 = vunpack.c.h.b16 %v651
        %v839 = vunpack.c.l.b16 %v652
        %v840 = vunpack.c.h.b16 %v652
        %v841 = vunpack.c.l.b16 %v653
        %v842 = vunpack.c.h.b16 %v653
        %v843 = vunpack.c.l.b16 %v654
        %v844 = vunpack.c.h.b16 %v654
        %v845 = vunpack.c.l.b16 %v655
        %v846 = vunpack.c.h.b16 %v655
        %v847 = vunpack.c.l.b16 %v656
        %v848 = vunpack.c.h.b16 %v656
        %v849 = vunpack.c.l.b16 %v657
        %v850 = vunpack.c.h.b16 %v657
        %v851 = vunpack.c.l.b16 %v658
        %v852 = vunpack.c.h.b16 %v658
        %v853 = vunpack.c.l.b16 %v659
        %v854 = vunpack.c.h.b16 %v659
        %v855 = vunpack.c.l.b16 %v660
        %v856 = vunpack.c.h.b16 %v660
        %v857 = vunpack.c.l.b16 %v661
        %v858 = vunpack.c.h.b16 %v661
        %v859 = vunpack.c.l.b16 %v662
        %v860 = vunpack.c.h.b16 %v662
        %v861 = vunpack.c.l.b16 %v663
        %v862 = vunpack.c.h.b16 %v663
        %v863 = vunpack.c.l.b16 %v664
        %v864 = vunpack.c.h.b16 %v664
        %v865 = vunpack.c.l.b16 %v665
        %v866 = vunpack.c.h.b16 %v665
        %v867 = vunpack.c.l.b16 %v666
        %v868 = vunpack.c.h.b16 %v666
        %v869 = vunpack.c.l.b16 %v667
        %v870 = vunpack.c.h.b16 %v667
        %v871 = vunpack.c.l.b16 %v668
        %v872 = vunpack.c.h.b16 %v668
        %v873 = vunpack.c.l.b16 %v669
        %v874 = vunpack.c.h.b16 %v669
        %v875 = vunpack.c.l.b16 %v670
        %v876 = vunpack.c.h.b16 %v670
        %v877 = vunpack.c.l.b16 %v671
        %v878 = vunpack.c.h.b16 %v671
        %v879 = vunpack.c.l.b16 %v672
        %v880 = vunpack.c.h.b16 %v672
        %v881 = vunpack.c.l.b16 %v673
        %v882 = vunpack.c.h.b16 %v673
        %v883 = vunpack.c.l.b16 %v674
        %v884 = vunpack.c.h.b16 %v674
        %v885 = vunpack.c.l.b16 %v675
        %v886 = vunpack.c.h.b16 %v675
        %v887 = vunpack.c.l.b16 %v676
        %v888 = vunpack.c.h.b16 %v676
        %v889 = vunpack.c.l.b16 %v677
        %v890 = vunpack.c.h.b16 %v677
        %v891 = vunpack.c.l.b16 %v678
        %v892 = vunpack.c.h.b16 %v678
        %v893 = vunpack.c.l.b16 %v679
        %v894 = vunpack.c.h.b16 %v679
        %v895 = vunpack.c.l.b16 %v680
        %v896 = vunpack.c.h.b16 %v680
        %v897 = vunpack.c.l.b16 %v681
        %v898 = vunpack.c.h.b16 %v681
        %v899 = vunpack.c.l.b16 %v682
        %v900 = vunpack.c.h.b16 %v682
        %v901 = vunpack.c.l.b16 %v683
        %v902 = vunpack.c.h.b16 %v683
        %v903 = vunpack.c.l.b16 %v684
        %v904 = vunpack.c.h.b16 %v684
        %v905 = vunpack.c.l.b16 %v685
        %v906 = vunpack.c.h.b16 %v685
        %v907 = vunpack.c.l.b16 %v686
        %v908 = vunpack.c.h.b16 %v686
        %v909 = vunpack.c.l.b16 %v687
        %v910 = vunpack.c.h.b16 %v687
        %v911 = vunpack.c.l.b16 %v688
        %v912 = vunpack.c.h.b16 %v688
        %v913 = vunpack.c.l.b16 %v689
        %v914 = vunpack.c.h.b16 %v689
        %v915 = vunpack.c.l.b16 %v690
        %v916 = vunpack.c.h.b16 %v690
        %v917 = vunpack.c.l.b16 %v691
        %v918 = vunpack.c.h.b16 %v691
        %v919 = vunpack.c.l.b16 %v692
        %v920 = vunpack.c.h.b16 %v692
        %v921 = vunpack.c.l.b16 %v693
        %v922 = vunpack.c.h.b16 %v693
        %v923 = vunpack.c.l.b16 %v694
        %v924 = vunpack.c.h.b16 %v694
        %v925 = vunpack.c.l.b16 %v695
        %v926 = vunpack.c.h.b16 %v695
        %v927 = vunpack.c.l.b16 %v696
        %v928 = vunpack.c.h.b16 %v696
        %v929 = vunpack.c.l.b16 %v697
        %v930 = vunpack.c.h.b16 %v697
        %v931 = vunpack.c.l.b16 %v698
        %v932 = vunpack.c.h.b16 %v698
        %v933 = vunpack.c.l.b16 %v699
        %v934 = vunpack.c.h.b16 %v699
        %v935 = vunpack.c.l.b16 %v700
        %v936 = vunpack.c.h.b16 %v700
        %v937 = vunpack.c.l.b16 %v701
        %v938 = vunpack.c.h.b16 %v701
        %v939 = vunpack.c.l.b16 %v702
        %v940 = vunpack.c.h.b16 %v702
        %v941 = vunpack.c.l.b16 %v703
        %v942 = vunpack.c.h.b16 %v703
        %v943 = vunpack.c.l.b16 %v704
        %v944 = vunpack.c.h.b16 %v704
        %v945 = vunpack.c.l.b16 %v705
        %v946 = vunpack.c.h.b16 %v705
        %v947 = vunpack.c.l.b16 %v706
        %v948 = vunpack.c.h.b16 %v706
        %v949 = vunpack.c.l.b16 %v707
        %v950 = vunpack.c.h.b16 %v707
        %v951 = vunpack.c.l.b16 %v708
        %v952 = vunpack.c.h.b16 %v708
        %v953 = vunpack.c.l.b16 %v709
        %v954 = vunpack.c.h.b16 %v709
        %v955 = vunpack.c.l.b16 %v710
        %v956 = vunpack.c.h.b16 %v710
        %v957 = vunpack.c.l.b16 %v711
        %v958 = vunpack.c.h.b16 %v711
        %v959 = vunpack.c.l.b16 %v712
        %v960 = vunpack.c.h.b16 %v712
        %v961 = vunpack.c.l.b16 %v713
        %v962 = vunpack.c.h.b16 %v713
        %v963 = vunpack.c.l.b16 %v714
        %v964 = vunpack.c.h.b16 %v714
        %v965 = vunpack.c.l.b16 %v715
        %v966 = vunpack.c.h.b16 %v715
        %v967 = vunpack.c.l.b16 %v716
        %v968 = vunpack.c.h.b16 %v716
        %v969 = vunpack.c.l.b16 %v717
        %v970 = vunpack.c.h.b16 %v717
        %v971 = vunpack.c.l.b16 %v718
        %v972 = vunpack.c.h.b16 %v718
        %v973 = vunpack.c.l.b16 %v719
        %v974 = vunpack.c.h.b16 %v719
        %v975 = vunpack.c.l.b16 %v720
        %v976 = vunpack.c.h.b16 %v720
        %v977 = vunpack.c.l.b16 %v721
        %v978 = vunpack.c.h.b16 %v721
        %v979 = vunpack.c.l.b16 %v722
        %v980 = vunpack.c.h.b16 %v722
        %v981 = vunpack.c.l.b16 %v723
        %v982 = vunpack.c.h.b16 %v723
        %v983 = vunpack.c.l.b16 %v724
        %v984 = vunpack.c.h.b16 %v724
        %v985 = vunpack.c.l.b16 %v725
        %v986 = vunpack.c.h.b16 %v725
        %v987 = vunpack.c.l.b16 %v726
        %v988 = vunpack.c.h.b16 %v726
        %v989 = vunpack.c.l.b16 %v727
        %v990 = vunpack.c.h.b16 %v727
        %v991 = vunpack.c.l.b16 %v728
        %v992 = vunpack.c.h.b16 %v728
        %v993 = vunpack.c.l.b16 %v729
        %v994 = vunpack.c.h.b16 %v729
        %v995 = vunpack.c.l.b16 %v730
        %v996 = vunpack.c.h.b16 %v730
        %v997 = vpack.c.b16 %v839, %v837
        %v998 = vpack.c.b16 %v840, %v838
        %v999 = vpack.c.b16 %v843, %v841
        %v1000 = vpack.c.b16 %v844, %v842
        %v1001 = vpack.c.b16 %v847, %v845
        %v1002 = vpack.c.b16 %v848, %v846
        %v1003 = vpack.c.b16 %v851, %v849
        %v1004 = vpack.c.b16 %v852, %v850
        %v1005 = vpack.c.b16 %v855, %v853
        %v1006 = vpack.c.b16 %v856, %v854
        %v1007 = vpack.c.b16 %v859, %v857
        %v1008 = vpack.c.b16 %v860, %v858
        %v1009 = vpack.c.b16 %v863, %v861
        %v1010 = vpack.c.b16 %v864, %v862
        %v1011 = vpack.c.b16 %v867, %v865
        %v1012 = vpack.c.b16 %v868, %v866
        %v1013 = vpack.c.b16 %v871, %v869
        %v1014 = vpack.c.b16 %v872, %v870
        %v1015 = vpack.c.b16 %v875, %v873
        %v1016 = vpack.c.b16 %v876, %v874
        %v1017 = vpack.c.b16 %v879, %v877
        %v1018 = vpack.c.b16 %v880, %v878
        %v1019 = vpack.c.b16 %v883, %v881
        %v1020 = vpack.c.b16 %v884, %v882
        %v1021 = vpack.c.b16 %v887, %v885
        %v1022 = vpack.c.b16 %v888, %v886
        %v1023 = vpack.c.b16 %v891, %v889
        %v1024 = vpack.c.b16 %v892, %v890
        %v1025 = vpack.c.b16 %v895, %v893
        %v1026 = vpack.c.b16 %v896, %v894
        %v1027 = vpack.c.b16 %v899, %v897
        %v1028 = vpack.c.b16 %v900, %v898
        %v1029 = vpack.c.b16 %v903, %v901
        %v1030 = vpack.c.b16 %v904, %v902
        %v1031 = vpack.c.b16 %v907, %v905
        %v1032 = vpack.c.b16 %v908, %v906
        %v1033 = vpack.c.b16 %v911, %v909
        %v1034 = vpack.c.b16 %v912, %v910
        %v1035 = vpack.c.b16 %v915, %v913
        %v1036 = vpack.c.b16 %v916, %v914
        %v1037 = vpack.c.b16 %v919, %v917
        %v1038 = vpack.c.b16 %v920, %v918
        %v1039 = vpack.c.b16 %v923, %v921
        %v1040 = vpack.c.b16 %v924, %v922
        %v1041 = vpack.c.b16 %v927, %v925
        %v1042 = vpack.c.b16 %v928, %v926
        %v1043 = vpack.c.b16 %v931, %v929
        %v1044 = vpack.c.b16 %v932, %v930
        %v1045 = vpack.c.b16 %v935, %v933
        %v1046 = vpack.c.b16 %v936, %v934
        %v1047 = vpack.c.b16 %v939, %v937
        %v1048 = vpack.c.b16 %v940, %v938
        %v1049 = vpack.c.b16 %v943, %v941
        %v1050 = vpack.c.b16 %v944, %v942
        %v1051 = vpack.c.b16 %v947, %v945
        %v1052 = vpack.c.b16 %v948, %v946
        %v1053 = vpack.c.b16 %v951, %v949
        %v1054 = vpack.c.b16 %v952, %v950
        %v1055 = vpack.c.b16 %v955, %v953
        %v1056 = vpack.c.b16 %v956, %v954
        %v1057 = vpack.c.b16 %v959, %v957
        %v1058 = vpack.c.b16 %v960, %v958
        %v1059 = vpack.c.b16 %v963, %v961
        %v1060 = vpack.c.b16 %v964, %v962
        %v1061 = vpack.c.b16 %v967, %v965
        %v1062 = vpack.c.b16 %v968, %v966
        %v1063 = vpack.c.b16 %v971, %v969
        %v1064 = vpack.c.b16 %v972, %v970
        %v1065 = vpack.c.b16 %v975, %v973
        %v1066 = vpack.c.b16 %v976, %v974
        %v1067 = vpack.c.b16 %v979, %v977
        %v1068 = vpack.c.b16 %v980, %v978
        %v1069 = vpack.c.b16 %v983, %v981
        %v1070 = vpack.c.b16 %v984, %v982
        %v1071 = vpack.c.b16 %v987, %v985
        %v1072 = vpack.c.b16 %v988, %v986
        %v1073 = vpack.c.b16 %v991, %v989
        %v1074 = vpack.c.b16 %v992, %v990
        %v1075 = vpack.c.b16 %v995, %v993
        %v1076 = vpack.c.b16 %v996, %v994
        %1157 = vmatpush.bf16.msra.mxu0 %v1011
        %1158 = vmatpush.bf16.msra.mxu0 %v1009
        %1159 = vmatpush.bf16.msra.mxu0 %v1007
        %1160 = vmatpush.bf16.msra.mxu0 %v1005
        %1161 = vmatpush.bf16.msra.mxu0 %v1003
        %1162 = vmatpush.bf16.msra.mxu0 %v1001
        %1163 = vmatpush.bf16.msra.mxu0 %v999
        %1164 = vmatpush.bf16.msra.mxu0 %v997
        %1165 = vmatmul.bf16.gmra.mxu0 %v747
        %v1166 = vpop.f32.mrf.mxu0
        %v1167 = vadd.f32 0.0, %v1166
        %v1168 = vpop.f32.mrf.mxu0
        %v1169 = vadd.f32 0.0, %v1168
        %1170 = vdwg.mxu0
        %1171 = vmatpush.bf16.msra.mxu0 %v1027
        %1172 = vmatpush.bf16.msra.mxu0 %v1025
        %1173 = vmatpush.bf16.msra.mxu0 %v1023
        %1174 = vmatpush.bf16.msra.mxu0 %v1021
        %1175 = vmatpush.bf16.msra.mxu0 %v1019
        %1176 = vmatpush.bf16.msra.mxu0 %v1017
        %1177 = vmatpush.bf16.msra.mxu0 %v1015
        %1178 = vmatpush.bf16.msra.mxu0 %v1013
        %1179 = vmatmul.bf16.gmra.mxu0 %v748
        %v1180 = vpop.f32.mrf.mxu0
        %v1181 = vadd.f32 %v1167, %v1180
        %v1182 = vpop.f32.mrf.mxu0
        %v1183 = vadd.f32 %v1169, %v1182
        %1184 = vdwg.mxu0
        %1185 = vmatpush.bf16.msra.mxu0 %v1043
        %1186 = vmatpush.bf16.msra.mxu0 %v1041
        %1187 = vmatpush.bf16.msra.mxu0 %v1039
        %1188 = vmatpush.bf16.msra.mxu0 %v1037
        %1189 = vmatpush.bf16.msra.mxu0 %v1035
        %1190 = vmatpush.bf16.msra.mxu0 %v1033
        %1191 = vmatpush.bf16.msra.mxu0 %v1031
        %1192 = vmatpush.bf16.msra.mxu0 %v1029
        %1193 = vmatmul.bf16.gmra.mxu0 %v749
        %v1194 = vpop.f32.mrf.mxu0
        %v1195 = vadd.f32 %v1181, %v1194
        %v1196 = vpop.f32.mrf.mxu0
        %v1197 = vadd.f32 %v1183, %v1196
        %1198 = vdwg.mxu0
        %1199 = vmatpush.bf16.msra.mxu0 %v1059
        %1200 = vmatpush.bf16.msra.mxu0 %v1057
        %1201 = vmatpush.bf16.msra.mxu0 %v1055
        %1202 = vmatpush.bf16.msra.mxu0 %v1053
        %1203 = vmatpush.bf16.msra.mxu0 %v1051
        %1204 = vmatpush.bf16.msra.mxu0 %v1049
        %1205 = vmatpush.bf16.msra.mxu0 %v1047
        %1206 = vmatpush.bf16.msra.mxu0 %v1045
        %1207 = vmatmul.bf16.gmra.mxu0 %v750
        %v1208 = vpop.f32.mrf.mxu0
        %v1209 = vadd.f32 %v1195, %v1208
        %v1210 = vpop.f32.mrf.mxu0
        %v1211 = vadd.f32 %v1197, %v1210
        %1212 = vdwg.mxu0
        %1213 = vmatpush.bf16.msra.mxu0 %v1075
        %1214 = vmatpush.bf16.msra.mxu0 %v1073
        %1215 = vmatpush.bf16.msra.mxu0 %v1071
        %1216 = vmatpush.bf16.msra.mxu0 %v1069
        %1217 = vmatpush.bf16.msra.mxu0 %v1067
        %1218 = vmatpush.bf16.msra.mxu0 %v1065
        %1219 = vmatpush.bf16.msra.mxu0 %v1063
        %1220 = vmatpush.bf16.msra.mxu0 %v1061
        %1221 = vmatmul.bf16.gmra.mxu0 %v751
        %v1222 = vpop.f32.mrf.mxu0
        %v1223 = vadd.f32 %v1209, %v1222
        %v1224 = vpop.f32.mrf.mxu0
        %v1225 = vadd.f32 %v1211, %v1224
        %1226 = vdwg.mxu0
        %1227 = vmatpush.bf16.msra.mxu0 %v1012
        %1228 = vmatpush.bf16.msra.mxu0 %v1010
        %1229 = vmatpush.bf16.msra.mxu0 %v1008
        %1230 = vmatpush.bf16.msra.mxu0 %v1006
        %1231 = vmatpush.bf16.msra.mxu0 %v1004
        %1232 = vmatpush.bf16.msra.mxu0 %v1002
        %1233 = vmatpush.bf16.msra.mxu0 %v1000
        %1234 = vmatpush.bf16.msra.mxu0 %v998
        %1235 = vmatmul.bf16.gmra.mxu0 %v747
        %v1236 = vpop.f32.mrf.mxu0
        %v1237 = vadd.f32 0.0, %v1236
        %v1238 = vpop.f32.mrf.mxu0
        %v1239 = vadd.f32 0.0, %v1238
        %1240 = vdwg.mxu0
        %1241 = vmatpush.bf16.msra.mxu0 %v1028
        %1242 = vmatpush.bf16.msra.mxu0 %v1026
        %1243 = vmatpush.bf16.msra.mxu0 %v1024
        %1244 = vmatpush.bf16.msra.mxu0 %v1022
        %1245 = vmatpush.bf16.msra.mxu0 %v1020
        %1246 = vmatpush.bf16.msra.mxu0 %v1018
        %1247 = vmatpush.bf16.msra.mxu0 %v1016
        %1248 = vmatpush.bf16.msra.mxu0 %v1014
        %1249 = vmatmul.bf16.gmra.mxu0 %v748
        %v1250 = vpop.f32.mrf.mxu0
        %v1251 = vadd.f32 %v1237, %v1250
        %v1252 = vpop.f32.mrf.mxu0
        %v1253 = vadd.f32 %v1239, %v1252
        %1254 = vdwg.mxu0
        %1255 = vmatpush.bf16.msra.mxu0 %v1044
        %1256 = vmatpush.bf16.msra.mxu0 %v1042
        %1257 = vmatpush.bf16.msra.mxu0 %v1040
        %1258 = vmatpush.bf16.msra.mxu0 %v1038
        %1259 = vmatpush.bf16.msra.mxu0 %v1036
        %1260 = vmatpush.bf16.msra.mxu0 %v1034
        %1261 = vmatpush.bf16.msra.mxu0 %v1032
        %1262 = vmatpush.bf16.msra.mxu0 %v1030
        %1263 = vmatmul.bf16.gmra.mxu0 %v749
        %v1264 = vpop.f32.mrf.mxu0
        %v1265 = vadd.f32 %v1251, %v1264
        %v1266 = vpop.f32.mrf.mxu0
        %v1267 = vadd.f32 %v1253, %v1266
        %1268 = vdwg.mxu0
        %1269 = vmatpush.bf16.msra.mxu0 %v1060
        %1270 = vmatpush.bf16.msra.mxu0 %v1058
        %1271 = vmatpush.bf16.msra.mxu0 %v1056
        %1272 = vmatpush.bf16.msra.mxu0 %v1054
        %1273 = vmatpush.bf16.msra.mxu0 %v1052
        %1274 = vmatpush.bf16.msra.mxu0 %v1050
        %1275 = vmatpush.bf16.msra.mxu0 %v1048
        %1276 = vmatpush.bf16.msra.mxu0 %v1046
        %1277 = vmatmul.bf16.gmra.mxu0 %v750
        %v1278 = vpop.f32.mrf.mxu0
        %v1279 = vadd.f32 %v1265, %v1278
        %v1280 = vpop.f32.mrf.mxu0
        %v1281 = vadd.f32 %v1267, %v1280
        %1282 = vdwg.mxu0
        %1283 = vmatpush.bf16.msra.mxu0 %v1076
        %1284 = vmatpush.bf16.msra.mxu0 %v1074
        %1285 = vmatpush.bf16.msra.mxu0 %v1072
        %1286 = vmatpush.bf16.msra.mxu0 %v1070
        %1287 = vmatpush.bf16.msra.mxu0 %v1068
        %1288 = vmatpush.bf16.msra.mxu0 %v1066
        %1289 = vmatpush.bf16.msra.mxu0 %v1064
        %1290 = vmatpush.bf16.msra.mxu0 %v1062
        %1291 = vmatmul.bf16.gmra.mxu0 %v751
        %v1292 = vpop.f32.mrf.mxu0
        %v1293 = vadd.f32 %v1279, %v1292
        %v1294 = vpop.f32.mrf.mxu0
        %v1295 = vadd.f32 %v1281, %v1294
        %1296 = vdwg.mxu0
        %v1297 = vadd.f32 %v641, %v1223
        %v1298 = vadd.f32 %v642, %v1293
        %v1299 = vadd.f32 %v643, %v1225
        %v1300 = vadd.f32 %v644, %v1295
        %1301 = vst [vmem:[#allocation2] sm:$0xff] %v1297
        %1302 = vst [vmem:[#allocation2 + $0x8] sm:$0xff] %v1298
        %1303 = vst [vmem:[#allocation2 + $0x10] sm:$0xff] %v1299
        %1304 = vst [vmem:[#allocation2 + $0x18] sm:$0xff] %v1300
        %p1305 = scmp.eq.s32.totalorder %s21, 4
        // Predicated region
        $region101: #{dqn_forward.8} parent=87 // pred_check
          %p1306 = pneg %p1305
        $region102: #{dqn_forward.8} parent=87 // pred_check_branch
          %1308 = sbr.rel (%p1306) target = $region104
        $region103: #{dqn_forward.8} parent=87 // pred_region
          %v1309 = vld [vmem:[#allocation2] sm:$0xff]
          %v1310 = vld [vmem:[#allocation2 + $0x8] sm:$0xff]
          %v1311 = vld [vmem:[#allocation2 + $0x10] sm:$0xff]
          %v1312 = vld [vmem:[#allocation2 + $0x18] sm:$0xff]
          %v1313 = vld [vmem:[%s629] sm:$0x3]
          %v1315 = vperm.slane %v1313, 0
          %v1316 = vperm.slane %v1313, 1
          %v1319 = vadd.f32 %v1309, %v1315
          %v1320 = vadd.f32 %v1310, %v1316
          %v1321 = vadd.f32 %v1311, %v1315
          %v1322 = vadd.f32 %v1312, %v1316
          %v1323 = vmax.f32 %v1319, 0.0
          %v1324 = vmax.f32 %v1320, 0.0
          %v1325 = vmax.f32 %v1321, 0.0
          %v1326 = vmax.f32 %v1322, 0.0
          %v1327 = vpack.c.bf16 %v1324, %v1323
          %v1328 = vpack.c.bf16 %v1326, %v1325
          %1329 = vst [vmem:[%s621] sm:$0xff] %v1327
          %1330 = vst [vmem:[%s621 + $0x8] sm:$0xff] %v1328
        $region104: #{dqn_forward.8} parent=87 // pred_fallthru
          _
        %s1331 = sand.u32 %s125, 1
        %s1332 = sand.u32 %s125, 1
        %s1333 = smul.addr %s1332, 16
        %s1334 = scalar_lea.vmem [#allocation5], %s1333
        // Predicated region
        $region105: #{dqn_forward.8} parent=87 // pred_check
          %p1335 = pneg %p135
        $region106: #{dqn_forward.8} parent=87 // pred_check_branch
          %1337 = sbr.rel (%p1335) target = $region108
        $region107: #{dqn_forward.8} parent=87 // pred_region
          %s1338 = smul.u32 2, %s19
          %s1339 = smul.u32 2, %s20
          %s1340 = smul.addr %s1338, 4
          %s1341 = sadd.s32 %s1339, %s1340
          %s1342 = smul.addr %s1341, 4
          %s1343 = scalar_lea.vmem %s3, %s1342
          // Predicated region
          $region109: #{dqn_forward.8} parent=107 // pred_check
            _
          $region110: #{dqn_forward.8} parent=107 // pred_check_branch
            %1345 = sbr.rel (0) target = $region112
          $region111: #{dqn_forward.8} parent=107 // pred_region
            // Predicated region
            $region113: #{dqn_forward.8} parent=111 // pred_check
              _
            $region114: #{dqn_forward.8} parent=111 // pred_check_branch
              %1347 = sbr.rel (0) target = $region116
            $region115: #{dqn_forward.8} parent=111 // pred_region
              // Predicated region
              $region128: #{dqn_forward.8} parent=115 // pred_check
                _
              $region129: #{dqn_forward.8} parent=115 // pred_check_branch
                %1365 = sbr.rel (0) target = $region131
              $region130: #{dqn_forward.8} parent=115 // pred_region
                loop: start=0, step=1, limit=1
                $region132: #{dqn_forward.8} parent=130 // loop_pre_header
                  _
                $region133: #{dqn_forward.8} parent=130 // loop_header
                  %s1367 = sphi 0, %s1371
                  %p1368 = scmp.ge.s32.totalorder %s1367, 1
                  %s1372 = sphi %s1334, %s1334
                  %s1373 = sphi %s1343, %s1343
                $region134: #{dqn_forward.8} parent=130 // loop_header_branch
                  %1370 = sbr.rel (%p1368) target = $region138
                $region135: #{dqn_forward.8} parent=130 // loop_body
                  %v1374 = vld [vmem:[%s1372] sm:$0xff]
                  %1375 = vst [vmem:[%s1373] sm:$0xff] %v1374
                  %v1376 = vld [vmem:[%s1372 + $0x8] sm:$0xff]
                  %1377 = vst [vmem:[%s1373 + $0x10] sm:$0xff] %v1376
                $region136: #{dqn_forward.8} parent=130 // loop_footer
                  %s1371 = sadd.s32 1, %s1367
                $region137: #{dqn_forward.8} parent=130 // loop_footer_branch
                  %1366 = sbr.rel target = $region133
                $region138: #{dqn_forward.8} parent=130 // loop_exit
                  _
              $region131: #{dqn_forward.8} parent=115 // pred_fallthru
                _
              // Predicated region
              $region139: #{dqn_forward.8} parent=115 // pred_check
                _
              $region140: #{dqn_forward.8} parent=115 // pred_check_branch
                %1379 = sbr.rel target = $region142
              $region141: #{dqn_forward.8} parent=115 // pred_region
                _
              $region142: #{dqn_forward.8} parent=115 // pred_fallthru
                _
            $region116: #{dqn_forward.8} parent=111 // pred_fallthru
              _
            // Predicated region
            $region117: #{dqn_forward.8} parent=111 // pred_check
              _
            $region118: #{dqn_forward.8} parent=111 // pred_check_branch
              %1349 = sbr.rel target = $region120
            $region119: #{dqn_forward.8} parent=111 // pred_region
              %s1351 = ssub.s32 256, 1
              loop: start=0, step=1, limit=1
              $region121: #{dqn_forward.8} parent=119 // loop_pre_header
                _
              $region122: #{dqn_forward.8} parent=119 // loop_header
                %s1353 = sphi 0, %s1357
                %p1354 = scmp.ge.s32.totalorder %s1353, 1
                %s1358 = sphi %s1334, %s1334
                %s1359 = sphi %s1343, %s1343
              $region123: #{dqn_forward.8} parent=119 // loop_header_branch
                %1356 = sbr.rel (%p1354) target = $region127
              $region124: #{dqn_forward.8} parent=119 // loop_body
                %v1360 = vld [vmem:[%s1358] sm:%s1351]
                %1361 = vst [vmem:[%s1359] sm:%s1351] %v1360
                %v1362 = vld [vmem:[%s1358 + $0x8] sm:%s1351]
                %1363 = vst [vmem:[%s1359 + $0x10] sm:%s1351] %v1362
              $region125: #{dqn_forward.8} parent=119 // loop_footer
                %s1357 = sadd.s32 1, %s1353
              $region126: #{dqn_forward.8} parent=119 // loop_footer_branch
                %1352 = sbr.rel target = $region122
              $region127: #{dqn_forward.8} parent=119 // loop_exit
                _
            $region120: #{dqn_forward.8} parent=111 // pred_fallthru
              _
          $region112: #{dqn_forward.8} parent=107 // pred_fallthru
            _
          %1380 = vnop
        $region108: #{dqn_forward.8} parent=87 // pred_fallthru
          _
      $region88: #{dqn_forward.8} parent=5 // pred_fallthru
        _
      %p1381 = scmp.le.s32.totalorder 2, %s9
      // Predicated region
      $region143: #{dqn_forward.8} parent=5 // pred_check
        %p1382 = pneg %p1381
      $region144: #{dqn_forward.8} parent=5 // pred_check_branch
        %1384 = sbr.rel (%p1382) target = $region146
      $region145: #{dqn_forward.8} parent=5 // pred_region
        %s1385 = ssub.s32 %s9, 2
        // Predicated region
        $region147: #{dqn_forward.8} parent=145 // pred_check
          %p1386 = pneg %p141
        $region148: #{dqn_forward.8} parent=145 // pred_check_branch
          %1388 = sbr.rel (%p1386) target = $region150
        $region149: #{dqn_forward.8} parent=145 // pred_region
          %s1389 = sand.u32 %s126, 1
          %s1390 = sand.u32 %s126, 1
          %s1391 = smul.addr %s1390, 16
          %s1392 = scalar_lea.vmem [#allocation5], %s1391
        $region150: #{dqn_forward.8} parent=145 // pred_fallthru
          _
      $region146: #{dqn_forward.8} parent=5 // pred_fallthru
        _
    $region6: #{dqn_forward.8} parent=1 // loop_footer
      %s13 = sadd.s32 1, %s9
    $region7: #{dqn_forward.8} parent=1 // loop_footer_branch
      %8 = sbr.rel target = $region3
    $region8: #{dqn_forward.8} parent=1 // loop_exit
      _

// kernel: dqn_forward.9
$region0: #{dqn_forward.9}
  #allocation0 [shape = 'u32[]', space=smem, size = 0x4, offset = 0x4, fixed_abs, tag = 'smem constant byte address 0x4 - core index']
  #allocation1 [shape = 'u32[72,128]{1,0:T(1,128)}', space=vmem, size = 0x9000, scoped, tag = 'internal scratch']
  #allocation2 [shape = 'f32[16,128]{1,0:T(8,128)}', space=vmem, size = 0x2000, scoped, tag = 'scratch operand']
  %s0 = inlined_call_operand.vmem [shape: bf16[16,512], index: 0, kind: input, shape index: {}]
  %s1 = inlined_call_operand.vmem [shape: bf16[512,128], index: 1, kind: input, shape index: {}]
  %s2 = inlined_call_operand.vmem [shape: f32[1,128], index: 2, kind: input, shape index: {}]
  %s3 = inlined_call_operand.vmem [shape: f32[16,128], index: 3, kind: output, shape index: {}]
  %s4 = sld [smem:[#allocation0]]
  $region30: #{dqn_forward.9} parent=0
    _
  %s6 = ssub.s32 1, %s4
  %s7 = scalar_select 0, %s6, %s4
  // Predicated region
  $region2: #{dqn_forward.9} parent=0 // pred_check
    _
  $region3: #{dqn_forward.9} parent=0 // pred_check_branch
    %9 = sbr.rel (0) target = $region5
  $region4: #{dqn_forward.9} parent=0 // pred_region
    _
  $region5: #{dqn_forward.9} parent=0 // pred_fallthru
    _
  // Predicated region
  $region6: #{dqn_forward.9} parent=0 // pred_check
    _
  $region7: #{dqn_forward.9} parent=0 // pred_check_branch
    %11 = sbr.rel (0) target = $region9
  $region8: #{dqn_forward.9} parent=0 // pred_region
    _
  $region9: #{dqn_forward.9} parent=0 // pred_fallthru
    _
  // Predicated region
  $region10: #{dqn_forward.9} parent=0 // pred_check
    _
  $region11: #{dqn_forward.9} parent=0 // pred_check_branch
    %13 = sbr.rel (0) target = $region13
  $region12: #{dqn_forward.9} parent=0 // pred_region
    _
  $region13: #{dqn_forward.9} parent=0 // pred_fallthru
    _
  %p14 = scmp.eq.s32.totalorder 0, 0
  // Predicated region
  $region14: #{dqn_forward.9} parent=0 // pred_check
    %p15 = pneg %p14
  $region15: #{dqn_forward.9} parent=0 // pred_check_branch
    %17 = sbr.rel (%p15) target = $region17
  $region16: #{dqn_forward.9} parent=0 // pred_region
    %18 = vst [vmem:[#allocation2] sm:$0xff] 0.0
    %19 = vst [vmem:[#allocation2 + $0x8] sm:$0xff] 0.0
  $region17: #{dqn_forward.9} parent=0 // pred_fallthru
    _
  %v20 = vld [vmem:[#allocation2] sm:$0xff]
  %v21 = vld [vmem:[#allocation2 + $0x8] sm:$0xff]
  %v22 = vld [vmem:[%s0] sm:$0xff]
  %v23 = vld [vmem:[%s0 + $0x8] sm:$0xff]
  %v24 = vld [vmem:[%s0 + $0x10] sm:$0xff]
  %v25 = vld [vmem:[%s0 + $0x18] sm:$0xff]
  %v26 = vld [vmem:[%s1] sm:$0xf]
  %v27 = vld [vmem:[%s1 + $0x4] sm:$0xf]
  %v28 = vld [vmem:[%s1 + $0x8] sm:$0xf]
  %v29 = vld [vmem:[%s1 + $0xc] sm:$0xf]
  %v30 = vld [vmem:[%s1 + $0x10] sm:$0xf]
  %v31 = vld [vmem:[%s1 + $0x14] sm:$0xf]
  %v32 = vld [vmem:[%s1 + $0x18] sm:$0xf]
  %v33 = vld [vmem:[%s1 + $0x1c] sm:$0xf]
  %v34 = vld [vmem:[%s1 + $0x20] sm:$0xf]
  %v35 = vld [vmem:[%s1 + $0x24] sm:$0xf]
  %v36 = vld [vmem:[%s1 + $0x28] sm:$0xf]
  %v37 = vld [vmem:[%s1 + $0x2c] sm:$0xf]
  %v38 = vld [vmem:[%s1 + $0x30] sm:$0xf]
  %v39 = vld [vmem:[%s1 + $0x34] sm:$0xf]
  %v40 = vld [vmem:[%s1 + $0x38] sm:$0xf]
  %v41 = vld [vmem:[%s1 + $0x3c] sm:$0xf]
  %v42 = vld [vmem:[%s1 + $0x40] sm:$0xf]
  %v43 = vld [vmem:[%s1 + $0x44] sm:$0xf]
  %v44 = vld [vmem:[%s1 + $0x48] sm:$0xf]
  %v45 = vld [vmem:[%s1 + $0x4c] sm:$0xf]
  %v46 = vld [vmem:[%s1 + $0x50] sm:$0xf]
  %v47 = vld [vmem:[%s1 + $0x54] sm:$0xf]
  %v48 = vld [vmem:[%s1 + $0x58] sm:$0xf]
  %v49 = vld [vmem:[%s1 + $0x5c] sm:$0xf]
  %v50 = vld [vmem:[%s1 + $0x60] sm:$0xf]
  %v51 = vld [vmem:[%s1 + $0x64] sm:$0xf]
  %v52 = vld [vmem:[%s1 + $0x68] sm:$0xf]
  %v53 = vld [vmem:[%s1 + $0x6c] sm:$0xf]
  %v54 = vld [vmem:[%s1 + $0x70] sm:$0xf]
  %v55 = vld [vmem:[%s1 + $0x74] sm:$0xf]
  %v56 = vld [vmem:[%s1 + $0x78] sm:$0xf]
  %v57 = vld [vmem:[%s1 + $0x7c] sm:$0xf]
  %v58 = vld [vmem:[%s1 + $0x80] sm:$0xf]
  %v59 = vld [vmem:[%s1 + $0x84] sm:$0xf]
  %v60 = vld [vmem:[%s1 + $0x88] sm:$0xf]
  %v61 = vld [vmem:[%s1 + $0x8c] sm:$0xf]
  %v62 = vld [vmem:[%s1 + $0x90] sm:$0xf]
  %v63 = vld [vmem:[%s1 + $0x94] sm:$0xf]
  %v64 = vld [vmem:[%s1 + $0x98] sm:$0xf]
  %v65 = vld [vmem:[%s1 + $0x9c] sm:$0xf]
  %v66 = vld [vmem:[%s1 + $0xa0] sm:$0xf]
  %v67 = vld [vmem:[%s1 + $0xa4] sm:$0xf]
  %v68 = vld [vmem:[%s1 + $0xa8] sm:$0xf]
  %v69 = vld [vmem:[%s1 + $0xac] sm:$0xf]
  %v70 = vld [vmem:[%s1 + $0xb0] sm:$0xf]
  %v71 = vld [vmem:[%s1 + $0xb4] sm:$0xf]
  %v72 = vld [vmem:[%s1 + $0xb8] sm:$0xf]
  %v73 = vld [vmem:[%s1 + $0xbc] sm:$0xf]
  %v74 = vld [vmem:[%s1 + $0xc0] sm:$0xf]
  %v75 = vld [vmem:[%s1 + $0xc4] sm:$0xf]
  %v76 = vld [vmem:[%s1 + $0xc8] sm:$0xf]
  %v77 = vld [vmem:[%s1 + $0xcc] sm:$0xf]
  %v78 = vld [vmem:[%s1 + $0xd0] sm:$0xf]
  %v79 = vld [vmem:[%s1 + $0xd4] sm:$0xf]
  %v80 = vld [vmem:[%s1 + $0xd8] sm:$0xf]
  %v81 = vld [vmem:[%s1 + $0xdc] sm:$0xf]
  %v82 = vld [vmem:[%s1 + $0xe0] sm:$0xf]
  %v83 = vld [vmem:[%s1 + $0xe4] sm:$0xf]
  %v84 = vld [vmem:[%s1 + $0xe8] sm:$0xf]
  %v85 = vld [vmem:[%s1 + $0xec] sm:$0xf]
  %v86 = vld [vmem:[%s1 + $0xf0] sm:$0xf]
  %v87 = vld [vmem:[%s1 + $0xf4] sm:$0xf]
  %v88 = vld [vmem:[%s1 + $0xf8] sm:$0xf]
  %v89 = vld [vmem:[%s1 + $0xfc] sm:$0xf]
  %v94 = vunpack.c.l.b16 %v22
  %v95 = vunpack.c.h.b16 %v22
  %v96 = vunpack.c.l.b16 %v23
  %v97 = vunpack.c.h.b16 %v23
  %v98 = vunpack.c.l.b16 %v24
  %v99 = vunpack.c.h.b16 %v24
  %v100 = vunpack.c.l.b16 %v25
  %v101 = vunpack.c.h.b16 %v25
  %v102 = vpack.c.b16 %v98, %v94
  %v103 = vpack.c.b16 %v99, %v95
  %v104 = vpack.c.b16 %v100, %v96
  %v105 = vpack.c.b16 %v101, %v97
  %v174 = vunpack.c.l.b16 %v26
  %v175 = vunpack.c.l.b16 %v27
  %v176 = vunpack.c.l.b16 %v28
  %v177 = vunpack.c.l.b16 %v29
  %v178 = vunpack.c.l.b16 %v30
  %v179 = vunpack.c.l.b16 %v31
  %v180 = vunpack.c.l.b16 %v32
  %v181 = vunpack.c.l.b16 %v33
  %v182 = vunpack.c.l.b16 %v34
  %v183 = vunpack.c.l.b16 %v35
  %v184 = vunpack.c.l.b16 %v36
  %v185 = vunpack.c.l.b16 %v37
  %v186 = vunpack.c.l.b16 %v38
  %v187 = vunpack.c.l.b16 %v39
  %v188 = vunpack.c.l.b16 %v40
  %v189 = vunpack.c.l.b16 %v41
  %v190 = vunpack.c.l.b16 %v42
  %v191 = vunpack.c.l.b16 %v43
  %v192 = vunpack.c.l.b16 %v44
  %v193 = vunpack.c.l.b16 %v45
  %v194 = vunpack.c.l.b16 %v46
  %v195 = vunpack.c.l.b16 %v47
  %v196 = vunpack.c.l.b16 %v48
  %v197 = vunpack.c.l.b16 %v49
  %v198 = vunpack.c.l.b16 %v50
  %v199 = vunpack.c.l.b16 %v51
  %v200 = vunpack.c.l.b16 %v52
  %v201 = vunpack.c.l.b16 %v53
  %v202 = vunpack.c.l.b16 %v54
  %v203 = vunpack.c.l.b16 %v55
  %v204 = vunpack.c.l.b16 %v56
  %v205 = vunpack.c.l.b16 %v57
  %v206 = vunpack.c.l.b16 %v58
  %v207 = vunpack.c.l.b16 %v59
  %v208 = vunpack.c.l.b16 %v60
  %v209 = vunpack.c.l.b16 %v61
  %v210 = vunpack.c.l.b16 %v62
  %v211 = vunpack.c.l.b16 %v63
  %v212 = vunpack.c.l.b16 %v64
  %v213 = vunpack.c.l.b16 %v65
  %v214 = vunpack.c.l.b16 %v66
  %v215 = vunpack.c.l.b16 %v67
  %v216 = vunpack.c.l.b16 %v68
  %v217 = vunpack.c.l.b16 %v69
  %v218 = vunpack.c.l.b16 %v70
  %v219 = vunpack.c.l.b16 %v71
  %v220 = vunpack.c.l.b16 %v72
  %v221 = vunpack.c.l.b16 %v73
  %v222 = vunpack.c.l.b16 %v74
  %v223 = vunpack.c.l.b16 %v75
  %v224 = vunpack.c.l.b16 %v76
  %v225 = vunpack.c.l.b16 %v77
  %v226 = vunpack.c.l.b16 %v78
  %v227 = vunpack.c.l.b16 %v79
  %v228 = vunpack.c.l.b16 %v80
  %v229 = vunpack.c.l.b16 %v81
  %v230 = vunpack.c.l.b16 %v82
  %v231 = vunpack.c.l.b16 %v83
  %v232 = vunpack.c.l.b16 %v84
  %v233 = vunpack.c.l.b16 %v85
  %v234 = vunpack.c.l.b16 %v86
  %v235 = vunpack.c.l.b16 %v87
  %v236 = vunpack.c.l.b16 %v88
  %v237 = vunpack.c.l.b16 %v89
  %v238 = vpack.c.b16 %v175, %v174
  %v239 = vpack.c.b16 %v177, %v176
  %v240 = vpack.c.b16 %v179, %v178
  %v241 = vpack.c.b16 %v181, %v180
  %v242 = vpack.c.b16 %v183, %v182
  %v243 = vpack.c.b16 %v185, %v184
  %v244 = vpack.c.b16 %v187, %v186
  %v245 = vpack.c.b16 %v189, %v188
  %v246 = vpack.c.b16 %v191, %v190
  %v247 = vpack.c.b16 %v193, %v192
  %v248 = vpack.c.b16 %v195, %v194
  %v249 = vpack.c.b16 %v197, %v196
  %v250 = vpack.c.b16 %v199, %v198
  %v251 = vpack.c.b16 %v201, %v200
  %v252 = vpack.c.b16 %v203, %v202
  %v253 = vpack.c.b16 %v205, %v204
  %v254 = vpack.c.b16 %v207, %v206
  %v255 = vpack.c.b16 %v209, %v208
  %v256 = vpack.c.b16 %v211, %v210
  %v257 = vpack.c.b16 %v213, %v212
  %v258 = vpack.c.b16 %v215, %v214
  %v259 = vpack.c.b16 %v217, %v216
  %v260 = vpack.c.b16 %v219, %v218
  %v261 = vpack.c.b16 %v221, %v220
  %v262 = vpack.c.b16 %v223, %v222
  %v263 = vpack.c.b16 %v225, %v224
  %v264 = vpack.c.b16 %v227, %v226
  %v265 = vpack.c.b16 %v229, %v228
  %v266 = vpack.c.b16 %v231, %v230
  %v267 = vpack.c.b16 %v233, %v232
  %v268 = vpack.c.b16 %v235, %v234
  %v269 = vpack.c.b16 %v237, %v236
  %302 = vmatpush.bf16.msra.mxu0 %v245
  %303 = vmatpush.bf16.msra.mxu0 %v244
  %304 = vmatpush.bf16.msra.mxu0 %v243
  %305 = vmatpush.bf16.msra.mxu0 %v242
  %306 = vmatpush.bf16.msra.mxu0 %v241
  %307 = vmatpush.bf16.msra.mxu0 %v240
  %308 = vmatpush.bf16.msra.mxu0 %v239
  %309 = vmatpush.bf16.msra.mxu0 %v238
  %310 = vmatmul.bf16.gmra.mxu0 %v102
  %v311 = vpop.f32.mrf.mxu0
  %v312 = vadd.f32 0.0, %v311
  %v313 = vpop.f32.mrf.mxu0
  %v314 = vadd.f32 0.0, %v313
  %315 = vdwg.mxu0
  %316 = vmatpush.bf16.msra.mxu0 %v253
  %317 = vmatpush.bf16.msra.mxu0 %v252
  %318 = vmatpush.bf16.msra.mxu0 %v251
  %319 = vmatpush.bf16.msra.mxu0 %v250
  %320 = vmatpush.bf16.msra.mxu0 %v249
  %321 = vmatpush.bf16.msra.mxu0 %v248
  %322 = vmatpush.bf16.msra.mxu0 %v247
  %323 = vmatpush.bf16.msra.mxu0 %v246
  %324 = vmatmul.bf16.gmra.mxu0 %v103
  %v325 = vpop.f32.mrf.mxu0
  %v326 = vadd.f32 %v312, %v325
  %v327 = vpop.f32.mrf.mxu0
  %v328 = vadd.f32 %v314, %v327
  %329 = vdwg.mxu0
  %330 = vmatpush.bf16.msra.mxu0 %v261
  %331 = vmatpush.bf16.msra.mxu0 %v260
  %332 = vmatpush.bf16.msra.mxu0 %v259
  %333 = vmatpush.bf16.msra.mxu0 %v258
  %334 = vmatpush.bf16.msra.mxu0 %v257
  %335 = vmatpush.bf16.msra.mxu0 %v256
  %336 = vmatpush.bf16.msra.mxu0 %v255
  %337 = vmatpush.bf16.msra.mxu0 %v254
  %338 = vmatmul.bf16.gmra.mxu0 %v104
  %v339 = vpop.f32.mrf.mxu0
  %v340 = vadd.f32 %v326, %v339
  %v341 = vpop.f32.mrf.mxu0
  %v342 = vadd.f32 %v328, %v341
  %343 = vdwg.mxu0
  %344 = vmatpush.bf16.msra.mxu0 %v269
  %345 = vmatpush.bf16.msra.mxu0 %v268
  %346 = vmatpush.bf16.msra.mxu0 %v267
  %347 = vmatpush.bf16.msra.mxu0 %v266
  %348 = vmatpush.bf16.msra.mxu0 %v265
  %349 = vmatpush.bf16.msra.mxu0 %v264
  %350 = vmatpush.bf16.msra.mxu0 %v263
  %351 = vmatpush.bf16.msra.mxu0 %v262
  %352 = vmatmul.bf16.gmra.mxu0 %v105
  %v353 = vpop.f32.mrf.mxu0
  %v354 = vadd.f32 %v340, %v353
  %v355 = vpop.f32.mrf.mxu0
  %v356 = vadd.f32 %v342, %v355
  %357 = vdwg.mxu0
  %v358 = vadd.f32 %v20, %v354
  %v359 = vadd.f32 %v21, %v356
  %360 = vst [vmem:[#allocation2] sm:$0xff] %v358
  %361 = vst [vmem:[#allocation2 + $0x8] sm:$0xff] %v359
  // Predicated region
  $region18: #{dqn_forward.9} parent=0 // pred_check
    %p362 = pneg %p14
  $region19: #{dqn_forward.9} parent=0 // pred_check_branch
    %364 = sbr.rel (%p362) target = $region21
  $region20: #{dqn_forward.9} parent=0 // pred_region
    %v365 = vld [vmem:[#allocation2] sm:$0xff]
    %v366 = vld [vmem:[#allocation2 + $0x8] sm:$0xff]
    %v367 = vld [vmem:[%s2] sm:$0x1]
    %v369 = vperm.slane %v367, 0
    %v371 = vadd.f32 %v365, %v369
    %v372 = vadd.f32 %v366, %v369
    %373 = vst [vmem:[%s3] sm:$0xff] %v371
    %374 = vst [vmem:[%s3 + $0x8] sm:$0xff] %v372
  $region21: #{dqn_forward.9} parent=0 // pred_fallthru
    _
  // Predicated region
  $region22: #{dqn_forward.9} parent=0 // pred_check
    _
  $region23: #{dqn_forward.9} parent=0 // pred_check_branch
    %376 = sbr.rel (0) target = $region25
  $region24: #{dqn_forward.9} parent=0 // pred_region
    _
  $region25: #{dqn_forward.9} parent=0 // pred_fallthru
    _
  // Predicated region
  $region26: #{dqn_forward.9} parent=0 // pred_check
    _
  $region27: #{dqn_forward.9} parent=0 // pred_check_branch
    %378 = sbr.rel (0) target = $region29
  $region28: #{dqn_forward.9} parent=0 // pred_region
    _
  $region29: #{dqn_forward.9} parent=0 // pred_fallthru
    _

</llo_original>
